<compile_context>
chip_gen: v5e
topology: v5e:2x2
jax: 0.10.0
libtpu: 0.0.40
codegen_flags: <defaults>
</compile_context>

<pallas_src>
import jax
import jax.numpy as jnp
from jax import lax
from jax.experimental import pallas as pl
from jax.experimental.pallas import tpu as pltpu


def _round_up(x, m):
    return (x + m - 1) // m * m


def _lse_kernel(emb_ref, w_ref, b_ref, lse_ref, m_sc, l_sc):
    """Pass 1: online (flash-style) logsumexp over streamed vocab tiles."""
    v = pl.program_id(1)

    @pl.when(v == 0)
    def _():
        m_sc[...] = jnp.full_like(m_sc, -jnp.inf)
        l_sc[...] = jnp.zeros_like(l_sc)

    # emb_ref: (tile_b, E) bf16, w_ref: (tile_v, E) bf16 -> contract on E so the
    # wrapper never materializes W^T.  f32 accumulation on the MXU.
    h = lax.dot_general(
        emb_ref[...], w_ref[...],
        dimension_numbers=(((1,), (1,)), ((), ())),
        preferred_element_type=jnp.float32) + b_ref[...]

    m_prev = m_sc[...]
    m_new = jnp.maximum(m_prev, jnp.max(h, axis=-1, keepdims=True))
    alpha = jnp.exp(m_prev - m_new)          # == 0 on the first V tile (exp(-inf))
    l_sc[...] = alpha * l_sc[...] + jnp.sum(jnp.exp(h - m_new), axis=-1,
                                            keepdims=True)
    m_sc[...] = m_new

    @pl.when(v == pl.num_programs(1) - 1)
    def _():
        lse_ref[...] = m_sc[...] + jnp.log(l_sc[...])


def _log_softmax_kernel(emb_ref, w_ref, b_ref, lse_ref, out_ref):
    """Pass 2: recompute the logits block and write log_softmax directly."""
    h = lax.dot_general(
        emb_ref[...], w_ref[...],
        dimension_numbers=(((1,), (1,)), ((), ())),
        preferred_element_type=jnp.float32) + b_ref[...]
    out_ref[...] = h - lse_ref[...]


def _vmem_limit_bytes(tile_b, tile_v, E):
    # Double-buffered streamed blocks of the larger (pass-2) call + headroom.
    per_step = (tile_b * E * 2        # emb tile   (bf16)
                + tile_v * E * 2      # W tile     (bf16)
                + tile_v * 4          # bias tile  (f32)
                + tile_b * 4          # lse tile   (f32)
                + tile_b * tile_v * 4)  # out tile (f32)
    est = 2 * per_step + (4 << 20)
    # Keep well under v7x's 64 MiB physical VMEM (32 MiB default scoped).
    return int(min(max(est, 16 << 20), 40 << 20))


def skipgram_forward(cen_tensor, embed_table, linear_w, linear_b, *,
                     tile_b=None, tile_v=None, compute_dtype=jnp.bfloat16):
    """Forward of SkipGram: log_softmax(Linear(Embedding(cen_tensor)), dim=1).

    cen_tensor : (B,)  int32
    embed_table: (V, E)            -- nn.Embedding.weight
    linear_w   : (V, E)            -- nn.Linear.weight (NOT transposed here)
    linear_b   : (V,)              -- nn.Linear.bias
    returns    : (B, V) float32
    """
    B = cen_tensor.shape[0]
    V, E = linear_w.shape
    assert embed_table.shape[1] == E

    # Tile sizes: multiples of (8, 128).  tile_b up to 256 keeps the MXU rows
    # full and amortizes the per-pass weight stream; tile_v = 2048 gives wide
    # lane-dense output stores while the double-buffered footprint stays a few
    # MiB (well inside v7x's 64 MiB VMEM).  When B > 256, nb >= 2 so the
    # "parallel" batch axis of pass 1 shards across v7x's two TensorCores; the
    # vocab axis of pass 2 is parallel regardless.
    if tile_b is None:
        tile_b = min(_round_up(B, 8), 256)
    if tile_v is None:
        tile_v = min(_round_up(V, 128), 2048)
    assert tile_b % 8 == 0 and tile_v % 128 == 0

    B_pad = _round_up(B, tile_b)
    V_pad = _round_up(V, tile_v)

    # Embedding gather: pure row indexing, left to XLA glue; cast only the
    # gathered (B, E) rows to the streaming dtype.
    idx = cen_tensor.astype(jnp.int32)
    if B_pad != B:
        idx = jnp.pad(idx, (0, B_pad - B))
    emb = embed_table[idx].astype(compute_dtype)                  # (B_pad, E)

    # Weight stays (V, E): no wrapper transpose.  Callers should keep a
    # persistent bf16 copy so this cast is not paid every step (see __main__).
    w = linear_w if linear_w.dtype == compute_dtype else linear_w.astype(compute_dtype)
    b = linear_b.astype(jnp.float32)
    if V_pad != V:
        w = jnp.pad(w, ((0, V_pad - V), (0, 0)))
        # Padded vocab columns get a huge negative bias so they vanish in the
        # LSE (and land as large negatives in the padded output, sliced off).
        b = jnp.pad(b, (0, V_pad - V), mode="constant", constant_values=-1e30)
    b2d = b.reshape(1, V_pad)

    nb = B_pad // tile_b
    nv = V_pad // tile_v

    flops = 2 * B_pad * V_pad * E
    vmem_limit = _vmem_limit_bytes(tile_b, tile_v, E)

    # ---- Pass 1: per-row logsumexp only (no hidden materialization). --------
    lse = pl.pallas_call(
        _lse_kernel,
        out_shape=jax.ShapeDtypeStruct((B_pad, 1), jnp.float32),
        grid_spec=pltpu.PrefetchScalarGridSpec(
            num_scalar_prefetch=0,
            grid=(nb, nv),
            in_specs=[
                pl.BlockSpec((tile_b, E), lambda b_, v_: (b_, 0)),   # activations
                pl.BlockSpec((tile_v, E), lambda b_, v_: (v_, 0)),   # streamed W tile
                pl.BlockSpec((1, tile_v), lambda b_, v_: (0, v_)),   # bias tile
            ],
            out_specs=pl.BlockSpec((tile_b, 1), lambda b_, v_: (b_, 0)),
            scratch_shapes=[pltpu.VMEM((tile_b, 1), jnp.float32),    # running max
                            pltpu.VMEM((tile_b, 1), jnp.float32)],   # running sum-exp
        ),
        compiler_params=pltpu.CompilerParams(
            dimension_semantics=("parallel", "arbitrary"),
            vmem_limit_bytes=vmem_limit),
        cost_estimate=pl.CostEstimate(
            flops=flops,
            transcendentals=B_pad * V_pad,
            bytes_accessed=(nb * V_pad * E * 2 + B_pad * E * 2
                            + nb * V_pad * 4 + B_pad * 4)),
    )(emb, w, b2d)

    # ---- Pass 2: recompute logits per block, write log_softmax directly. ----
    # Vocab axis is OUTER so the W block index only changes with the outer
    # loop: the bf16 weight streams from HBM exactly once in this pass.
    out = pl.pallas_call(
        _log_softmax_kernel,
        out_shape=jax.ShapeDtypeStruct((B_pad, V_pad), jnp.float32),
        grid_spec=pltpu.PrefetchScalarGridSpec(
            num_scalar_prefetch=0,
            grid=(nv, nb),
            in_specs=[
                pl.BlockSpec((tile_b, E), lambda v_, b_: (b_, 0)),   # activations
                pl.BlockSpec((tile_v, E), lambda v_, b_: (v_, 0)),   # W (outer only)
                pl.BlockSpec((1, tile_v), lambda v_, b_: (0, v_)),   # bias tile
                pl.BlockSpec((tile_b, 1), lambda v_, b_: (b_, 0)),   # logsumexp
            ],
            out_specs=pl.BlockSpec((tile_b, tile_v), lambda v_, b_: (b_, v_)),
        ),
        compiler_params=pltpu.CompilerParams(
            dimension_semantics=("parallel", "parallel"),
            vmem_limit_bytes=vmem_limit),
        cost_estimate=pl.CostEstimate(
            flops=flops,
            transcendentals=0,
            bytes_accessed=(V_pad * E * 2 + nv * B_pad * E * 2
                            + V_pad * 4 + nv * B_pad * 4
                            + B_pad * V_pad * 4)),
    )(emb, w, b2d, lse)

    return out[:B, :V]


def skipgram_reference(cen_tensor, embed_table, linear_w, linear_b,
                       compute_dtype=jnp.bfloat16):
    """Pure-JAX reference with the same bf16-in / f32-accumulate contraction."""
    emb = embed_table[cen_tensor].astype(compute_dtype)
    w = linear_w.astype(compute_dtype)
    hidden = lax.dot_general(emb, w, (((1,), (1,)), ((), ())),
                             preferred_element_type=jnp.float32) + linear_b
    return jax.nn.log_softmax(hidden, axis=1)


if __name__ == "__main__":
    # Small shapes consistent with the module, but chosen so that the vocab
    # axis is tiled (nv = 2 with the default tile_v = 2048) and both batch and
    # vocab padding paths are exercised.
    vocab_dim = 3000
    embed_dim = 128
    batch = 37

    key = jax.random.PRNGKey(0)
    k_emb, k_w, k_b, k_idx = jax.random.split(key, 4)

    embed_table = jax.random.normal(k_emb, (vocab_dim, embed_dim), dtype=jnp.float32)
    linear_w = jax.random.normal(k_w, (vocab_dim, embed_dim), dtype=jnp.float32) * 0.05
    linear_b = jax.random.normal(k_b, (vocab_dim,), dtype=jnp.float32) * 0.01
    cen_tensor = jax.random.randint(k_idx, (batch,), 0, vocab_dim, dtype=jnp.int32)

    # Keep a persistent bf16 copy of the linear weight so the per-step forward
    # does not pay a full-weight cast (the kernel streams it as-is).
    linear_w_bf16 = linear_w.astype(jnp.bfloat16)

    fwd = jax.jit(skipgram_forward)
    out = jax.block_until_ready(fwd(cen_tensor, embed_table, linear_w_bf16, linear_b))

    ref = skipgram_reference(cen_tensor, embed_table, linear_w, linear_b)
    assert out.shape == (batch, vocab_dim)
    assert jnp.allclose(out, ref, atol=2e-3, rtol=2e-3), "mismatch vs reference"

    print("KERNEL_OK")
</pallas_src>

<mosaic_0001>
module attributes {stable_mosaic.version = 11 : i64} {
  func.func @_log_softmax_kernel(%arg0: i32, %arg1: i32, %arg2: memref<40x128xbf16, #tpu.memory_space<vmem>>, %arg3: memref<2048x128xbf16, #tpu.memory_space<vmem>>, %arg4: memref<1x2048xf32, #tpu.memory_space<vmem>>, %arg5: memref<40x1xf32, #tpu.memory_space<vmem>>, %arg6: memref<40x2048xf32, #tpu.memory_space<vmem>>) attributes {dimension_semantics = [#tpu.dimension_semantics<parallel>, #tpu.dimension_semantics<parallel>], iteration_bounds = array<i64: 2, 1>, scalar_prefetch = 0 : i64, scratch_operands = 0 : i64, tpu.core_type = #tpu.core_type<tc>, window_params = [{transform_indices = @transform_0, window_bounds = array<i64: 40, 128>}, {transform_indices = @transform_1, window_bounds = array<i64: 2048, 128>}, {transform_indices = @transform_2, window_bounds = array<i64: 1, 2048>}, {transform_indices = @transform_3, window_bounds = array<i64: 40, 1>}, {transform_indices = @transform_4, window_bounds = array<i64: 40, 2048>}]} {
    %c0 = arith.constant 0 : index
    %c0_0 = arith.constant 0 : index
    %0 = vector.load %arg2[%c0, %c0_0] : memref<40x128xbf16, #tpu.memory_space<vmem>>, vector<40x128xbf16>
    %c0_1 = arith.constant 0 : index
    %c0_2 = arith.constant 0 : index
    %1 = vector.load %arg3[%c0_1, %c0_2] : memref<2048x128xbf16, #tpu.memory_space<vmem>>, vector<2048x128xbf16>
    %cst = arith.constant dense<0.000000e+00> : vector<40x2048xf32>
    %2 = tpu.matmul %0, %1, %cst {dimension_numbers = #tpu.dot_dimension_numbers<[1], [1], [0], [0], [0, 0, 1, 0], [], []>} : vector<40x128xbf16>, vector<2048x128xbf16>, vector<40x2048xf32> -> vector<40x2048xf32>
    %c0_3 = arith.constant 0 : index
    %c0_4 = arith.constant 0 : index
    %3 = vector.load %arg4[%c0_3, %c0_4] : memref<1x2048xf32, #tpu.memory_space<vmem>>, vector<1x2048xf32>
    %4 = vector.broadcast %3 : vector<1x2048xf32> to vector<40x2048xf32>
    %5 = arith.addf %2, %4 : vector<40x2048xf32>
    %c0_5 = arith.constant 0 : index
    %c0_6 = arith.constant 0 : index
    %6 = vector.load %arg5[%c0_5, %c0_6] : memref<40x1xf32, #tpu.memory_space<vmem>>, vector<40x1xf32>
    %7 = vector.broadcast %6 : vector<40x1xf32> to vector<40x2048xf32>
    %8 = arith.subf %5, %7 : vector<40x2048xf32>
    %c0_7 = arith.constant 0 : index
    %c0_8 = arith.constant 0 : index
    %9 = vector.load %arg6[%c0_7, %c0_8] : memref<40x2048xf32, #tpu.memory_space<vmem>>, vector<40x2048xf32>
    tpu.vector_store %arg6[%c0_7, %c0_8], %8 {strides = array<i32>} : memref<40x2048xf32, #tpu.memory_space<vmem>>, vector<40x2048xf32>,
    return
  }
  func.func @transform_0(%arg0: i32, %arg1: i32) -> (i32, i32) {
    %c0_i32 = arith.constant 0 : i32
    %c0_i32_0 = arith.constant 0 : i32
    return %arg1, %c0_i32 : i32, i32
  }
  func.func @transform_1(%arg0: i32, %arg1: i32) -> (i32, i32) {
    %c0_i32 = arith.constant 0 : i32
    %c0_i32_0 = arith.constant 0 : i32
    return %arg0, %c0_i32 : i32, i32
  }
  func.func @transform_2(%arg0: i32, %arg1: i32) -> (i32, i32) {
    %c0_i32 = arith.constant 0 : i32
    %c0_i32_0 = arith.constant 0 : i32
    return %c0_i32, %arg0 : i32, i32
  }
  func.func @transform_3(%arg0: i32, %arg1: i32) -> (i32, i32) {
    %c0_i32 = arith.constant 0 : i32
    %c0_i32_0 = arith.constant 0 : i32
    return %arg1, %c0_i32 : i32, i32
  }
  func.func @transform_4(%arg0: i32, %arg1: i32) -> (i32, i32) {
    %c0_i32 = arith.constant 0 : i32
    return %arg1, %arg0 : i32, i32
  }
}

module attributes {stable_mosaic.version = 11 : i64} {
  func.func @_lse_kernel(%arg0: i32, %arg1: i32, %arg2: memref<40x128xbf16, #tpu.memory_space<vmem>>, %arg3: memref<2048x128xbf16, #tpu.memory_space<vmem>>, %arg4: memref<1x2048xf32, #tpu.memory_space<vmem>>, %arg5: memref<40x1xf32, #tpu.memory_space<vmem>>, %arg6: memref<40x1xf32, #tpu.memory_space<vmem>>, %arg7: memref<40x1xf32, #tpu.memory_space<vmem>>) attributes {dimension_semantics = [#tpu.dimension_semantics<parallel>, #tpu.dimension_semantics<arbitrary>], iteration_bounds = array<i64: 1, 2>, scalar_prefetch = 0 : i64, scratch_operands = 2 : i64, tpu.core_type = #tpu.core_type<tc>, window_params = [{transform_indices = @transform_0, window_bounds = array<i64: 40, 128>}, {transform_indices = @transform_1, window_bounds = array<i64: 2048, 128>}, {transform_indices = @transform_2, window_bounds = array<i64: 1, 2048>}, {transform_indices = @transform_3, window_bounds = array<i64: 40, 1>}]} {
    %c0_i32 = arith.constant 0 : i32
    %0 = arith.cmpi eq, %arg1, %c0_i32 : i32
    %1 = arith.extui %0 : i1 to i32
    %c0_i32_0 = arith.constant 0 : i32
    %2 = arith.cmpi ne, %1, %c0_i32_0 : i32
    scf.if %2 {
      %cst_17 = arith.constant 0xFF800000 : f32
      %28 = vector.broadcast %cst_17 : f32 to vector<40x1xf32>
      %c0_18 = arith.constant 0 : index
      %c0_19 = arith.constant 0 : index
      %29 = vector.load %arg6[%c0_18, %c0_19] : memref<40x1xf32, #tpu.memory_space<vmem>>, vector<40x1xf32>
      tpu.vector_store %arg6[%c0_18, %c0_19], %28 {strides = array<i32>} : memref<40x1xf32, #tpu.memory_space<vmem>>, vector<40x1xf32>,
      %cst_20 = arith.constant 0.000000e+00 : f32
      %30 = vector.broadcast %cst_20 : f32 to vector<40x1xf32>
      %c0_21 = arith.constant 0 : index
      %c0_22 = arith.constant 0 : index
      %31 = vector.load %arg7[%c0_21, %c0_22] : memref<40x1xf32, #tpu.memory_space<vmem>>, vector<40x1xf32>
      tpu.vector_store %arg7[%c0_21, %c0_22], %30 {strides = array<i32>} : memref<40x1xf32, #tpu.memory_space<vmem>>, vector<40x1xf32>,
    } else {
    }
    %c0 = arith.constant 0 : index
    %c0_1 = arith.constant 0 : index
    %3 = vector.load %arg2[%c0, %c0_1] : memref<40x128xbf16, #tpu.memory_space<vmem>>, vector<40x128xbf16>
    %c0_2 = arith.constant 0 : index
    %c0_3 = arith.constant 0 : index
    %4 = vector.load %arg3[%c0_2, %c0_3] : memref<2048x128xbf16, #tpu.memory_space<vmem>>, vector<2048x128xbf16>
    %cst = arith.constant dense<0.000000e+00> : vector<40x2048xf32>
    %5 = tpu.matmul %3, %4, %cst {dimension_numbers = #tpu.dot_dimension_numbers<[1], [1], [0], [0], [0, 0, 1, 0], [], []>} : vector<40x128xbf16>, vector<2048x128xbf16>, vector<40x2048xf32> -> vector<40x2048xf32>
    %c0_4 = arith.constant 0 : index
    %c0_5 = arith.constant 0 : index
    %6 = vector.load %arg4[%c0_4, %c0_5] : memref<1x2048xf32, #tpu.memory_space<vmem>>, vector<1x2048xf32>
    %7 = vector.broadcast %6 : vector<1x2048xf32> to vector<40x2048xf32>
    %8 = arith.addf %5, %7 : vector<40x2048xf32>
    %c0_6 = arith.constant 0 : index
    %c0_7 = arith.constant 0 : index
    %9 = vector.load %arg6[%c0_6, %c0_7] : memref<40x1xf32, #tpu.memory_space<vmem>>, vector<40x1xf32>
    %cst_8 = arith.constant dense<0xFF800000> : vector<40xf32>
    %10 = vector.multi_reduction <maximumf>, %8, %cst_8 [1] : vector<40x2048xf32> to vector<40xf32>
    %11 = vector.shape_cast %10 : vector<40xf32> to vector<40x1xf32>
    %12 = arith.maximumf %9, %11 : vector<40x1xf32>
    %13 = arith.subf %9, %12 : vector<40x1xf32>
    %14 = math.exp %13 : vector<40x1xf32>
    %c0_9 = arith.constant 0 : index
    %c0_10 = arith.constant 0 : index
    %15 = vector.load %arg7[%c0_9, %c0_10] : memref<40x1xf32, #tpu.memory_space<vmem>>, vector<40x1xf32>
    %16 = arith.mulf %14, %15 : vector<40x1xf32>
    %17 = vector.broadcast %12 : vector<40x1xf32> to vector<40x2048xf32>
    %18 = arith.subf %8, %17 : vector<40x2048xf32>
    %19 = math.exp %18 : vector<40x2048xf32>
    %cst_11 = arith.constant dense<0.000000e+00> : vector<40xf32>
    %20 = vector.multi_reduction <add>, %19, %cst_11 [1] : vector<40x2048xf32> to vector<40xf32>
    %21 = vector.shape_cast %20 : vector<40xf32> to vector<40x1xf32>
    %22 = arith.addf %16, %21 : vector<40x1xf32>
    %c0_12 = arith.constant 0 : index
    %c0_13 = arith.constant 0 : index
    %23 = vector.load %arg7[%c0_12, %c0_13] : memref<40x1xf32, #tpu.memory_space<vmem>>, vector<40x1xf32>
    tpu.vector_store %arg7[%c0_12, %c0_13], %22 {strides = array<i32>} : memref<40x1xf32, #tpu.memory_space<vmem>>, vector<40x1xf32>,
    %c0_14 = arith.constant 0 : index
    %c0_15 = arith.constant 0 : index
    %24 = vector.load %arg6[%c0_14, %c0_15] : memref<40x1xf32, #tpu.memory_space<vmem>>, vector<40x1xf32>
    tpu.vector_store %arg6[%c0_14, %c0_15], %12 {strides = array<i32>} : memref<40x1xf32, #tpu.memory_space<vmem>>, vector<40x1xf32>,
    %c1_i32 = arith.constant 1 : i32
    %25 = arith.cmpi eq, %arg1, %c1_i32 : i32
    %26 = arith.extui %25 : i1 to i32
    %c0_i32_16 = arith.constant 0 : i32
    %27 = arith.cmpi ne, %26, %c0_i32_16 : i32
    scf.if %27 {
      %c0_17 = arith.constant 0 : index
      %c0_18 = arith.constant 0 : index
      %28 = vector.load %arg6[%c0_17, %c0_18] : memref<40x1xf32, #tpu.memory_space<vmem>>, vector<40x1xf32>
      %c0_19 = arith.constant 0 : index
      %c0_20 = arith.constant 0 : index
      %29 = vector.load %arg7[%c0_19, %c0_20] : memref<40x1xf32, #tpu.memory_space<vmem>>, vector<40x1xf32>
      %30 = math.log %29 : vector<40x1xf32>
      %31 = arith.addf %28, %30 : vector<40x1xf32>
      %c0_21 = arith.constant 0 : index
      %c0_22 = arith.constant 0 : index
      %32 = vector.load %arg5[%c0_21, %c0_22] : memref<40x1xf32, #tpu.memory_space<vmem>>, vector<40x1xf32>
      tpu.vector_store %arg5[%c0_21, %c0_22], %31 {strides = array<i32>} : memref<40x1xf32, #tpu.memory_space<vmem>>, vector<40x1xf32>,
    } else {
    }
    return
  }
  func.func @transform_0(%arg0: i32, %arg1: i32) -> (i32, i32) {
    %c0_i32 = arith.constant 0 : i32
    %c0_i32_0 = arith.constant 0 : i32
    return %arg0, %c0_i32 : i32, i32
  }
  func.func @transform_1(%arg0: i32, %arg1: i32) -> (i32, i32) {
    %c0_i32 = arith.constant 0 : i32
    %c0_i32_0 = arith.constant 0 : i32
    return %arg1, %c0_i32 : i32, i32
  }
  func.func @transform_2(%arg0: i32, %arg1: i32) -> (i32, i32) {
    %c0_i32 = arith.constant 0 : i32
    %c0_i32_0 = arith.constant 0 : i32
    return %c0_i32, %arg1 : i32, i32
  }
  func.func @transform_3(%arg0: i32, %arg1: i32) -> (i32, i32) {
    %c0_i32 = arith.constant 0 : i32
    %c0_i32_0 = arith.constant 0 : i32
    return %arg0, %c0_i32 : i32, i32
  }
}

</mosaic_0001>

<llo_original>
// kernel: skipgram_forward.3
$region0: #{skipgram_forward.3}
  #allocation0 [shape = 'u32[]', space=smem, size = 0x4, offset = 0x4, fixed_abs, tag = 'smem constant byte address 0x4 - core index']
  #allocation1 [shape = 'u32[72,128]{1,0:T(1,128)}', space=vmem, size = 0x9000, scoped, tag = 'internal scratch']
  %s0 = inlined_call_operand.vmem [shape: bf16[40,128], index: 0, kind: input, shape index: {}]
  %s1 = inlined_call_operand.vmem [shape: bf16[4096,128], index: 1, kind: input, shape index: {}]
  %s2 = inlined_call_operand.vmem [shape: f32[1,4096], index: 2, kind: input, shape index: {}]
  %s3 = inlined_call_operand.vmem [shape: f32[40,1], index: 3, kind: input, shape index: {}]
  %s4 = inlined_call_operand.vmem [shape: f32[40,4096], index: 4, kind: output, shape index: {}]
  %s5 = sld [smem:[#allocation0]]
  $region68: #{skipgram_forward.3} parent=0
    _
  %s7 = ssub.s32 1, %s5
  %s8 = scalar_select 0, %s7, %s5
  $region1: #{skipgram_forward.3} parent=0
    #allocation2 [shape = 'u8[655360]{0}', space=vmem, size = 0xa0000, scoped, tag = 'output window, operand 0']
    loop: start=0, step=1, limit=4
    $region2: #{skipgram_forward.3} parent=1 // loop_pre_header
      _
    $region3: #{skipgram_forward.3} parent=1 // loop_header
      %s10 = sphi 0, %s14
      %p11 = scmp.ge.s32.totalorder %s10, 4
      %s17 = sphi 0, %s29
      %s18 = sphi 0, %s25
      %s19 = sphi 0, %s17
      %s20 = sphi 0, %s18
      %s21 = sphi 0, %s19
      %s22 = sphi 0, %s20
      %s32 = sphi 0, %s34
      %s35 = sphi 0, %s32
      %s36 = sphi 0, %s35
      %s52 = sphi 0, %s36
      %s58 = sphi 0, %s60
      %s61 = sphi 0, %s58
      %s62 = sphi 0, %s61
      %s78 = sphi 0, %s62
      %s84 = sphi 0, %s86
      %s87 = sphi 0, %s84
      %s88 = sphi 0, %s87
      %s104 = sphi 0, %s88
      %s110 = sphi 0, %s112
      %s113 = sphi 0, %s110
      %s114 = sphi 0, %s113
      %s130 = sphi 0, %s114
      %s138 = sphi 0, %s140
      %s141 = sphi 0, %s138
      %s142 = sphi 0, %s141
      %s158 = sphi 0, %s142
    $region4: #{skipgram_forward.3} parent=1 // loop_header_branch
      %13 = sbr.rel (%p11) target = $region8
    $region5: #{skipgram_forward.3} parent=1 // loop_body
      %s15 = ssub.s32 %s10, 1
      %s16 = ssub.s32 %s10, 2
      %s23 = sadd.s32 1, %s18
      %p24 = scmp.ge.s32.totalorder %s23, 1
      %s25 = scalar_select %p24, 0, %s23
      %s26 = sadd.s32 1, %s17
      %s27 = scalar_select %p24, %s26, %s17
      %p28 = scmp.ge.s32.totalorder %s27, 2
      %s29 = scalar_select %p28, 0, %s27
      %s30 = ssub.s32 %s18, %s25
      %p31 = scmp.eq.s32.totalorder %s30, 0
      %s33 = sadd.s32 %s32, 1
      %s34 = scalar_select %p31, %s32, %s33
      %p37 = pneg %p31
      %p38 = scmp.eq.s32.totalorder %s10, 1
      %p39 = por %p37, %p38
      %p40 = scmp.ne.s32.totalorder %s32, %s35
      %p41 = scmp.eq.s32.totalorder %s10, 0
      %p42 = por %p40, %p41
      %p43 = scmp.ne.s32.totalorder %s32, %s35
      %p44 = scmp.eq.s32.totalorder %s15, 1
      %p45 = por %p43, %p44
      %p46 = scmp.ne.s32.totalorder %s35, %s36
      %p47 = scmp.eq.s32.totalorder %s15, 0
      %p48 = por %p46, %p47
      %p49 = scmp.ne.s32.totalorder %s35, %s36
      %p50 = scmp.eq.s32.totalorder %s16, 1
      %p51 = por %p49, %p50
      %p53 = scmp.ne.s32.totalorder %s36, %s52
      %p54 = scmp.eq.s32.totalorder %s16, 0
      %p55 = por %p53, %p54
      %s56 = ssub.s32 %s17, %s29
      %p57 = scmp.eq.s32.totalorder %s56, 0
      %s59 = sadd.s32 %s58, 1
      %s60 = scalar_select %p57, %s58, %s59
      %p63 = pneg %p57
      %p64 = scmp.eq.s32.totalorder %s10, 1
      %p65 = por %p63, %p64
      %p66 = scmp.ne.s32.totalorder %s58, %s61
      %p67 = scmp.eq.s32.totalorder %s10, 0
      %p68 = por %p66, %p67
      %p69 = scmp.ne.s32.totalorder %s58, %s61
      %p70 = scmp.eq.s32.totalorder %s15, 1
      %p71 = por %p69, %p70
      %p72 = scmp.ne.s32.totalorder %s61, %s62
      %p73 = scmp.eq.s32.totalorder %s15, 0
      %p74 = por %p72, %p73
      %p75 = scmp.ne.s32.totalorder %s61, %s62
      %p76 = scmp.eq.s32.totalorder %s16, 1
      %p77 = por %p75, %p76
      %p79 = scmp.ne.s32.totalorder %s62, %s78
      %p80 = scmp.eq.s32.totalorder %s16, 0
      %p81 = por %p79, %p80
      %s82 = ssub.s32 %s17, %s29
      %p83 = scmp.eq.s32.totalorder %s82, 0
      %s85 = sadd.s32 %s84, 1
      %s86 = scalar_select %p83, %s84, %s85
      %p89 = pneg %p83
      %p90 = scmp.eq.s32.totalorder %s10, 1
      %p91 = por %p89, %p90
      %p92 = scmp.ne.s32.totalorder %s84, %s87
      %p93 = scmp.eq.s32.totalorder %s10, 0
      %p94 = por %p92, %p93
      %p95 = scmp.ne.s32.totalorder %s84, %s87
      %p96 = scmp.eq.s32.totalorder %s15, 1
      %p97 = por %p95, %p96
      %p98 = scmp.ne.s32.totalorder %s87, %s88
      %p99 = scmp.eq.s32.totalorder %s15, 0
      %p100 = por %p98, %p99
      %p101 = scmp.ne.s32.totalorder %s87, %s88
      %p102 = scmp.eq.s32.totalorder %s16, 1
      %p103 = por %p101, %p102
      %p105 = scmp.ne.s32.totalorder %s88, %s104
      %p106 = scmp.eq.s32.totalorder %s16, 0
      %p107 = por %p105, %p106
      %s108 = ssub.s32 %s18, %s25
      %p109 = scmp.eq.s32.totalorder %s108, 0
      %s111 = sadd.s32 %s110, 1
      %s112 = scalar_select %p109, %s110, %s111
      %p115 = pneg %p109
      %p116 = scmp.eq.s32.totalorder %s10, 1
      %p117 = por %p115, %p116
      %p118 = scmp.ne.s32.totalorder %s110, %s113
      %p119 = scmp.eq.s32.totalorder %s10, 0
      %p120 = por %p118, %p119
      %p121 = scmp.ne.s32.totalorder %s110, %s113
      %p122 = scmp.eq.s32.totalorder %s15, 1
      %p123 = por %p121, %p122
      %p124 = scmp.ne.s32.totalorder %s113, %s114
      %p125 = scmp.eq.s32.totalorder %s15, 0
      %p126 = por %p124, %p125
      %p127 = scmp.ne.s32.totalorder %s113, %s114
      %p128 = scmp.eq.s32.totalorder %s16, 1
      %p129 = por %p127, %p128
      %p131 = scmp.ne.s32.totalorder %s114, %s130
      %p132 = scmp.eq.s32.totalorder %s16, 0
      %p133 = por %p131, %p132
      %s134 = ssub.s32 %s18, %s25
      %s135 = ssub.s32 %s17, %s29
      %s136 = sor.u32 %s134, %s135
      %p137 = scmp.eq.s32.totalorder %s136, 0
      %s139 = sadd.s32 %s138, 1
      %s140 = scalar_select %p137, %s138, %s139
      %p143 = pneg %p137
      %p144 = scmp.eq.s32.totalorder %s10, 1
      %p145 = por %p143, %p144
      %p146 = scmp.ne.s32.totalorder %s138, %s141
      %p147 = scmp.eq.s32.totalorder %s10, 0
      %p148 = por %p146, %p147
      %p149 = scmp.ne.s32.totalorder %s138, %s141
      %p150 = scmp.eq.s32.totalorder %s15, 1
      %p151 = por %p149, %p150
      %p152 = scmp.ne.s32.totalorder %s141, %s142
      %p153 = scmp.eq.s32.totalorder %s15, 0
      %p154 = por %p152, %p153
      %p155 = scmp.ne.s32.totalorder %s141, %s142
      %p156 = scmp.eq.s32.totalorder %s16, 1
      %p157 = por %p155, %p156
      %p159 = scmp.ne.s32.totalorder %s142, %s158
      %p160 = scmp.eq.s32.totalorder %s16, 0
      %p161 = por %p159, %p160
      %p162 = scmp.le.s32.totalorder 1, %s10
      %p163 = scmp.lt.s32.totalorder %s10, 3
      %p164 = pnand %p162, %p163
      %p165 = pneg %p164
      // Predicated region
      $region9: #{skipgram_forward.3} parent=5 // pred_check
        _
      $region10: #{skipgram_forward.3} parent=5 // pred_check_branch
        %167 = sbr.rel (%p164) target = $region12
      $region11: #{skipgram_forward.3} parent=5 // pred_region
        %s168 = ssub.s32 %s10, 1
        // Predicated region
        $region13: #{skipgram_forward.3} parent=11 // pred_check
          %p169 = pneg %p48
        $region14: #{skipgram_forward.3} parent=11 // pred_check_branch
          %171 = sbr.rel (%p169) target = $region16
        $region15: #{skipgram_forward.3} parent=11 // pred_region
          %s172 = smul.u32 5, %s20
          %p173 = scmp.lt.s32.totalorder %s172, 4
          %s174 = scalar_select %p173, %s172, 4
          %s175 = smul.addr %s174, 4
          %s176 = scalar_lea.vmem %s0, %s175
          %s177 = smul.u32 5, %s20
        $region16: #{skipgram_forward.3} parent=11 // pred_fallthru
          _
        // Predicated region
        $region17: #{skipgram_forward.3} parent=11 // pred_check
          %p178 = pneg %p126
        $region18: #{skipgram_forward.3} parent=11 // pred_check_branch
          %180 = sbr.rel (%p178) target = $region20
        $region19: #{skipgram_forward.3} parent=11 // pred_region
          %s181 = smul.u32 5, %s20
          %p182 = scmp.lt.s32.totalorder %s181, 4
          %s183 = scalar_select %p182, %s181, 4
          %s184 = smul.addr %s183, 8
          %s185 = scalar_lea.vmem %s3, %s184
          %s186 = smul.u32 5, %s20
        $region20: #{skipgram_forward.3} parent=11 // pred_fallthru
          _
      $region12: #{skipgram_forward.3} parent=5 // pred_fallthru
        _
      %p187 = scmp.lt.s32.totalorder %s10, 2
      // Predicated region
      $region21: #{skipgram_forward.3} parent=5 // pred_check
        %p188 = pneg %p187
      $region22: #{skipgram_forward.3} parent=5 // pred_check_branch
        %190 = sbr.rel (%p188) target = $region24
      $region23: #{skipgram_forward.3} parent=5 // pred_region
        // Predicated region
        $region25: #{skipgram_forward.3} parent=23 // pred_check
          %p191 = pneg %p68
        $region26: #{skipgram_forward.3} parent=23 // pred_check_branch
          %193 = sbr.rel (%p191) target = $region28
        $region27: #{skipgram_forward.3} parent=23 // pred_region
          %s194 = smul.u32 256, %s17
          %p195 = scmp.lt.s32.totalorder %s194, 511
          %s196 = scalar_select %p195, %s194, 511
          %s197 = smul.addr %s196, 4
          %s198 = scalar_lea.vmem %s1, %s197
          %s199 = smul.u32 256, %s17
        $region28: #{skipgram_forward.3} parent=23 // pred_fallthru
          _
        // Predicated region
        $region29: #{skipgram_forward.3} parent=23 // pred_check
          %p200 = pneg %p94
        $region30: #{skipgram_forward.3} parent=23 // pred_check_branch
          %202 = sbr.rel (%p200) target = $region32
        $region31: #{skipgram_forward.3} parent=23 // pred_region
          %s203 = smul.u32 16, %s17
          %p204 = scmp.lt.s32.totalorder %s203, 31
          %s205 = scalar_select %p204, %s203, 31
          %s206 = scalar_lea.vmem %s2, %s205
          %s207 = smul.u32 16, %s17
        $region32: #{skipgram_forward.3} parent=23 // pred_fallthru
          _
      $region24: #{skipgram_forward.3} parent=5 // pred_fallthru
        _
      %p208 = scmp.le.s32.totalorder 1, %s10
      %p209 = scmp.lt.s32.totalorder %s10, 3
      %p210 = pnand %p208, %p209
      %p211 = pneg %p210
      // Predicated region
      $region33: #{skipgram_forward.3} parent=5 // pred_check
        _
      $region34: #{skipgram_forward.3} parent=5 // pred_check_branch
        %213 = sbr.rel (%p210) target = $region36
      $region35: #{skipgram_forward.3} parent=5 // pred_region
        %s214 = ssub.s32 %s10, 1
        %s215 = smul.u32 5, %s20
        %p216 = scmp.lt.s32.totalorder %s215, 4
        %s217 = scalar_select %p216, %s215, 4
        %s218 = smul.addr %s217, 4
        %s219 = scalar_lea.vmem %s0, %s218
        %p220 = pneg %p48
        %p221 = pneg %p45
        %s222 = smul.u32 256, %s19
        %p223 = scmp.lt.s32.totalorder %s222, 511
        %s224 = scalar_select %p223, %s222, 511
        %s225 = smul.addr %s224, 4
        %s226 = scalar_lea.vmem %s1, %s225
        %p227 = pneg %p74
        %p228 = pneg %p71
        %s229 = smul.u32 16, %s19
        %p230 = scmp.lt.s32.totalorder %s229, 31
        %s231 = scalar_select %p230, %s229, 31
        %s232 = scalar_lea.vmem %s2, %s231
        %p233 = pneg %p100
        %p234 = pneg %p97
        %s235 = smul.u32 5, %s20
        %p236 = scmp.lt.s32.totalorder %s235, 4
        %s237 = scalar_select %p236, %s235, 4
        %s238 = smul.addr %s237, 8
        %s239 = scalar_lea.vmem %s3, %s238
        %p240 = pneg %p126
        %p241 = pneg %p123
        %p242 = pneg %p154
        %p243 = pneg %p151
        %s244 = sand.u32 %s141, 1
        %s245 = sand.u32 %s141, 1
        %s246 = smul.addr %s245, 640
        %s247 = scalar_lea.vmem [#allocation2], %s246
        %s248 = smul.u32 5, %s20
        %p249 = scmp.lt.s32.totalorder %s248, 4
        %s250 = scalar_select %p249, %s248, 4
        %s251 = smul.addr %s250, 4
        %s252 = scalar_lea.vmem %s0, %s251
        %s253 = smul.u32 5, %s20
        %s254 = smul.u32 256, %s19
        %p255 = scmp.lt.s32.totalorder %s254, 511
        %s256 = scalar_select %p255, %s254, 511
        %s257 = smul.addr %s256, 4
        %s258 = scalar_lea.vmem %s1, %s257
        %s259 = smul.u32 256, %s19
        %s260 = smul.u32 16, %s19
        %p261 = scmp.lt.s32.totalorder %s260, 31
        %s262 = scalar_select %p261, %s260, 31
        %s263 = scalar_lea.vmem %s2, %s262
        %s264 = smul.u32 16, %s19
        %s265 = smul.u32 5, %s20
        %p266 = scmp.lt.s32.totalorder %s265, 4
        %s267 = scalar_select %p266, %s265, 4
        %s268 = smul.addr %s267, 8
        %s269 = scalar_lea.vmem %s3, %s268
        %s270 = smul.u32 5, %s20
        %s271 = smul.u32 5, %s20
        %s272 = smul.u32 16, %s19
        %v273 = vld [vmem:[%s252] sm:$0xf]
        %v274 = vld [vmem:[%s252 + $0x4] sm:$0xf]
        %v275 = vld [vmem:[%s252 + $0x8] sm:$0xf]
        %v276 = vld [vmem:[%s252 + $0xc] sm:$0xf]
        %v277 = vld [vmem:[%s252 + $0x10] sm:$0xf]
        %v278 = vld [vmem:[%s258] sm:$0xf]
        %v279 = vld [vmem:[%s258 + $0x4] sm:$0xf]
        %v280 = vld [vmem:[%s258 + $0x8] sm:$0xf]
        %v281 = vld [vmem:[%s258 + $0xc] sm:$0xf]
        %v282 = vld [vmem:[%s258 + $0x10] sm:$0xf]
        %v283 = vld [vmem:[%s258 + $0x14] sm:$0xf]
        %v284 = vld [vmem:[%s258 + $0x18] sm:$0xf]
        %v285 = vld [vmem:[%s258 + $0x1c] sm:$0xf]
        %v286 = vld [vmem:[%s258 + $0x20] sm:$0xf]
        %v287 = vld [vmem:[%s258 + $0x24] sm:$0xf]
        %v288 = vld [vmem:[%s258 + $0x28] sm:$0xf]
        %v289 = vld [vmem:[%s258 + $0x2c] sm:$0xf]
        %v290 = vld [vmem:[%s258 + $0x30] sm:$0xf]
        %v291 = vld [vmem:[%s258 + $0x34] sm:$0xf]
        %v292 = vld [vmem:[%s258 + $0x38] sm:$0xf]
        %v293 = vld [vmem:[%s258 + $0x3c] sm:$0xf]
        %v294 = vld [vmem:[%s258 + $0x40] sm:$0xf]
        %v295 = vld [vmem:[%s258 + $0x44] sm:$0xf]
        %v296 = vld [vmem:[%s258 + $0x48] sm:$0xf]
        %v297 = vld [vmem:[%s258 + $0x4c] sm:$0xf]
        %v298 = vld [vmem:[%s258 + $0x50] sm:$0xf]
        %v299 = vld [vmem:[%s258 + $0x54] sm:$0xf]
        %v300 = vld [vmem:[%s258 + $0x58] sm:$0xf]
        %v301 = vld [vmem:[%s258 + $0x5c] sm:$0xf]
        %v302 = vld [vmem:[%s258 + $0x60] sm:$0xf]
        %v303 = vld [vmem:[%s258 + $0x64] sm:$0xf]
        %v304 = vld [vmem:[%s258 + $0x68] sm:$0xf]
        %v305 = vld [vmem:[%s258 + $0x6c] sm:$0xf]
        %v306 = vld [vmem:[%s258 + $0x70] sm:$0xf]
        %v307 = vld [vmem:[%s258 + $0x74] sm:$0xf]
        %v308 = vld [vmem:[%s258 + $0x78] sm:$0xf]
        %v309 = vld [vmem:[%s258 + $0x7c] sm:$0xf]
        %v310 = vld [vmem:[%s258 + $0x80] sm:$0xf]
        %v311 = vld [vmem:[%s258 + $0x84] sm:$0xf]
        %v312 = vld [vmem:[%s258 + $0x88] sm:$0xf]
        %v313 = vld [vmem:[%s258 + $0x8c] sm:$0xf]
        %v314 = vld [vmem:[%s258 + $0x90] sm:$0xf]
        %v315 = vld [vmem:[%s258 + $0x94] sm:$0xf]
        %v316 = vld [vmem:[%s258 + $0x98] sm:$0xf]
        %v317 = vld [vmem:[%s258 + $0x9c] sm:$0xf]
        %v318 = vld [vmem:[%s258 + $0xa0] sm:$0xf]
        %v319 = vld [vmem:[%s258 + $0xa4] sm:$0xf]
        %v320 = vld [vmem:[%s258 + $0xa8] sm:$0xf]
        %v321 = vld [vmem:[%s258 + $0xac] sm:$0xf]
        %v322 = vld [vmem:[%s258 + $0xb0] sm:$0xf]
        %v323 = vld [vmem:[%s258 + $0xb4] sm:$0xf]
        %v324 = vld [vmem:[%s258 + $0xb8] sm:$0xf]
        %v325 = vld [vmem:[%s258 + $0xbc] sm:$0xf]
        %v326 = vld [vmem:[%s258 + $0xc0] sm:$0xf]
        %v327 = vld [vmem:[%s258 + $0xc4] sm:$0xf]
        %v328 = vld [vmem:[%s258 + $0xc8] sm:$0xf]
        %v329 = vld [vmem:[%s258 + $0xcc] sm:$0xf]
        %v330 = vld [vmem:[%s258 + $0xd0] sm:$0xf]
        %v331 = vld [vmem:[%s258 + $0xd4] sm:$0xf]
        %v332 = vld [vmem:[%s258 + $0xd8] sm:$0xf]
        %v333 = vld [vmem:[%s258 + $0xdc] sm:$0xf]
        %v334 = vld [vmem:[%s258 + $0xe0] sm:$0xf]
        %v335 = vld [vmem:[%s258 + $0xe4] sm:$0xf]
        %v336 = vld [vmem:[%s258 + $0xe8] sm:$0xf]
        %v337 = vld [vmem:[%s258 + $0xec] sm:$0xf]
        %v338 = vld [vmem:[%s258 + $0xf0] sm:$0xf]
        %v339 = vld [vmem:[%s258 + $0xf4] sm:$0xf]
        %v340 = vld [vmem:[%s258 + $0xf8] sm:$0xf]
        %v341 = vld [vmem:[%s258 + $0xfc] sm:$0xf]
        %v342 = vld [vmem:[%s258 + $0x100] sm:$0xf]
        %v343 = vld [vmem:[%s258 + $0x104] sm:$0xf]
        %v344 = vld [vmem:[%s258 + $0x108] sm:$0xf]
        %v345 = vld [vmem:[%s258 + $0x10c] sm:$0xf]
        %v346 = vld [vmem:[%s258 + $0x110] sm:$0xf]
        %v347 = vld [vmem:[%s258 + $0x114] sm:$0xf]
        %v348 = vld [vmem:[%s258 + $0x118] sm:$0xf]
        %v349 = vld [vmem:[%s258 + $0x11c] sm:$0xf]
        %v350 = vld [vmem:[%s258 + $0x120] sm:$0xf]
        %v351 = vld [vmem:[%s258 + $0x124] sm:$0xf]
        %v352 = vld [vmem:[%s258 + $0x128] sm:$0xf]
        %v353 = vld [vmem:[%s258 + $0x12c] sm:$0xf]
        %v354 = vld [vmem:[%s258 + $0x130] sm:$0xf]
        %v355 = vld [vmem:[%s258 + $0x134] sm:$0xf]
        %v356 = vld [vmem:[%s258 + $0x138] sm:$0xf]
        %v357 = vld [vmem:[%s258 + $0x13c] sm:$0xf]
        %v358 = vld [vmem:[%s258 + $0x140] sm:$0xf]
        %v359 = vld [vmem:[%s258 + $0x144] sm:$0xf]
        %v360 = vld [vmem:[%s258 + $0x148] sm:$0xf]
        %v361 = vld [vmem:[%s258 + $0x14c] sm:$0xf]
        %v362 = vld [vmem:[%s258 + $0x150] sm:$0xf]
        %v363 = vld [vmem:[%s258 + $0x154] sm:$0xf]
        %v364 = vld [vmem:[%s258 + $0x158] sm:$0xf]
        %v365 = vld [vmem:[%s258 + $0x15c] sm:$0xf]
        %v366 = vld [vmem:[%s258 + $0x160] sm:$0xf]
        %v367 = vld [vmem:[%s258 + $0x164] sm:$0xf]
        %v368 = vld [vmem:[%s258 + $0x168] sm:$0xf]
        %v369 = vld [vmem:[%s258 + $0x16c] sm:$0xf]
        %v370 = vld [vmem:[%s258 + $0x170] sm:$0xf]
        %v371 = vld [vmem:[%s258 + $0x174] sm:$0xf]
        %v372 = vld [vmem:[%s258 + $0x178] sm:$0xf]
        %v373 = vld [vmem:[%s258 + $0x17c] sm:$0xf]
        %v374 = vld [vmem:[%s258 + $0x180] sm:$0xf]
        %v375 = vld [vmem:[%s258 + $0x184] sm:$0xf]
        %v376 = vld [vmem:[%s258 + $0x188] sm:$0xf]
        %v377 = vld [vmem:[%s258 + $0x18c] sm:$0xf]
        %v378 = vld [vmem:[%s258 + $0x190] sm:$0xf]
        %v379 = vld [vmem:[%s258 + $0x194] sm:$0xf]
        %v380 = vld [vmem:[%s258 + $0x198] sm:$0xf]
        %v381 = vld [vmem:[%s258 + $0x19c] sm:$0xf]
        %v382 = vld [vmem:[%s258 + $0x1a0] sm:$0xf]
        %v383 = vld [vmem:[%s258 + $0x1a4] sm:$0xf]
        %v384 = vld [vmem:[%s258 + $0x1a8] sm:$0xf]
        %v385 = vld [vmem:[%s258 + $0x1ac] sm:$0xf]
        %v386 = vld [vmem:[%s258 + $0x1b0] sm:$0xf]
        %v387 = vld [vmem:[%s258 + $0x1b4] sm:$0xf]
        %v388 = vld [vmem:[%s258 + $0x1b8] sm:$0xf]
        %v389 = vld [vmem:[%s258 + $0x1bc] sm:$0xf]
        %v390 = vld [vmem:[%s258 + $0x1c0] sm:$0xf]
        %v391 = vld [vmem:[%s258 + $0x1c4] sm:$0xf]
        %v392 = vld [vmem:[%s258 + $0x1c8] sm:$0xf]
        %v393 = vld [vmem:[%s258 + $0x1cc] sm:$0xf]
        %v394 = vld [vmem:[%s258 + $0x1d0] sm:$0xf]
        %v395 = vld [vmem:[%s258 + $0x1d4] sm:$0xf]
        %v396 = vld [vmem:[%s258 + $0x1d8] sm:$0xf]
        %v397 = vld [vmem:[%s258 + $0x1dc] sm:$0xf]
        %v398 = vld [vmem:[%s258 + $0x1e0] sm:$0xf]
        %v399 = vld [vmem:[%s258 + $0x1e4] sm:$0xf]
        %v400 = vld [vmem:[%s258 + $0x1e8] sm:$0xf]
        %v401 = vld [vmem:[%s258 + $0x1ec] sm:$0xf]
        %v402 = vld [vmem:[%s258 + $0x1f0] sm:$0xf]
        %v403 = vld [vmem:[%s258 + $0x1f4] sm:$0xf]
        %v404 = vld [vmem:[%s258 + $0x1f8] sm:$0xf]
        %v405 = vld [vmem:[%s258 + $0x1fc] sm:$0xf]
        %v406 = vld [vmem:[%s258 + $0x200] sm:$0xf]
        %v407 = vld [vmem:[%s258 + $0x204] sm:$0xf]
        %v408 = vld [vmem:[%s258 + $0x208] sm:$0xf]
        %v409 = vld [vmem:[%s258 + $0x20c] sm:$0xf]
        %v410 = vld [vmem:[%s258 + $0x210] sm:$0xf]
        %v411 = vld [vmem:[%s258 + $0x214] sm:$0xf]
        %v412 = vld [vmem:[%s258 + $0x218] sm:$0xf]
        %v413 = vld [vmem:[%s258 + $0x21c] sm:$0xf]
        %v414 = vld [vmem:[%s258 + $0x220] sm:$0xf]
        %v415 = vld [vmem:[%s258 + $0x224] sm:$0xf]
        %v416 = vld [vmem:[%s258 + $0x228] sm:$0xf]
        %v417 = vld [vmem:[%s258 + $0x22c] sm:$0xf]
        %v418 = vld [vmem:[%s258 + $0x230] sm:$0xf]
        %v419 = vld [vmem:[%s258 + $0x234] sm:$0xf]
        %v420 = vld [vmem:[%s258 + $0x238] sm:$0xf]
        %v421 = vld [vmem:[%s258 + $0x23c] sm:$0xf]
        %v422 = vld [vmem:[%s258 + $0x240] sm:$0xf]
        %v423 = vld [vmem:[%s258 + $0x244] sm:$0xf]
        %v424 = vld [vmem:[%s258 + $0x248] sm:$0xf]
        %v425 = vld [vmem:[%s258 + $0x24c] sm:$0xf]
        %v426 = vld [vmem:[%s258 + $0x250] sm:$0xf]
        %v427 = vld [vmem:[%s258 + $0x254] sm:$0xf]
        %v428 = vld [vmem:[%s258 + $0x258] sm:$0xf]
        %v429 = vld [vmem:[%s258 + $0x25c] sm:$0xf]
        %v430 = vld [vmem:[%s258 + $0x260] sm:$0xf]
        %v431 = vld [vmem:[%s258 + $0x264] sm:$0xf]
        %v432 = vld [vmem:[%s258 + $0x268] sm:$0xf]
        %v433 = vld [vmem:[%s258 + $0x26c] sm:$0xf]
        %v434 = vld [vmem:[%s258 + $0x270] sm:$0xf]
        %v435 = vld [vmem:[%s258 + $0x274] sm:$0xf]
        %v436 = vld [vmem:[%s258 + $0x278] sm:$0xf]
        %v437 = vld [vmem:[%s258 + $0x27c] sm:$0xf]
        %v438 = vld [vmem:[%s258 + $0x280] sm:$0xf]
        %v439 = vld [vmem:[%s258 + $0x284] sm:$0xf]
        %v440 = vld [vmem:[%s258 + $0x288] sm:$0xf]
        %v441 = vld [vmem:[%s258 + $0x28c] sm:$0xf]
        %v442 = vld [vmem:[%s258 + $0x290] sm:$0xf]
        %v443 = vld [vmem:[%s258 + $0x294] sm:$0xf]
        %v444 = vld [vmem:[%s258 + $0x298] sm:$0xf]
        %v445 = vld [vmem:[%s258 + $0x29c] sm:$0xf]
        %v446 = vld [vmem:[%s258 + $0x2a0] sm:$0xf]
        %v447 = vld [vmem:[%s258 + $0x2a4] sm:$0xf]
        %v448 = vld [vmem:[%s258 + $0x2a8] sm:$0xf]
        %v449 = vld [vmem:[%s258 + $0x2ac] sm:$0xf]
        %v450 = vld [vmem:[%s258 + $0x2b0] sm:$0xf]
        %v451 = vld [vmem:[%s258 + $0x2b4] sm:$0xf]
        %v452 = vld [vmem:[%s258 + $0x2b8] sm:$0xf]
        %v453 = vld [vmem:[%s258 + $0x2bc] sm:$0xf]
        %v454 = vld [vmem:[%s258 + $0x2c0] sm:$0xf]
        %v455 = vld [vmem:[%s258 + $0x2c4] sm:$0xf]
        %v456 = vld [vmem:[%s258 + $0x2c8] sm:$0xf]
        %v457 = vld [vmem:[%s258 + $0x2cc] sm:$0xf]
        %v458 = vld [vmem:[%s258 + $0x2d0] sm:$0xf]
        %v459 = vld [vmem:[%s258 + $0x2d4] sm:$0xf]
        %v460 = vld [vmem:[%s258 + $0x2d8] sm:$0xf]
        %v461 = vld [vmem:[%s258 + $0x2dc] sm:$0xf]
        %v462 = vld [vmem:[%s258 + $0x2e0] sm:$0xf]
        %v463 = vld [vmem:[%s258 + $0x2e4] sm:$0xf]
        %v464 = vld [vmem:[%s258 + $0x2e8] sm:$0xf]
        %v465 = vld [vmem:[%s258 + $0x2ec] sm:$0xf]
        %v466 = vld [vmem:[%s258 + $0x2f0] sm:$0xf]
        %v467 = vld [vmem:[%s258 + $0x2f4] sm:$0xf]
        %v468 = vld [vmem:[%s258 + $0x2f8] sm:$0xf]
        %v469 = vld [vmem:[%s258 + $0x2fc] sm:$0xf]
        %v470 = vld [vmem:[%s258 + $0x300] sm:$0xf]
        %v471 = vld [vmem:[%s258 + $0x304] sm:$0xf]
        %v472 = vld [vmem:[%s258 + $0x308] sm:$0xf]
        %v473 = vld [vmem:[%s258 + $0x30c] sm:$0xf]
        %v474 = vld [vmem:[%s258 + $0x310] sm:$0xf]
        %v475 = vld [vmem:[%s258 + $0x314] sm:$0xf]
        %v476 = vld [vmem:[%s258 + $0x318] sm:$0xf]
        %v477 = vld [vmem:[%s258 + $0x31c] sm:$0xf]
        %v478 = vld [vmem:[%s258 + $0x320] sm:$0xf]
        %v479 = vld [vmem:[%s258 + $0x324] sm:$0xf]
        %v480 = vld [vmem:[%s258 + $0x328] sm:$0xf]
        %v481 = vld [vmem:[%s258 + $0x32c] sm:$0xf]
        %v482 = vld [vmem:[%s258 + $0x330] sm:$0xf]
        %v483 = vld [vmem:[%s258 + $0x334] sm:$0xf]
        %v484 = vld [vmem:[%s258 + $0x338] sm:$0xf]
        %v485 = vld [vmem:[%s258 + $0x33c] sm:$0xf]
        %v486 = vld [vmem:[%s258 + $0x340] sm:$0xf]
        %v487 = vld [vmem:[%s258 + $0x344] sm:$0xf]
        %v488 = vld [vmem:[%s258 + $0x348] sm:$0xf]
        %v489 = vld [vmem:[%s258 + $0x34c] sm:$0xf]
        %v490 = vld [vmem:[%s258 + $0x350] sm:$0xf]
        %v491 = vld [vmem:[%s258 + $0x354] sm:$0xf]
        %v492 = vld [vmem:[%s258 + $0x358] sm:$0xf]
        %v493 = vld [vmem:[%s258 + $0x35c] sm:$0xf]
        %v494 = vld [vmem:[%s258 + $0x360] sm:$0xf]
        %v495 = vld [vmem:[%s258 + $0x364] sm:$0xf]
        %v496 = vld [vmem:[%s258 + $0x368] sm:$0xf]
        %v497 = vld [vmem:[%s258 + $0x36c] sm:$0xf]
        %v498 = vld [vmem:[%s258 + $0x370] sm:$0xf]
        %v499 = vld [vmem:[%s258 + $0x374] sm:$0xf]
        %v500 = vld [vmem:[%s258 + $0x378] sm:$0xf]
        %v501 = vld [vmem:[%s258 + $0x37c] sm:$0xf]
        %v502 = vld [vmem:[%s258 + $0x380] sm:$0xf]
        %v503 = vld [vmem:[%s258 + $0x384] sm:$0xf]
        %v504 = vld [vmem:[%s258 + $0x388] sm:$0xf]
        %v505 = vld [vmem:[%s258 + $0x38c] sm:$0xf]
        %v506 = vld [vmem:[%s258 + $0x390] sm:$0xf]
        %v507 = vld [vmem:[%s258 + $0x394] sm:$0xf]
        %v508 = vld [vmem:[%s258 + $0x398] sm:$0xf]
        %v509 = vld [vmem:[%s258 + $0x39c] sm:$0xf]
        %v510 = vld [vmem:[%s258 + $0x3a0] sm:$0xf]
        %v511 = vld [vmem:[%s258 + $0x3a4] sm:$0xf]
        %v512 = vld [vmem:[%s258 + $0x3a8] sm:$0xf]
        %v513 = vld [vmem:[%s258 + $0x3ac] sm:$0xf]
        %v514 = vld [vmem:[%s258 + $0x3b0] sm:$0xf]
        %v515 = vld [vmem:[%s258 + $0x3b4] sm:$0xf]
        %v516 = vld [vmem:[%s258 + $0x3b8] sm:$0xf]
        %v517 = vld [vmem:[%s258 + $0x3bc] sm:$0xf]
        %v518 = vld [vmem:[%s258 + $0x3c0] sm:$0xf]
        %v519 = vld [vmem:[%s258 + $0x3c4] sm:$0xf]
        %v520 = vld [vmem:[%s258 + $0x3c8] sm:$0xf]
        %v521 = vld [vmem:[%s258 + $0x3cc] sm:$0xf]
        %v522 = vld [vmem:[%s258 + $0x3d0] sm:$0xf]
        %v523 = vld [vmem:[%s258 + $0x3d4] sm:$0xf]
        %v524 = vld [vmem:[%s258 + $0x3d8] sm:$0xf]
        %v525 = vld [vmem:[%s258 + $0x3dc] sm:$0xf]
        %v526 = vld [vmem:[%s258 + $0x3e0] sm:$0xf]
        %v527 = vld [vmem:[%s258 + $0x3e4] sm:$0xf]
        %v528 = vld [vmem:[%s258 + $0x3e8] sm:$0xf]
        %v529 = vld [vmem:[%s258 + $0x3ec] sm:$0xf]
        %v530 = vld [vmem:[%s258 + $0x3f0] sm:$0xf]
        %v531 = vld [vmem:[%s258 + $0x3f4] sm:$0xf]
        %v532 = vld [vmem:[%s258 + $0x3f8] sm:$0xf]
        %v533 = vld [vmem:[%s258 + $0x3fc] sm:$0xf]
        %v534 = vld [vmem:[%s263] sm:$0xff]
        %v535 = vld [vmem:[%s263 + $0x8] sm:$0xff]
        %v538 = vperm.slane %v534, 0
        %v539 = vperm.slane %v534, 1
        %v540 = vperm.slane %v534, 2
        %v541 = vperm.slane %v534, 3
        %v542 = vperm.slane %v534, 4
        %v543 = vperm.slane %v534, 5
        %v544 = vperm.slane %v534, 6
        %v545 = vperm.slane %v534, 7
        %v546 = vperm.slane %v535, 0
        %v547 = vperm.slane %v535, 1
        %v548 = vperm.slane %v535, 2
        %v549 = vperm.slane %v535, 3
        %v550 = vperm.slane %v535, 4
        %v551 = vperm.slane %v535, 5
        %v552 = vperm.slane %v535, 6
        %v553 = vperm.slane %v535, 7
        %v575 = vunpack.c.l.b16 %v273
        %v576 = vunpack.c.l.b16 %v274
        %v577 = vunpack.c.l.b16 %v275
        %v578 = vunpack.c.l.b16 %v276
        %v579 = vunpack.c.l.b16 %v277
        %v580 = vpack.c.b16 %v576, %v575
        %v581 = vpack.c.b16 %v578, %v577
        %v582 = vpack.c.b16 %v579, %v579
        %v842 = vunpack.c.l.b16 %v278
        %v843 = vunpack.c.l.b16 %v279
        %v844 = vunpack.c.l.b16 %v280
        %v845 = vunpack.c.l.b16 %v281
        %v846 = vunpack.c.l.b16 %v282
        %v847 = vunpack.c.l.b16 %v283
        %v848 = vunpack.c.l.b16 %v284
        %v849 = vunpack.c.l.b16 %v285
        %v850 = vunpack.c.l.b16 %v286
        %v851 = vunpack.c.l.b16 %v287
        %v852 = vunpack.c.l.b16 %v288
        %v853 = vunpack.c.l.b16 %v289
        %v854 = vunpack.c.l.b16 %v290
        %v855 = vunpack.c.l.b16 %v291
        %v856 = vunpack.c.l.b16 %v292
        %v857 = vunpack.c.l.b16 %v293
        %v858 = vunpack.c.l.b16 %v294
        %v859 = vunpack.c.l.b16 %v295
        %v860 = vunpack.c.l.b16 %v296
        %v861 = vunpack.c.l.b16 %v297
        %v862 = vunpack.c.l.b16 %v298
        %v863 = vunpack.c.l.b16 %v299
        %v864 = vunpack.c.l.b16 %v300
        %v865 = vunpack.c.l.b16 %v301
        %v866 = vunpack.c.l.b16 %v302
        %v867 = vunpack.c.l.b16 %v303
        %v868 = vunpack.c.l.b16 %v304
        %v869 = vunpack.c.l.b16 %v305
        %v870 = vunpack.c.l.b16 %v306
        %v871 = vunpack.c.l.b16 %v307
        %v872 = vunpack.c.l.b16 %v308
        %v873 = vunpack.c.l.b16 %v309
        %v874 = vunpack.c.l.b16 %v310
        %v875 = vunpack.c.l.b16 %v311
        %v876 = vunpack.c.l.b16 %v312
        %v877 = vunpack.c.l.b16 %v313
        %v878 = vunpack.c.l.b16 %v314
        %v879 = vunpack.c.l.b16 %v315
        %v880 = vunpack.c.l.b16 %v316
        %v881 = vunpack.c.l.b16 %v317
        %v882 = vunpack.c.l.b16 %v318
        %v883 = vunpack.c.l.b16 %v319
        %v884 = vunpack.c.l.b16 %v320
        %v885 = vunpack.c.l.b16 %v321
        %v886 = vunpack.c.l.b16 %v322
        %v887 = vunpack.c.l.b16 %v323
        %v888 = vunpack.c.l.b16 %v324
        %v889 = vunpack.c.l.b16 %v325
        %v890 = vunpack.c.l.b16 %v326
        %v891 = vunpack.c.l.b16 %v327
        %v892 = vunpack.c.l.b16 %v328
        %v893 = vunpack.c.l.b16 %v329
        %v894 = vunpack.c.l.b16 %v330
        %v895 = vunpack.c.l.b16 %v331
        %v896 = vunpack.c.l.b16 %v332
        %v897 = vunpack.c.l.b16 %v333
        %v898 = vunpack.c.l.b16 %v334
        %v899 = vunpack.c.l.b16 %v335
        %v900 = vunpack.c.l.b16 %v336
        %v901 = vunpack.c.l.b16 %v337
        %v902 = vunpack.c.l.b16 %v338
        %v903 = vunpack.c.l.b16 %v339
        %v904 = vunpack.c.l.b16 %v340
        %v905 = vunpack.c.l.b16 %v341
        %v906 = vunpack.c.l.b16 %v342
        %v907 = vunpack.c.l.b16 %v343
        %v908 = vunpack.c.l.b16 %v344
        %v909 = vunpack.c.l.b16 %v345
        %v910 = vunpack.c.l.b16 %v346
        %v911 = vunpack.c.l.b16 %v347
        %v912 = vunpack.c.l.b16 %v348
        %v913 = vunpack.c.l.b16 %v349
        %v914 = vunpack.c.l.b16 %v350
        %v915 = vunpack.c.l.b16 %v351
        %v916 = vunpack.c.l.b16 %v352
        %v917 = vunpack.c.l.b16 %v353
        %v918 = vunpack.c.l.b16 %v354
        %v919 = vunpack.c.l.b16 %v355
        %v920 = vunpack.c.l.b16 %v356
        %v921 = vunpack.c.l.b16 %v357
        %v922 = vunpack.c.l.b16 %v358
        %v923 = vunpack.c.l.b16 %v359
        %v924 = vunpack.c.l.b16 %v360
        %v925 = vunpack.c.l.b16 %v361
        %v926 = vunpack.c.l.b16 %v362
        %v927 = vunpack.c.l.b16 %v363
        %v928 = vunpack.c.l.b16 %v364
        %v929 = vunpack.c.l.b16 %v365
        %v930 = vunpack.c.l.b16 %v366
        %v931 = vunpack.c.l.b16 %v367
        %v932 = vunpack.c.l.b16 %v368
        %v933 = vunpack.c.l.b16 %v369
        %v934 = vunpack.c.l.b16 %v370
        %v935 = vunpack.c.l.b16 %v371
        %v936 = vunpack.c.l.b16 %v372
        %v937 = vunpack.c.l.b16 %v373
        %v938 = vunpack.c.l.b16 %v374
        %v939 = vunpack.c.l.b16 %v375
        %v940 = vunpack.c.l.b16 %v376
        %v941 = vunpack.c.l.b16 %v377
        %v942 = vunpack.c.l.b16 %v378
        %v943 = vunpack.c.l.b16 %v379
        %v944 = vunpack.c.l.b16 %v380
        %v945 = vunpack.c.l.b16 %v381
        %v946 = vunpack.c.l.b16 %v382
        %v947 = vunpack.c.l.b16 %v383
        %v948 = vunpack.c.l.b16 %v384
        %v949 = vunpack.c.l.b16 %v385
        %v950 = vunpack.c.l.b16 %v386
        %v951 = vunpack.c.l.b16 %v387
        %v952 = vunpack.c.l.b16 %v388
        %v953 = vunpack.c.l.b16 %v389
        %v954 = vunpack.c.l.b16 %v390
        %v955 = vunpack.c.l.b16 %v391
        %v956 = vunpack.c.l.b16 %v392
        %v957 = vunpack.c.l.b16 %v393
        %v958 = vunpack.c.l.b16 %v394
        %v959 = vunpack.c.l.b16 %v395
        %v960 = vunpack.c.l.b16 %v396
        %v961 = vunpack.c.l.b16 %v397
        %v962 = vunpack.c.l.b16 %v398
        %v963 = vunpack.c.l.b16 %v399
        %v964 = vunpack.c.l.b16 %v400
        %v965 = vunpack.c.l.b16 %v401
        %v966 = vunpack.c.l.b16 %v402
        %v967 = vunpack.c.l.b16 %v403
        %v968 = vunpack.c.l.b16 %v404
        %v969 = vunpack.c.l.b16 %v405
        %v970 = vunpack.c.l.b16 %v406
        %v971 = vunpack.c.l.b16 %v407
        %v972 = vunpack.c.l.b16 %v408
        %v973 = vunpack.c.l.b16 %v409
        %v974 = vunpack.c.l.b16 %v410
        %v975 = vunpack.c.l.b16 %v411
        %v976 = vunpack.c.l.b16 %v412
        %v977 = vunpack.c.l.b16 %v413
        %v978 = vunpack.c.l.b16 %v414
        %v979 = vunpack.c.l.b16 %v415
        %v980 = vunpack.c.l.b16 %v416
        %v981 = vunpack.c.l.b16 %v417
        %v982 = vunpack.c.l.b16 %v418
        %v983 = vunpack.c.l.b16 %v419
        %v984 = vunpack.c.l.b16 %v420
        %v985 = vunpack.c.l.b16 %v421
        %v986 = vunpack.c.l.b16 %v422
        %v987 = vunpack.c.l.b16 %v423
        %v988 = vunpack.c.l.b16 %v424
        %v989 = vunpack.c.l.b16 %v425
        %v990 = vunpack.c.l.b16 %v426
        %v991 = vunpack.c.l.b16 %v427
        %v992 = vunpack.c.l.b16 %v428
        %v993 = vunpack.c.l.b16 %v429
        %v994 = vunpack.c.l.b16 %v430
        %v995 = vunpack.c.l.b16 %v431
        %v996 = vunpack.c.l.b16 %v432
        %v997 = vunpack.c.l.b16 %v433
        %v998 = vunpack.c.l.b16 %v434
        %v999 = vunpack.c.l.b16 %v435
        %v1000 = vunpack.c.l.b16 %v436
        %v1001 = vunpack.c.l.b16 %v437
        %v1002 = vunpack.c.l.b16 %v438
        %v1003 = vunpack.c.l.b16 %v439
        %v1004 = vunpack.c.l.b16 %v440
        %v1005 = vunpack.c.l.b16 %v441
        %v1006 = vunpack.c.l.b16 %v442
        %v1007 = vunpack.c.l.b16 %v443
        %v1008 = vunpack.c.l.b16 %v444
        %v1009 = vunpack.c.l.b16 %v445
        %v1010 = vunpack.c.l.b16 %v446
        %v1011 = vunpack.c.l.b16 %v447
        %v1012 = vunpack.c.l.b16 %v448
        %v1013 = vunpack.c.l.b16 %v449
        %v1014 = vunpack.c.l.b16 %v450
        %v1015 = vunpack.c.l.b16 %v451
        %v1016 = vunpack.c.l.b16 %v452
        %v1017 = vunpack.c.l.b16 %v453
        %v1018 = vunpack.c.l.b16 %v454
        %v1019 = vunpack.c.l.b16 %v455
        %v1020 = vunpack.c.l.b16 %v456
        %v1021 = vunpack.c.l.b16 %v457
        %v1022 = vunpack.c.l.b16 %v458
        %v1023 = vunpack.c.l.b16 %v459
        %v1024 = vunpack.c.l.b16 %v460
        %v1025 = vunpack.c.l.b16 %v461
        %v1026 = vunpack.c.l.b16 %v462
        %v1027 = vunpack.c.l.b16 %v463
        %v1028 = vunpack.c.l.b16 %v464
        %v1029 = vunpack.c.l.b16 %v465
        %v1030 = vunpack.c.l.b16 %v466
        %v1031 = vunpack.c.l.b16 %v467
        %v1032 = vunpack.c.l.b16 %v468
        %v1033 = vunpack.c.l.b16 %v469
        %v1034 = vunpack.c.l.b16 %v470
        %v1035 = vunpack.c.l.b16 %v471
        %v1036 = vunpack.c.l.b16 %v472
        %v1037 = vunpack.c.l.b16 %v473
        %v1038 = vunpack.c.l.b16 %v474
        %v1039 = vunpack.c.l.b16 %v475
        %v1040 = vunpack.c.l.b16 %v476
        %v1041 = vunpack.c.l.b16 %v477
        %v1042 = vunpack.c.l.b16 %v478
        %v1043 = vunpack.c.l.b16 %v479
        %v1044 = vunpack.c.l.b16 %v480
        %v1045 = vunpack.c.l.b16 %v481
        %v1046 = vunpack.c.l.b16 %v482
        %v1047 = vunpack.c.l.b16 %v483
        %v1048 = vunpack.c.l.b16 %v484
        %v1049 = vunpack.c.l.b16 %v485
        %v1050 = vunpack.c.l.b16 %v486
        %v1051 = vunpack.c.l.b16 %v487
        %v1052 = vunpack.c.l.b16 %v488
        %v1053 = vunpack.c.l.b16 %v489
        %v1054 = vunpack.c.l.b16 %v490
        %v1055 = vunpack.c.l.b16 %v491
        %v1056 = vunpack.c.l.b16 %v492
        %v1057 = vunpack.c.l.b16 %v493
        %v1058 = vunpack.c.l.b16 %v494
        %v1059 = vunpack.c.l.b16 %v495
        %v1060 = vunpack.c.l.b16 %v496
        %v1061 = vunpack.c.l.b16 %v497
        %v1062 = vunpack.c.l.b16 %v498
        %v1063 = vunpack.c.l.b16 %v499
        %v1064 = vunpack.c.l.b16 %v500
        %v1065 = vunpack.c.l.b16 %v501
        %v1066 = vunpack.c.l.b16 %v502
        %v1067 = vunpack.c.l.b16 %v503
        %v1068 = vunpack.c.l.b16 %v504
        %v1069 = vunpack.c.l.b16 %v505
        %v1070 = vunpack.c.l.b16 %v506
        %v1071 = vunpack.c.l.b16 %v507
        %v1072 = vunpack.c.l.b16 %v508
        %v1073 = vunpack.c.l.b16 %v509
        %v1074 = vunpack.c.l.b16 %v510
        %v1075 = vunpack.c.l.b16 %v511
        %v1076 = vunpack.c.l.b16 %v512
        %v1077 = vunpack.c.l.b16 %v513
        %v1078 = vunpack.c.l.b16 %v514
        %v1079 = vunpack.c.l.b16 %v515
        %v1080 = vunpack.c.l.b16 %v516
        %v1081 = vunpack.c.l.b16 %v517
        %v1082 = vunpack.c.l.b16 %v518
        %v1083 = vunpack.c.l.b16 %v519
        %v1084 = vunpack.c.l.b16 %v520
        %v1085 = vunpack.c.l.b16 %v521
        %v1086 = vunpack.c.l.b16 %v522
        %v1087 = vunpack.c.l.b16 %v523
        %v1088 = vunpack.c.l.b16 %v524
        %v1089 = vunpack.c.l.b16 %v525
        %v1090 = vunpack.c.l.b16 %v526
        %v1091 = vunpack.c.l.b16 %v527
        %v1092 = vunpack.c.l.b16 %v528
        %v1093 = vunpack.c.l.b16 %v529
        %v1094 = vunpack.c.l.b16 %v530
        %v1095 = vunpack.c.l.b16 %v531
        %v1096 = vunpack.c.l.b16 %v532
        %v1097 = vunpack.c.l.b16 %v533
        %v1098 = vpack.c.b16 %v843, %v842
        %v1099 = vpack.c.b16 %v845, %v844
        %v1100 = vpack.c.b16 %v847, %v846
        %v1101 = vpack.c.b16 %v849, %v848
        %v1102 = vpack.c.b16 %v851, %v850
        %v1103 = vpack.c.b16 %v853, %v852
        %v1104 = vpack.c.b16 %v855, %v854
        %v1105 = vpack.c.b16 %v857, %v856
        %v1106 = vpack.c.b16 %v859, %v858
        %v1107 = vpack.c.b16 %v861, %v860
        %v1108 = vpack.c.b16 %v863, %v862
        %v1109 = vpack.c.b16 %v865, %v864
        %v1110 = vpack.c.b16 %v867, %v866
        %v1111 = vpack.c.b16 %v869, %v868
        %v1112 = vpack.c.b16 %v871, %v870
        %v1113 = vpack.c.b16 %v873, %v872
        %v1114 = vpack.c.b16 %v875, %v874
        %v1115 = vpack.c.b16 %v877, %v876
        %v1116 = vpack.c.b16 %v879, %v878
        %v1117 = vpack.c.b16 %v881, %v880
        %v1118 = vpack.c.b16 %v883, %v882
        %v1119 = vpack.c.b16 %v885, %v884
        %v1120 = vpack.c.b16 %v887, %v886
        %v1121 = vpack.c.b16 %v889, %v888
        %v1122 = vpack.c.b16 %v891, %v890
        %v1123 = vpack.c.b16 %v893, %v892
        %v1124 = vpack.c.b16 %v895, %v894
        %v1125 = vpack.c.b16 %v897, %v896
        %v1126 = vpack.c.b16 %v899, %v898
        %v1127 = vpack.c.b16 %v901, %v900
        %v1128 = vpack.c.b16 %v903, %v902
        %v1129 = vpack.c.b16 %v905, %v904
        %v1130 = vpack.c.b16 %v907, %v906
        %v1131 = vpack.c.b16 %v909, %v908
        %v1132 = vpack.c.b16 %v911, %v910
        %v1133 = vpack.c.b16 %v913, %v912
        %v1134 = vpack.c.b16 %v915, %v914
        %v1135 = vpack.c.b16 %v917, %v916
        %v1136 = vpack.c.b16 %v919, %v918
        %v1137 = vpack.c.b16 %v921, %v920
        %v1138 = vpack.c.b16 %v923, %v922
        %v1139 = vpack.c.b16 %v925, %v924
        %v1140 = vpack.c.b16 %v927, %v926
        %v1141 = vpack.c.b16 %v929, %v928
        %v1142 = vpack.c.b16 %v931, %v930
        %v1143 = vpack.c.b16 %v933, %v932
        %v1144 = vpack.c.b16 %v935, %v934
        %v1145 = vpack.c.b16 %v937, %v936
        %v1146 = vpack.c.b16 %v939, %v938
        %v1147 = vpack.c.b16 %v941, %v940
        %v1148 = vpack.c.b16 %v943, %v942
        %v1149 = vpack.c.b16 %v945, %v944
        %v1150 = vpack.c.b16 %v947, %v946
        %v1151 = vpack.c.b16 %v949, %v948
        %v1152 = vpack.c.b16 %v951, %v950
        %v1153 = vpack.c.b16 %v953, %v952
        %v1154 = vpack.c.b16 %v955, %v954
        %v1155 = vpack.c.b16 %v957, %v956
        %v1156 = vpack.c.b16 %v959, %v958
        %v1157 = vpack.c.b16 %v961, %v960
        %v1158 = vpack.c.b16 %v963, %v962
        %v1159 = vpack.c.b16 %v965, %v964
        %v1160 = vpack.c.b16 %v967, %v966
        %v1161 = vpack.c.b16 %v969, %v968
        %v1162 = vpack.c.b16 %v971, %v970
        %v1163 = vpack.c.b16 %v973, %v972
        %v1164 = vpack.c.b16 %v975, %v974
        %v1165 = vpack.c.b16 %v977, %v976
        %v1166 = vpack.c.b16 %v979, %v978
        %v1167 = vpack.c.b16 %v981, %v980
        %v1168 = vpack.c.b16 %v983, %v982
        %v1169 = vpack.c.b16 %v985, %v984
        %v1170 = vpack.c.b16 %v987, %v986
        %v1171 = vpack.c.b16 %v989, %v988
        %v1172 = vpack.c.b16 %v991, %v990
        %v1173 = vpack.c.b16 %v993, %v992
        %v1174 = vpack.c.b16 %v995, %v994
        %v1175 = vpack.c.b16 %v997, %v996
        %v1176 = vpack.c.b16 %v999, %v998
        %v1177 = vpack.c.b16 %v1001, %v1000
        %v1178 = vpack.c.b16 %v1003, %v1002
        %v1179 = vpack.c.b16 %v1005, %v1004
        %v1180 = vpack.c.b16 %v1007, %v1006
        %v1181 = vpack.c.b16 %v1009, %v1008
        %v1182 = vpack.c.b16 %v1011, %v1010
        %v1183 = vpack.c.b16 %v1013, %v1012
        %v1184 = vpack.c.b16 %v1015, %v1014
        %v1185 = vpack.c.b16 %v1017, %v1016
        %v1186 = vpack.c.b16 %v1019, %v1018
        %v1187 = vpack.c.b16 %v1021, %v1020
        %v1188 = vpack.c.b16 %v1023, %v1022
        %v1189 = vpack.c.b16 %v1025, %v1024
        %v1190 = vpack.c.b16 %v1027, %v1026
        %v1191 = vpack.c.b16 %v1029, %v1028
        %v1192 = vpack.c.b16 %v1031, %v1030
        %v1193 = vpack.c.b16 %v1033, %v1032
        %v1194 = vpack.c.b16 %v1035, %v1034
        %v1195 = vpack.c.b16 %v1037, %v1036
        %v1196 = vpack.c.b16 %v1039, %v1038
        %v1197 = vpack.c.b16 %v1041, %v1040
        %v1198 = vpack.c.b16 %v1043, %v1042
        %v1199 = vpack.c.b16 %v1045, %v1044
        %v1200 = vpack.c.b16 %v1047, %v1046
        %v1201 = vpack.c.b16 %v1049, %v1048
        %v1202 = vpack.c.b16 %v1051, %v1050
        %v1203 = vpack.c.b16 %v1053, %v1052
        %v1204 = vpack.c.b16 %v1055, %v1054
        %v1205 = vpack.c.b16 %v1057, %v1056
        %v1206 = vpack.c.b16 %v1059, %v1058
        %v1207 = vpack.c.b16 %v1061, %v1060
        %v1208 = vpack.c.b16 %v1063, %v1062
        %v1209 = vpack.c.b16 %v1065, %v1064
        %v1210 = vpack.c.b16 %v1067, %v1066
        %v1211 = vpack.c.b16 %v1069, %v1068
        %v1212 = vpack.c.b16 %v1071, %v1070
        %v1213 = vpack.c.b16 %v1073, %v1072
        %v1214 = vpack.c.b16 %v1075, %v1074
        %v1215 = vpack.c.b16 %v1077, %v1076
        %v1216 = vpack.c.b16 %v1079, %v1078
        %v1217 = vpack.c.b16 %v1081, %v1080
        %v1218 = vpack.c.b16 %v1083, %v1082
        %v1219 = vpack.c.b16 %v1085, %v1084
        %v1220 = vpack.c.b16 %v1087, %v1086
        %v1221 = vpack.c.b16 %v1089, %v1088
        %v1222 = vpack.c.b16 %v1091, %v1090
        %v1223 = vpack.c.b16 %v1093, %v1092
        %v1224 = vpack.c.b16 %v1095, %v1094
        %v1225 = vpack.c.b16 %v1097, %v1096
        %1354 = vmatpush.bf16.xpose.msra.mxu0 %v1105
        %1355 = vmatpush.bf16.xpose.msra.mxu0 %v1104
        %1356 = vmatpush.bf16.xpose.msra.mxu0 %v1103
        %1357 = vmatpush.bf16.xpose.msra.mxu0 %v1102
        %1358 = vmatpush.bf16.xpose.msra.mxu0 %v1101
        %1359 = vmatpush.bf16.xpose.msra.mxu0 %v1100
        %1360 = vmatpush.bf16.xpose.msra.mxu0 %v1099
        %1361 = vmatpush.bf16.xpose.msra.mxu0 %v1098
        %1362 = vmatmul.bf16.gmra.mxu0 %v580
        %v1363 = vpop.f32.mrf.mxu0
        %v1364 = vadd.f32 %v538, %v1363
        %v1365 = vpop.f32.mrf.mxu0
        %v1366 = vadd.f32 %v538, %v1365
        %1367 = vmatmul.bf16.gmra.mxu0 %v581
        %v1368 = vpop.f32.mrf.mxu0
        %v1369 = vadd.f32 %v538, %v1368
        %v1370 = vpop.f32.mrf.mxu0
        %v1371 = vadd.f32 %v538, %v1370
        %1372 = vmatmul.bf16.gmra.mxu0 %v582
        %v1373 = vpop.f32.mrf.mxu0
        %v1374 = vadd.f32 %v538, %v1373
        %v1375 = vpop.f32.mrf.mxu0
        %1376 = vdwg.mxu0
        %1377 = vmatpush.bf16.xpose.msra.mxu0 %v1113
        %1378 = vmatpush.bf16.xpose.msra.mxu0 %v1112
        %1379 = vmatpush.bf16.xpose.msra.mxu0 %v1111
        %1380 = vmatpush.bf16.xpose.msra.mxu0 %v1110
        %1381 = vmatpush.bf16.xpose.msra.mxu0 %v1109
        %1382 = vmatpush.bf16.xpose.msra.mxu0 %v1108
        %1383 = vmatpush.bf16.xpose.msra.mxu0 %v1107
        %1384 = vmatpush.bf16.xpose.msra.mxu0 %v1106
        %1385 = vmatmul.bf16.gmra.mxu0 %v580
        %v1386 = vpop.f32.mrf.mxu0
        %v1387 = vadd.f32 %v539, %v1386
        %v1388 = vpop.f32.mrf.mxu0
        %v1389 = vadd.f32 %v539, %v1388
        %1390 = vmatmul.bf16.gmra.mxu0 %v581
        %v1391 = vpop.f32.mrf.mxu0
        %v1392 = vadd.f32 %v539, %v1391
        %v1393 = vpop.f32.mrf.mxu0
        %v1394 = vadd.f32 %v539, %v1393
        %1395 = vmatmul.bf16.gmra.mxu0 %v582
        %v1396 = vpop.f32.mrf.mxu0
        %v1397 = vadd.f32 %v539, %v1396
        %v1398 = vpop.f32.mrf.mxu0
        %1399 = vdwg.mxu0
        %1400 = vmatpush.bf16.xpose.msra.mxu0 %v1121
        %1401 = vmatpush.bf16.xpose.msra.mxu0 %v1120
        %1402 = vmatpush.bf16.xpose.msra.mxu0 %v1119
        %1403 = vmatpush.bf16.xpose.msra.mxu0 %v1118
        %1404 = vmatpush.bf16.xpose.msra.mxu0 %v1117
        %1405 = vmatpush.bf16.xpose.msra.mxu0 %v1116
        %1406 = vmatpush.bf16.xpose.msra.mxu0 %v1115
        %1407 = vmatpush.bf16.xpose.msra.mxu0 %v1114
        %1408 = vmatmul.bf16.gmra.mxu0 %v580
        %v1409 = vpop.f32.mrf.mxu0
        %v1410 = vadd.f32 %v540, %v1409
        %v1411 = vpop.f32.mrf.mxu0
        %v1412 = vadd.f32 %v540, %v1411
        %1413 = vmatmul.bf16.gmra.mxu0 %v581
        %v1414 = vpop.f32.mrf.mxu0
        %v1415 = vadd.f32 %v540, %v1414
        %v1416 = vpop.f32.mrf.mxu0
        %v1417 = vadd.f32 %v540, %v1416
        %1418 = vmatmul.bf16.gmra.mxu0 %v582
        %v1419 = vpop.f32.mrf.mxu0
        %v1420 = vadd.f32 %v540, %v1419
        %v1421 = vpop.f32.mrf.mxu0
        %1422 = vdwg.mxu0
        %1423 = vmatpush.bf16.xpose.msra.mxu0 %v1129
        %1424 = vmatpush.bf16.xpose.msra.mxu0 %v1128
        %1425 = vmatpush.bf16.xpose.msra.mxu0 %v1127
        %1426 = vmatpush.bf16.xpose.msra.mxu0 %v1126
        %1427 = vmatpush.bf16.xpose.msra.mxu0 %v1125
        %1428 = vmatpush.bf16.xpose.msra.mxu0 %v1124
        %1429 = vmatpush.bf16.xpose.msra.mxu0 %v1123
        %1430 = vmatpush.bf16.xpose.msra.mxu0 %v1122
        %1431 = vmatmul.bf16.gmra.mxu0 %v580
        %v1432 = vpop.f32.mrf.mxu0
        %v1433 = vadd.f32 %v541, %v1432
        %v1434 = vpop.f32.mrf.mxu0
        %v1435 = vadd.f32 %v541, %v1434
        %1436 = vmatmul.bf16.gmra.mxu0 %v581
        %v1437 = vpop.f32.mrf.mxu0
        %v1438 = vadd.f32 %v541, %v1437
        %v1439 = vpop.f32.mrf.mxu0
        %v1440 = vadd.f32 %v541, %v1439
        %1441 = vmatmul.bf16.gmra.mxu0 %v582
        %v1442 = vpop.f32.mrf.mxu0
        %v1443 = vadd.f32 %v541, %v1442
        %v1444 = vpop.f32.mrf.mxu0
        %1445 = vdwg.mxu0
        %1446 = vmatpush.bf16.xpose.msra.mxu0 %v1137
        %1447 = vmatpush.bf16.xpose.msra.mxu0 %v1136
        %1448 = vmatpush.bf16.xpose.msra.mxu0 %v1135
        %1449 = vmatpush.bf16.xpose.msra.mxu0 %v1134
        %1450 = vmatpush.bf16.xpose.msra.mxu0 %v1133
        %1451 = vmatpush.bf16.xpose.msra.mxu0 %v1132
        %1452 = vmatpush.bf16.xpose.msra.mxu0 %v1131
        %1453 = vmatpush.bf16.xpose.msra.mxu0 %v1130
        %1454 = vmatmul.bf16.gmra.mxu0 %v580
        %v1455 = vpop.f32.mrf.mxu0
        %v1456 = vadd.f32 %v542, %v1455
        %v1457 = vpop.f32.mrf.mxu0
        %v1458 = vadd.f32 %v542, %v1457
        %1459 = vmatmul.bf16.gmra.mxu0 %v581
        %v1460 = vpop.f32.mrf.mxu0
        %v1461 = vadd.f32 %v542, %v1460
        %v1462 = vpop.f32.mrf.mxu0
        %v1463 = vadd.f32 %v542, %v1462
        %1464 = vmatmul.bf16.gmra.mxu0 %v582
        %v1465 = vpop.f32.mrf.mxu0
        %v1466 = vadd.f32 %v542, %v1465
        %v1467 = vpop.f32.mrf.mxu0
        %1468 = vdwg.mxu0
        %1469 = vmatpush.bf16.xpose.msra.mxu0 %v1145
        %1470 = vmatpush.bf16.xpose.msra.mxu0 %v1144
        %1471 = vmatpush.bf16.xpose.msra.mxu0 %v1143
        %1472 = vmatpush.bf16.xpose.msra.mxu0 %v1142
        %1473 = vmatpush.bf16.xpose.msra.mxu0 %v1141
        %1474 = vmatpush.bf16.xpose.msra.mxu0 %v1140
        %1475 = vmatpush.bf16.xpose.msra.mxu0 %v1139
        %1476 = vmatpush.bf16.xpose.msra.mxu0 %v1138
        %1477 = vmatmul.bf16.gmra.mxu0 %v580
        %v1478 = vpop.f32.mrf.mxu0
        %v1479 = vadd.f32 %v543, %v1478
        %v1480 = vpop.f32.mrf.mxu0
        %v1481 = vadd.f32 %v543, %v1480
        %1482 = vmatmul.bf16.gmra.mxu0 %v581
        %v1483 = vpop.f32.mrf.mxu0
        %v1484 = vadd.f32 %v543, %v1483
        %v1485 = vpop.f32.mrf.mxu0
        %v1486 = vadd.f32 %v543, %v1485
        %1487 = vmatmul.bf16.gmra.mxu0 %v582
        %v1488 = vpop.f32.mrf.mxu0
        %v1489 = vadd.f32 %v543, %v1488
        %v1490 = vpop.f32.mrf.mxu0
        %1491 = vdwg.mxu0
        %1492 = vmatpush.bf16.xpose.msra.mxu0 %v1153
        %1493 = vmatpush.bf16.xpose.msra.mxu0 %v1152
        %1494 = vmatpush.bf16.xpose.msra.mxu0 %v1151
        %1495 = vmatpush.bf16.xpose.msra.mxu0 %v1150
        %1496 = vmatpush.bf16.xpose.msra.mxu0 %v1149
        %1497 = vmatpush.bf16.xpose.msra.mxu0 %v1148
        %1498 = vmatpush.bf16.xpose.msra.mxu0 %v1147
        %1499 = vmatpush.bf16.xpose.msra.mxu0 %v1146
        %1500 = vmatmul.bf16.gmra.mxu0 %v580
        %v1501 = vpop.f32.mrf.mxu0
        %v1502 = vadd.f32 %v544, %v1501
        %v1503 = vpop.f32.mrf.mxu0
        %v1504 = vadd.f32 %v544, %v1503
        %1505 = vmatmul.bf16.gmra.mxu0 %v581
        %v1506 = vpop.f32.mrf.mxu0
        %v1507 = vadd.f32 %v544, %v1506
        %v1508 = vpop.f32.mrf.mxu0
        %v1509 = vadd.f32 %v544, %v1508
        %1510 = vmatmul.bf16.gmra.mxu0 %v582
        %v1511 = vpop.f32.mrf.mxu0
        %v1512 = vadd.f32 %v544, %v1511
        %v1513 = vpop.f32.mrf.mxu0
        %1514 = vdwg.mxu0
        %1515 = vmatpush.bf16.xpose.msra.mxu0 %v1161
        %1516 = vmatpush.bf16.xpose.msra.mxu0 %v1160
        %1517 = vmatpush.bf16.xpose.msra.mxu0 %v1159
        %1518 = vmatpush.bf16.xpose.msra.mxu0 %v1158
        %1519 = vmatpush.bf16.xpose.msra.mxu0 %v1157
        %1520 = vmatpush.bf16.xpose.msra.mxu0 %v1156
        %1521 = vmatpush.bf16.xpose.msra.mxu0 %v1155
        %1522 = vmatpush.bf16.xpose.msra.mxu0 %v1154
        %1523 = vmatmul.bf16.gmra.mxu0 %v580
        %v1524 = vpop.f32.mrf.mxu0
        %v1525 = vadd.f32 %v545, %v1524
        %v1526 = vpop.f32.mrf.mxu0
        %v1527 = vadd.f32 %v545, %v1526
        %1528 = vmatmul.bf16.gmra.mxu0 %v581
        %v1529 = vpop.f32.mrf.mxu0
        %v1530 = vadd.f32 %v545, %v1529
        %v1531 = vpop.f32.mrf.mxu0
        %v1532 = vadd.f32 %v545, %v1531
        %1533 = vmatmul.bf16.gmra.mxu0 %v582
        %v1534 = vpop.f32.mrf.mxu0
        %v1535 = vadd.f32 %v545, %v1534
        %v1536 = vpop.f32.mrf.mxu0
        %1537 = vdwg.mxu0
        %1538 = vmatpush.bf16.xpose.msra.mxu0 %v1169
        %1539 = vmatpush.bf16.xpose.msra.mxu0 %v1168
        %1540 = vmatpush.bf16.xpose.msra.mxu0 %v1167
        %1541 = vmatpush.bf16.xpose.msra.mxu0 %v1166
        %1542 = vmatpush.bf16.xpose.msra.mxu0 %v1165
        %1543 = vmatpush.bf16.xpose.msra.mxu0 %v1164
        %1544 = vmatpush.bf16.xpose.msra.mxu0 %v1163
        %1545 = vmatpush.bf16.xpose.msra.mxu0 %v1162
        %1546 = vmatmul.bf16.gmra.mxu0 %v580
        %v1547 = vpop.f32.mrf.mxu0
        %v1548 = vadd.f32 %v546, %v1547
        %v1549 = vpop.f32.mrf.mxu0
        %v1550 = vadd.f32 %v546, %v1549
        %1551 = vmatmul.bf16.gmra.mxu0 %v581
        %v1552 = vpop.f32.mrf.mxu0
        %v1553 = vadd.f32 %v546, %v1552
        %v1554 = vpop.f32.mrf.mxu0
        %v1555 = vadd.f32 %v546, %v1554
        %1556 = vmatmul.bf16.gmra.mxu0 %v582
        %v1557 = vpop.f32.mrf.mxu0
        %v1558 = vadd.f32 %v546, %v1557
        %v1559 = vpop.f32.mrf.mxu0
        %1560 = vdwg.mxu0
        %1561 = vmatpush.bf16.xpose.msra.mxu0 %v1177
        %1562 = vmatpush.bf16.xpose.msra.mxu0 %v1176
        %1563 = vmatpush.bf16.xpose.msra.mxu0 %v1175
        %1564 = vmatpush.bf16.xpose.msra.mxu0 %v1174
        %1565 = vmatpush.bf16.xpose.msra.mxu0 %v1173
        %1566 = vmatpush.bf16.xpose.msra.mxu0 %v1172
        %1567 = vmatpush.bf16.xpose.msra.mxu0 %v1171
        %1568 = vmatpush.bf16.xpose.msra.mxu0 %v1170
        %1569 = vmatmul.bf16.gmra.mxu0 %v580
        %v1570 = vpop.f32.mrf.mxu0
        %v1571 = vadd.f32 %v547, %v1570
        %v1572 = vpop.f32.mrf.mxu0
        %v1573 = vadd.f32 %v547, %v1572
        %1574 = vmatmul.bf16.gmra.mxu0 %v581
        %v1575 = vpop.f32.mrf.mxu0
        %v1576 = vadd.f32 %v547, %v1575
        %v1577 = vpop.f32.mrf.mxu0
        %v1578 = vadd.f32 %v547, %v1577
        %1579 = vmatmul.bf16.gmra.mxu0 %v582
        %v1580 = vpop.f32.mrf.mxu0
        %v1581 = vadd.f32 %v547, %v1580
        %v1582 = vpop.f32.mrf.mxu0
        %1583 = vdwg.mxu0
        %1584 = vmatpush.bf16.xpose.msra.mxu0 %v1185
        %1585 = vmatpush.bf16.xpose.msra.mxu0 %v1184
        %1586 = vmatpush.bf16.xpose.msra.mxu0 %v1183
        %1587 = vmatpush.bf16.xpose.msra.mxu0 %v1182
        %1588 = vmatpush.bf16.xpose.msra.mxu0 %v1181
        %1589 = vmatpush.bf16.xpose.msra.mxu0 %v1180
        %1590 = vmatpush.bf16.xpose.msra.mxu0 %v1179
        %1591 = vmatpush.bf16.xpose.msra.mxu0 %v1178
        %1592 = vmatmul.bf16.gmra.mxu0 %v580
        %v1593 = vpop.f32.mrf.mxu0
        %v1594 = vadd.f32 %v548, %v1593
        %v1595 = vpop.f32.mrf.mxu0
        %v1596 = vadd.f32 %v548, %v1595
        %1597 = vmatmul.bf16.gmra.mxu0 %v581
        %v1598 = vpop.f32.mrf.mxu0
        %v1599 = vadd.f32 %v548, %v1598
        %v1600 = vpop.f32.mrf.mxu0
        %v1601 = vadd.f32 %v548, %v1600
        %1602 = vmatmul.bf16.gmra.mxu0 %v582
        %v1603 = vpop.f32.mrf.mxu0
        %v1604 = vadd.f32 %v548, %v1603
        %v1605 = vpop.f32.mrf.mxu0
        %1606 = vdwg.mxu0
        %1607 = vmatpush.bf16.xpose.msra.mxu0 %v1193
        %1608 = vmatpush.bf16.xpose.msra.mxu0 %v1192
        %1609 = vmatpush.bf16.xpose.msra.mxu0 %v1191
        %1610 = vmatpush.bf16.xpose.msra.mxu0 %v1190
        %1611 = vmatpush.bf16.xpose.msra.mxu0 %v1189
        %1612 = vmatpush.bf16.xpose.msra.mxu0 %v1188
        %1613 = vmatpush.bf16.xpose.msra.mxu0 %v1187
        %1614 = vmatpush.bf16.xpose.msra.mxu0 %v1186
        %1615 = vmatmul.bf16.gmra.mxu0 %v580
        %v1616 = vpop.f32.mrf.mxu0
        %v1617 = vadd.f32 %v549, %v1616
        %v1618 = vpop.f32.mrf.mxu0
        %v1619 = vadd.f32 %v549, %v1618
        %1620 = vmatmul.bf16.gmra.mxu0 %v581
        %v1621 = vpop.f32.mrf.mxu0
        %v1622 = vadd.f32 %v549, %v1621
        %v1623 = vpop.f32.mrf.mxu0
        %v1624 = vadd.f32 %v549, %v1623
        %1625 = vmatmul.bf16.gmra.mxu0 %v582
        %v1626 = vpop.f32.mrf.mxu0
        %v1627 = vadd.f32 %v549, %v1626
        %v1628 = vpop.f32.mrf.mxu0
        %1629 = vdwg.mxu0
        %1630 = vmatpush.bf16.xpose.msra.mxu0 %v1201
        %1631 = vmatpush.bf16.xpose.msra.mxu0 %v1200
        %1632 = vmatpush.bf16.xpose.msra.mxu0 %v1199
        %1633 = vmatpush.bf16.xpose.msra.mxu0 %v1198
        %1634 = vmatpush.bf16.xpose.msra.mxu0 %v1197
        %1635 = vmatpush.bf16.xpose.msra.mxu0 %v1196
        %1636 = vmatpush.bf16.xpose.msra.mxu0 %v1195
        %1637 = vmatpush.bf16.xpose.msra.mxu0 %v1194
        %1638 = vmatmul.bf16.gmra.mxu0 %v580
        %v1639 = vpop.f32.mrf.mxu0
        %v1640 = vadd.f32 %v550, %v1639
        %v1641 = vpop.f32.mrf.mxu0
        %v1642 = vadd.f32 %v550, %v1641
        %1643 = vmatmul.bf16.gmra.mxu0 %v581
        %v1644 = vpop.f32.mrf.mxu0
        %v1645 = vadd.f32 %v550, %v1644
        %v1646 = vpop.f32.mrf.mxu0
        %v1647 = vadd.f32 %v550, %v1646
        %1648 = vmatmul.bf16.gmra.mxu0 %v582
        %v1649 = vpop.f32.mrf.mxu0
        %v1650 = vadd.f32 %v550, %v1649
        %v1651 = vpop.f32.mrf.mxu0
        %1652 = vdwg.mxu0
        %1653 = vmatpush.bf16.xpose.msra.mxu0 %v1209
        %1654 = vmatpush.bf16.xpose.msra.mxu0 %v1208
        %1655 = vmatpush.bf16.xpose.msra.mxu0 %v1207
        %1656 = vmatpush.bf16.xpose.msra.mxu0 %v1206
        %1657 = vmatpush.bf16.xpose.msra.mxu0 %v1205
        %1658 = vmatpush.bf16.xpose.msra.mxu0 %v1204
        %1659 = vmatpush.bf16.xpose.msra.mxu0 %v1203
        %1660 = vmatpush.bf16.xpose.msra.mxu0 %v1202
        %1661 = vmatmul.bf16.gmra.mxu0 %v580
        %v1662 = vpop.f32.mrf.mxu0
        %v1663 = vadd.f32 %v551, %v1662
        %v1664 = vpop.f32.mrf.mxu0
        %v1665 = vadd.f32 %v551, %v1664
        %1666 = vmatmul.bf16.gmra.mxu0 %v581
        %v1667 = vpop.f32.mrf.mxu0
        %v1668 = vadd.f32 %v551, %v1667
        %v1669 = vpop.f32.mrf.mxu0
        %v1670 = vadd.f32 %v551, %v1669
        %1671 = vmatmul.bf16.gmra.mxu0 %v582
        %v1672 = vpop.f32.mrf.mxu0
        %v1673 = vadd.f32 %v551, %v1672
        %v1674 = vpop.f32.mrf.mxu0
        %1675 = vdwg.mxu0
        %1676 = vmatpush.bf16.xpose.msra.mxu0 %v1217
        %1677 = vmatpush.bf16.xpose.msra.mxu0 %v1216
        %1678 = vmatpush.bf16.xpose.msra.mxu0 %v1215
        %1679 = vmatpush.bf16.xpose.msra.mxu0 %v1214
        %1680 = vmatpush.bf16.xpose.msra.mxu0 %v1213
        %1681 = vmatpush.bf16.xpose.msra.mxu0 %v1212
        %1682 = vmatpush.bf16.xpose.msra.mxu0 %v1211
        %1683 = vmatpush.bf16.xpose.msra.mxu0 %v1210
        %1684 = vmatmul.bf16.gmra.mxu0 %v580
        %v1685 = vpop.f32.mrf.mxu0
        %v1686 = vadd.f32 %v552, %v1685
        %v1687 = vpop.f32.mrf.mxu0
        %v1688 = vadd.f32 %v552, %v1687
        %1689 = vmatmul.bf16.gmra.mxu0 %v581
        %v1690 = vpop.f32.mrf.mxu0
        %v1691 = vadd.f32 %v552, %v1690
        %v1692 = vpop.f32.mrf.mxu0
        %v1693 = vadd.f32 %v552, %v1692
        %1694 = vmatmul.bf16.gmra.mxu0 %v582
        %v1695 = vpop.f32.mrf.mxu0
        %v1696 = vadd.f32 %v552, %v1695
        %v1697 = vpop.f32.mrf.mxu0
        %1698 = vdwg.mxu0
        %1699 = vmatpush.bf16.xpose.msra.mxu0 %v1225
        %1700 = vmatpush.bf16.xpose.msra.mxu0 %v1224
        %1701 = vmatpush.bf16.xpose.msra.mxu0 %v1223
        %1702 = vmatpush.bf16.xpose.msra.mxu0 %v1222
        %1703 = vmatpush.bf16.xpose.msra.mxu0 %v1221
        %1704 = vmatpush.bf16.xpose.msra.mxu0 %v1220
        %1705 = vmatpush.bf16.xpose.msra.mxu0 %v1219
        %1706 = vmatpush.bf16.xpose.msra.mxu0 %v1218
        %1707 = vmatmul.bf16.gmra.mxu0 %v580
        %v1708 = vpop.f32.mrf.mxu0
        %v1709 = vadd.f32 %v553, %v1708
        %v1710 = vpop.f32.mrf.mxu0
        %v1711 = vadd.f32 %v553, %v1710
        %1712 = vmatmul.bf16.gmra.mxu0 %v581
        %v1713 = vpop.f32.mrf.mxu0
        %v1714 = vadd.f32 %v553, %v1713
        %v1715 = vpop.f32.mrf.mxu0
        %v1716 = vadd.f32 %v553, %v1715
        %1717 = vmatmul.bf16.gmra.mxu0 %v582
        %v1718 = vpop.f32.mrf.mxu0
        %v1719 = vadd.f32 %v553, %v1718
        %v1720 = vpop.f32.mrf.mxu0
        %1721 = vdwg.mxu0
        %v1722 = vld [vmem:[%s269] sm:$0xff]
        %v1723 = vld [vmem:[%s269 + $0x8] sm:$0xff]
        %v1724 = vld [vmem:[%s269 + $0x10] sm:$0xff]
        %v1725 = vld [vmem:[%s269 + $0x18] sm:$0xff]
        %v1726 = vld [vmem:[%s269 + $0x20] sm:$0xff]
        %1728 = vset.pattern.permute.xlu0 0
        %1729 = vperm.xlu0 %1728, %v1722
        %v1730 = vpop.permute.xlu0 %1729
        %1733 = vset.pattern.permute.xlu0 0
        %1734 = vperm.xlu0 %1733, %v1723
        %v1735 = vpop.permute.xlu0 %1734
        %1738 = vset.pattern.permute.xlu0 0
        %1739 = vperm.xlu0 %1738, %v1724
        %v1740 = vpop.permute.xlu0 %1739
        %1743 = vset.pattern.permute.xlu0 0
        %1744 = vperm.xlu0 %1743, %v1725
        %v1745 = vpop.permute.xlu0 %1744
        %1748 = vset.pattern.permute.xlu0 0
        %1749 = vperm.xlu0 %1748, %v1726
        %v1750 = vpop.permute.xlu0 %1749
        %v1752 = vsub.f32 %v1364, %v1730
        %v1753 = vsub.f32 %v1387, %v1730
        %v1754 = vsub.f32 %v1410, %v1730
        %v1755 = vsub.f32 %v1433, %v1730
        %v1756 = vsub.f32 %v1456, %v1730
        %v1757 = vsub.f32 %v1479, %v1730
        %v1758 = vsub.f32 %v1502, %v1730
        %v1759 = vsub.f32 %v1525, %v1730
        %v1760 = vsub.f32 %v1548, %v1730
        %v1761 = vsub.f32 %v1571, %v1730
        %v1762 = vsub.f32 %v1594, %v1730
        %v1763 = vsub.f32 %v1617, %v1730
        %v1764 = vsub.f32 %v1640, %v1730
        %v1765 = vsub.f32 %v1663, %v1730
        %v1766 = vsub.f32 %v1686, %v1730
        %v1767 = vsub.f32 %v1709, %v1730
        %v1768 = vsub.f32 %v1366, %v1735
        %v1769 = vsub.f32 %v1389, %v1735
        %v1770 = vsub.f32 %v1412, %v1735
        %v1771 = vsub.f32 %v1435, %v1735
        %v1772 = vsub.f32 %v1458, %v1735
        %v1773 = vsub.f32 %v1481, %v1735
        %v1774 = vsub.f32 %v1504, %v1735
        %v1775 = vsub.f32 %v1527, %v1735
        %v1776 = vsub.f32 %v1550, %v1735
        %v1777 = vsub.f32 %v1573, %v1735
        %v1778 = vsub.f32 %v1596, %v1735
        %v1779 = vsub.f32 %v1619, %v1735
        %v1780 = vsub.f32 %v1642, %v1735
        %v1781 = vsub.f32 %v1665, %v1735
        %v1782 = vsub.f32 %v1688, %v1735
        %v1783 = vsub.f32 %v1711, %v1735
        %v1784 = vsub.f32 %v1369, %v1740
        %v1785 = vsub.f32 %v1392, %v1740
        %v1786 = vsub.f32 %v1415, %v1740
        %v1787 = vsub.f32 %v1438, %v1740
        %v1788 = vsub.f32 %v1461, %v1740
        %v1789 = vsub.f32 %v1484, %v1740
        %v1790 = vsub.f32 %v1507, %v1740
        %v1791 = vsub.f32 %v1530, %v1740
        %v1792 = vsub.f32 %v1553, %v1740
        %v1793 = vsub.f32 %v1576, %v1740
        %v1794 = vsub.f32 %v1599, %v1740
        %v1795 = vsub.f32 %v1622, %v1740
        %v1796 = vsub.f32 %v1645, %v1740
        %v1797 = vsub.f32 %v1668, %v1740
        %v1798 = vsub.f32 %v1691, %v1740
        %v1799 = vsub.f32 %v1714, %v1740
        %v1800 = vsub.f32 %v1371, %v1745
        %v1801 = vsub.f32 %v1394, %v1745
        %v1802 = vsub.f32 %v1417, %v1745
        %v1803 = vsub.f32 %v1440, %v1745
        %v1804 = vsub.f32 %v1463, %v1745
        %v1805 = vsub.f32 %v1486, %v1745
        %v1806 = vsub.f32 %v1509, %v1745
        %v1807 = vsub.f32 %v1532, %v1745
        %v1808 = vsub.f32 %v1555, %v1745
        %v1809 = vsub.f32 %v1578, %v1745
        %v1810 = vsub.f32 %v1601, %v1745
        %v1811 = vsub.f32 %v1624, %v1745
        %v1812 = vsub.f32 %v1647, %v1745
        %v1813 = vsub.f32 %v1670, %v1745
        %v1814 = vsub.f32 %v1693, %v1745
        %v1815 = vsub.f32 %v1716, %v1745
        %v1816 = vsub.f32 %v1374, %v1750
        %v1817 = vsub.f32 %v1397, %v1750
        %v1818 = vsub.f32 %v1420, %v1750
        %v1819 = vsub.f32 %v1443, %v1750
        %v1820 = vsub.f32 %v1466, %v1750
        %v1821 = vsub.f32 %v1489, %v1750
        %v1822 = vsub.f32 %v1512, %v1750
        %v1823 = vsub.f32 %v1535, %v1750
        %v1824 = vsub.f32 %v1558, %v1750
        %v1825 = vsub.f32 %v1581, %v1750
        %v1826 = vsub.f32 %v1604, %v1750
        %v1827 = vsub.f32 %v1627, %v1750
        %v1828 = vsub.f32 %v1650, %v1750
        %v1829 = vsub.f32 %v1673, %v1750
        %v1830 = vsub.f32 %v1696, %v1750
        %v1831 = vsub.f32 %v1719, %v1750
        %1832 = vst [vmem:[%s247] sm:$0xff] %v1752
        %1833 = vst [vmem:[%s247 + $0x8] sm:$0xff] %v1753
        %1834 = vst [vmem:[%s247 + $0x10] sm:$0xff] %v1754
        %1835 = vst [vmem:[%s247 + $0x18] sm:$0xff] %v1755
        %1836 = vst [vmem:[%s247 + $0x20] sm:$0xff] %v1756
        %1837 = vst [vmem:[%s247 + $0x28] sm:$0xff] %v1757
        %1838 = vst [vmem:[%s247 + $0x30] sm:$0xff] %v1758
        %1839 = vst [vmem:[%s247 + $0x38] sm:$0xff] %v1759
        %1840 = vst [vmem:[%s247 + $0x40] sm:$0xff] %v1760
        %1841 = vst [vmem:[%s247 + $0x48] sm:$0xff] %v1761
        %1842 = vst [vmem:[%s247 + $0x50] sm:$0xff] %v1762
        %1843 = vst [vmem:[%s247 + $0x58] sm:$0xff] %v1763
        %1844 = vst [vmem:[%s247 + $0x60] sm:$0xff] %v1764
        %1845 = vst [vmem:[%s247 + $0x68] sm:$0xff] %v1765
        %1846 = vst [vmem:[%s247 + $0x70] sm:$0xff] %v1766
        %1847 = vst [vmem:[%s247 + $0x78] sm:$0xff] %v1767
        %1848 = vst [vmem:[%s247 + $0x80] sm:$0xff] %v1768
        %1849 = vst [vmem:[%s247 + $0x88] sm:$0xff] %v1769
        %1850 = vst [vmem:[%s247 + $0x90] sm:$0xff] %v1770
        %1851 = vst [vmem:[%s247 + $0x98] sm:$0xff] %v1771
        %1852 = vst [vmem:[%s247 + $0xa0] sm:$0xff] %v1772
        %1853 = vst [vmem:[%s247 + $0xa8] sm:$0xff] %v1773
        %1854 = vst [vmem:[%s247 + $0xb0] sm:$0xff] %v1774
        %1855 = vst [vmem:[%s247 + $0xb8] sm:$0xff] %v1775
        %1856 = vst [vmem:[%s247 + $0xc0] sm:$0xff] %v1776
        %1857 = vst [vmem:[%s247 + $0xc8] sm:$0xff] %v1777
        %1858 = vst [vmem:[%s247 + $0xd0] sm:$0xff] %v1778
        %1859 = vst [vmem:[%s247 + $0xd8] sm:$0xff] %v1779
        %1860 = vst [vmem:[%s247 + $0xe0] sm:$0xff] %v1780
        %1861 = vst [vmem:[%s247 + $0xe8] sm:$0xff] %v1781
        %1862 = vst [vmem:[%s247 + $0xf0] sm:$0xff] %v1782
        %1863 = vst [vmem:[%s247 + $0xf8] sm:$0xff] %v1783
        %1864 = vst [vmem:[%s247 + $0x100] sm:$0xff] %v1784
        %1865 = vst [vmem:[%s247 + $0x108] sm:$0xff] %v1785
        %1866 = vst [vmem:[%s247 + $0x110] sm:$0xff] %v1786
        %1867 = vst [vmem:[%s247 + $0x118] sm:$0xff] %v1787
        %1868 = vst [vmem:[%s247 + $0x120] sm:$0xff] %v1788
        %1869 = vst [vmem:[%s247 + $0x128] sm:$0xff] %v1789
        %1870 = vst [vmem:[%s247 + $0x130] sm:$0xff] %v1790
        %1871 = vst [vmem:[%s247 + $0x138] sm:$0xff] %v1791
        %1872 = vst [vmem:[%s247 + $0x140] sm:$0xff] %v1792
        %1873 = vst [vmem:[%s247 + $0x148] sm:$0xff] %v1793
        %1874 = vst [vmem:[%s247 + $0x150] sm:$0xff] %v1794
        %1875 = vst [vmem:[%s247 + $0x158] sm:$0xff] %v1795
        %1876 = vst [vmem:[%s247 + $0x160] sm:$0xff] %v1796
        %1877 = vst [vmem:[%s247 + $0x168] sm:$0xff] %v1797
        %1878 = vst [vmem:[%s247 + $0x170] sm:$0xff] %v1798
        %1879 = vst [vmem:[%s247 + $0x178] sm:$0xff] %v1799
        %1880 = vst [vmem:[%s247 + $0x180] sm:$0xff] %v1800
        %1881 = vst [vmem:[%s247 + $0x188] sm:$0xff] %v1801
        %1882 = vst [vmem:[%s247 + $0x190] sm:$0xff] %v1802
        %1883 = vst [vmem:[%s247 + $0x198] sm:$0xff] %v1803
        %1884 = vst [vmem:[%s247 + $0x1a0] sm:$0xff] %v1804
        %1885 = vst [vmem:[%s247 + $0x1a8] sm:$0xff] %v1805
        %1886 = vst [vmem:[%s247 + $0x1b0] sm:$0xff] %v1806
        %1887 = vst [vmem:[%s247 + $0x1b8] sm:$0xff] %v1807
        %1888 = vst [vmem:[%s247 + $0x1c0] sm:$0xff] %v1808
        %1889 = vst [vmem:[%s247 + $0x1c8] sm:$0xff] %v1809
        %1890 = vst [vmem:[%s247 + $0x1d0] sm:$0xff] %v1810
        %1891 = vst [vmem:[%s247 + $0x1d8] sm:$0xff] %v1811
        %1892 = vst [vmem:[%s247 + $0x1e0] sm:$0xff] %v1812
        %1893 = vst [vmem:[%s247 + $0x1e8] sm:$0xff] %v1813
        %1894 = vst [vmem:[%s247 + $0x1f0] sm:$0xff] %v1814
        %1895 = vst [vmem:[%s247 + $0x1f8] sm:$0xff] %v1815
        %1896 = vst [vmem:[%s247 + $0x200] sm:$0xff] %v1816
        %1897 = vst [vmem:[%s247 + $0x208] sm:$0xff] %v1817
        %1898 = vst [vmem:[%s247 + $0x210] sm:$0xff] %v1818
        %1899 = vst [vmem:[%s247 + $0x218] sm:$0xff] %v1819
        %1900 = vst [vmem:[%s247 + $0x220] sm:$0xff] %v1820
        %1901 = vst [vmem:[%s247 + $0x228] sm:$0xff] %v1821
        %1902 = vst [vmem:[%s247 + $0x230] sm:$0xff] %v1822
        %1903 = vst [vmem:[%s247 + $0x238] sm:$0xff] %v1823
        %1904 = vst [vmem:[%s247 + $0x240] sm:$0xff] %v1824
        %1905 = vst [vmem:[%s247 + $0x248] sm:$0xff] %v1825
        %1906 = vst [vmem:[%s247 + $0x250] sm:$0xff] %v1826
        %1907 = vst [vmem:[%s247 + $0x258] sm:$0xff] %v1827
        %1908 = vst [vmem:[%s247 + $0x260] sm:$0xff] %v1828
        %1909 = vst [vmem:[%s247 + $0x268] sm:$0xff] %v1829
        %1910 = vst [vmem:[%s247 + $0x270] sm:$0xff] %v1830
        %1911 = vst [vmem:[%s247 + $0x278] sm:$0xff] %v1831
        %s1912 = sand.u32 %s141, 1
        %s1913 = sand.u32 %s141, 1
        %s1914 = smul.addr %s1913, 640
        %s1915 = scalar_lea.vmem [#allocation2], %s1914
        // Predicated region
        $region37: #{skipgram_forward.3} parent=35 // pred_check
          %p1916 = pneg %p151
        $region38: #{skipgram_forward.3} parent=35 // pred_check_branch
          %1918 = sbr.rel (%p1916) target = $region40
        $region39: #{skipgram_forward.3} parent=35 // pred_region
          %s1919 = smul.u32 5, %s20
          %s1920 = smul.u32 16, %s19
          %s1921 = smul.addr %s1919, 32
          %s1922 = sadd.s32 %s1920, %s1921
          %s1923 = smul.addr %s1922, 8
          %s1924 = scalar_lea.vmem %s4, %s1923
          // Predicated region
          $region41: #{skipgram_forward.3} parent=39 // pred_check
            _
          $region42: #{skipgram_forward.3} parent=39 // pred_check_branch
            %1926 = sbr.rel (0) target = $region44
          $region43: #{skipgram_forward.3} parent=39 // pred_region
            // Predicated region
            $region45: #{skipgram_forward.3} parent=43 // pred_check
              _
            $region46: #{skipgram_forward.3} parent=43 // pred_check_branch
              %1928 = sbr.rel (0) target = $region48
            $region47: #{skipgram_forward.3} parent=43 // pred_region
              loop: start=0, step=1, limit=1
              $region49: #{skipgram_forward.3} parent=47 // loop_pre_header
                _
              $region50: #{skipgram_forward.3} parent=47 // loop_header
                %s1930 = sphi 0, %s1934
                %p1931 = scmp.ge.s32.totalorder %s1930, 1
                %s1935 = sphi %s1915, %s1915
                %s1936 = sphi %s1924, %s1924
              $region51: #{skipgram_forward.3} parent=47 // loop_header_branch
                %1933 = sbr.rel (%p1931) target = $region55
              $region52: #{skipgram_forward.3} parent=47 // loop_body
                %v1937 = vld [vmem:[%s1935] sm:$0xff]
                %1938 = vst [vmem:[%s1936] sm:$0xff] %v1937
                %v1939 = vld [vmem:[%s1935 + $0x8] sm:$0xff]
                %1940 = vst [vmem:[%s1936 + $0x8] sm:$0xff] %v1939
                %v1941 = vld [vmem:[%s1935 + $0x10] sm:$0xff]
                %1942 = vst [vmem:[%s1936 + $0x10] sm:$0xff] %v1941
                %v1943 = vld [vmem:[%s1935 + $0x18] sm:$0xff]
                %1944 = vst [vmem:[%s1936 + $0x18] sm:$0xff] %v1943
                %v1945 = vld [vmem:[%s1935 + $0x20] sm:$0xff]
                %1946 = vst [vmem:[%s1936 + $0x20] sm:$0xff] %v1945
                %v1947 = vld [vmem:[%s1935 + $0x28] sm:$0xff]
                %1948 = vst [vmem:[%s1936 + $0x28] sm:$0xff] %v1947
                %v1949 = vld [vmem:[%s1935 + $0x30] sm:$0xff]
                %1950 = vst [vmem:[%s1936 + $0x30] sm:$0xff] %v1949
                %v1951 = vld [vmem:[%s1935 + $0x38] sm:$0xff]
                %1952 = vst [vmem:[%s1936 + $0x38] sm:$0xff] %v1951
                %v1953 = vld [vmem:[%s1935 + $0x40] sm:$0xff]
                %1954 = vst [vmem:[%s1936 + $0x40] sm:$0xff] %v1953
                %v1955 = vld [vmem:[%s1935 + $0x48] sm:$0xff]
                %1956 = vst [vmem:[%s1936 + $0x48] sm:$0xff] %v1955
                %v1957 = vld [vmem:[%s1935 + $0x50] sm:$0xff]
                %1958 = vst [vmem:[%s1936 + $0x50] sm:$0xff] %v1957
                %v1959 = vld [vmem:[%s1935 + $0x58] sm:$0xff]
                %1960 = vst [vmem:[%s1936 + $0x58] sm:$0xff] %v1959
                %v1961 = vld [vmem:[%s1935 + $0x60] sm:$0xff]
                %1962 = vst [vmem:[%s1936 + $0x60] sm:$0xff] %v1961
                %v1963 = vld [vmem:[%s1935 + $0x68] sm:$0xff]
                %1964 = vst [vmem:[%s1936 + $0x68] sm:$0xff] %v1963
                %v1965 = vld [vmem:[%s1935 + $0x70] sm:$0xff]
                %1966 = vst [vmem:[%s1936 + $0x70] sm:$0xff] %v1965
                %v1967 = vld [vmem:[%s1935 + $0x78] sm:$0xff]
                %1968 = vst [vmem:[%s1936 + $0x78] sm:$0xff] %v1967
                %v1969 = vld [vmem:[%s1935 + $0x80] sm:$0xff]
                %1970 = vst [vmem:[%s1936 + $0x100] sm:$0xff] %v1969
                %v1971 = vld [vmem:[%s1935 + $0x88] sm:$0xff]
                %1972 = vst [vmem:[%s1936 + $0x108] sm:$0xff] %v1971
                %v1973 = vld [vmem:[%s1935 + $0x90] sm:$0xff]
                %1974 = vst [vmem:[%s1936 + $0x110] sm:$0xff] %v1973
                %v1975 = vld [vmem:[%s1935 + $0x98] sm:$0xff]
                %1976 = vst [vmem:[%s1936 + $0x118] sm:$0xff] %v1975
                %v1977 = vld [vmem:[%s1935 + $0xa0] sm:$0xff]
                %1978 = vst [vmem:[%s1936 + $0x120] sm:$0xff] %v1977
                %v1979 = vld [vmem:[%s1935 + $0xa8] sm:$0xff]
                %1980 = vst [vmem:[%s1936 + $0x128] sm:$0xff] %v1979
                %v1981 = vld [vmem:[%s1935 + $0xb0] sm:$0xff]
                %1982 = vst [vmem:[%s1936 + $0x130] sm:$0xff] %v1981
                %v1983 = vld [vmem:[%s1935 + $0xb8] sm:$0xff]
                %1984 = vst [vmem:[%s1936 + $0x138] sm:$0xff] %v1983
                %v1985 = vld [vmem:[%s1935 + $0xc0] sm:$0xff]
                %1986 = vst [vmem:[%s1936 + $0x140] sm:$0xff] %v1985
                %v1987 = vld [vmem:[%s1935 + $0xc8] sm:$0xff]
                %1988 = vst [vmem:[%s1936 + $0x148] sm:$0xff] %v1987
                %v1989 = vld [vmem:[%s1935 + $0xd0] sm:$0xff]
                %1990 = vst [vmem:[%s1936 + $0x150] sm:$0xff] %v1989
                %v1991 = vld [vmem:[%s1935 + $0xd8] sm:$0xff]
                %1992 = vst [vmem:[%s1936 + $0x158] sm:$0xff] %v1991
                %v1993 = vld [vmem:[%s1935 + $0xe0] sm:$0xff]
                %1994 = vst [vmem:[%s1936 + $0x160] sm:$0xff] %v1993
                %v1995 = vld [vmem:[%s1935 + $0xe8] sm:$0xff]
                %1996 = vst [vmem:[%s1936 + $0x168] sm:$0xff] %v1995
                %v1997 = vld [vmem:[%s1935 + $0xf0] sm:$0xff]
                %1998 = vst [vmem:[%s1936 + $0x170] sm:$0xff] %v1997
                %v1999 = vld [vmem:[%s1935 + $0xf8] sm:$0xff]
                %2000 = vst [vmem:[%s1936 + $0x178] sm:$0xff] %v1999
                %v2001 = vld [vmem:[%s1935 + $0x100] sm:$0xff]
                %2002 = vst [vmem:[%s1936 + $0x200] sm:$0xff] %v2001
                %v2003 = vld [vmem:[%s1935 + $0x108] sm:$0xff]
                %2004 = vst [vmem:[%s1936 + $0x208] sm:$0xff] %v2003
                %v2005 = vld [vmem:[%s1935 + $0x110] sm:$0xff]
                %2006 = vst [vmem:[%s1936 + $0x210] sm:$0xff] %v2005
                %v2007 = vld [vmem:[%s1935 + $0x118] sm:$0xff]
                %2008 = vst [vmem:[%s1936 + $0x218] sm:$0xff] %v2007
                %v2009 = vld [vmem:[%s1935 + $0x120] sm:$0xff]
                %2010 = vst [vmem:[%s1936 + $0x220] sm:$0xff] %v2009
                %v2011 = vld [vmem:[%s1935 + $0x128] sm:$0xff]
                %2012 = vst [vmem:[%s1936 + $0x228] sm:$0xff] %v2011
                %v2013 = vld [vmem:[%s1935 + $0x130] sm:$0xff]
                %2014 = vst [vmem:[%s1936 + $0x230] sm:$0xff] %v2013
                %v2015 = vld [vmem:[%s1935 + $0x138] sm:$0xff]
                %2016 = vst [vmem:[%s1936 + $0x238] sm:$0xff] %v2015
                %v2017 = vld [vmem:[%s1935 + $0x140] sm:$0xff]
                %2018 = vst [vmem:[%s1936 + $0x240] sm:$0xff] %v2017
                %v2019 = vld [vmem:[%s1935 + $0x148] sm:$0xff]
                %2020 = vst [vmem:[%s1936 + $0x248] sm:$0xff] %v2019
                %v2021 = vld [vmem:[%s1935 + $0x150] sm:$0xff]
                %2022 = vst [vmem:[%s1936 + $0x250] sm:$0xff] %v2021
                %v2023 = vld [vmem:[%s1935 + $0x158] sm:$0xff]
                %2024 = vst [vmem:[%s1936 + $0x258] sm:$0xff] %v2023
                %v2025 = vld [vmem:[%s1935 + $0x160] sm:$0xff]
                %2026 = vst [vmem:[%s1936 + $0x260] sm:$0xff] %v2025
                %v2027 = vld [vmem:[%s1935 + $0x168] sm:$0xff]
                %2028 = vst [vmem:[%s1936 + $0x268] sm:$0xff] %v2027
                %v2029 = vld [vmem:[%s1935 + $0x170] sm:$0xff]
                %2030 = vst [vmem:[%s1936 + $0x270] sm:$0xff] %v2029
                %v2031 = vld [vmem:[%s1935 + $0x178] sm:$0xff]
                %2032 = vst [vmem:[%s1936 + $0x278] sm:$0xff] %v2031
                %v2033 = vld [vmem:[%s1935 + $0x180] sm:$0xff]
                %2034 = vst [vmem:[%s1936 + $0x300] sm:$0xff] %v2033
                %v2035 = vld [vmem:[%s1935 + $0x188] sm:$0xff]
                %2036 = vst [vmem:[%s1936 + $0x308] sm:$0xff] %v2035
                %v2037 = vld [vmem:[%s1935 + $0x190] sm:$0xff]
                %2038 = vst [vmem:[%s1936 + $0x310] sm:$0xff] %v2037
                %v2039 = vld [vmem:[%s1935 + $0x198] sm:$0xff]
                %2040 = vst [vmem:[%s1936 + $0x318] sm:$0xff] %v2039
                %v2041 = vld [vmem:[%s1935 + $0x1a0] sm:$0xff]
                %2042 = vst [vmem:[%s1936 + $0x320] sm:$0xff] %v2041
                %v2043 = vld [vmem:[%s1935 + $0x1a8] sm:$0xff]
                %2044 = vst [vmem:[%s1936 + $0x328] sm:$0xff] %v2043
                %v2045 = vld [vmem:[%s1935 + $0x1b0] sm:$0xff]
                %2046 = vst [vmem:[%s1936 + $0x330] sm:$0xff] %v2045
                %v2047 = vld [vmem:[%s1935 + $0x1b8] sm:$0xff]
                %2048 = vst [vmem:[%s1936 + $0x338] sm:$0xff] %v2047
                %v2049 = vld [vmem:[%s1935 + $0x1c0] sm:$0xff]
                %2050 = vst [vmem:[%s1936 + $0x340] sm:$0xff] %v2049
                %v2051 = vld [vmem:[%s1935 + $0x1c8] sm:$0xff]
                %2052 = vst [vmem:[%s1936 + $0x348] sm:$0xff] %v2051
                %v2053 = vld [vmem:[%s1935 + $0x1d0] sm:$0xff]
                %2054 = vst [vmem:[%s1936 + $0x350] sm:$0xff] %v2053
                %v2055 = vld [vmem:[%s1935 + $0x1d8] sm:$0xff]
                %2056 = vst [vmem:[%s1936 + $0x358] sm:$0xff] %v2055
                %v2057 = vld [vmem:[%s1935 + $0x1e0] sm:$0xff]
                %2058 = vst [vmem:[%s1936 + $0x360] sm:$0xff] %v2057
                %v2059 = vld [vmem:[%s1935 + $0x1e8] sm:$0xff]
                %2060 = vst [vmem:[%s1936 + $0x368] sm:$0xff] %v2059
                %v2061 = vld [vmem:[%s1935 + $0x1f0] sm:$0xff]
                %2062 = vst [vmem:[%s1936 + $0x370] sm:$0xff] %v2061
                %v2063 = vld [vmem:[%s1935 + $0x1f8] sm:$0xff]
                %2064 = vst [vmem:[%s1936 + $0x378] sm:$0xff] %v2063
                %v2065 = vld [vmem:[%s1935 + $0x200] sm:$0xff]
                %2066 = vst [vmem:[%s1936 + $0x400] sm:$0xff] %v2065
                %v2067 = vld [vmem:[%s1935 + $0x208] sm:$0xff]
                %2068 = vst [vmem:[%s1936 + $0x408] sm:$0xff] %v2067
                %v2069 = vld [vmem:[%s1935 + $0x210] sm:$0xff]
                %2070 = vst [vmem:[%s1936 + $0x410] sm:$0xff] %v2069
                %v2071 = vld [vmem:[%s1935 + $0x218] sm:$0xff]
                %2072 = vst [vmem:[%s1936 + $0x418] sm:$0xff] %v2071
                %v2073 = vld [vmem:[%s1935 + $0x220] sm:$0xff]
                %2074 = vst [vmem:[%s1936 + $0x420] sm:$0xff] %v2073
                %v2075 = vld [vmem:[%s1935 + $0x228] sm:$0xff]
                %2076 = vst [vmem:[%s1936 + $0x428] sm:$0xff] %v2075
                %v2077 = vld [vmem:[%s1935 + $0x230] sm:$0xff]
                %2078 = vst [vmem:[%s1936 + $0x430] sm:$0xff] %v2077
                %v2079 = vld [vmem:[%s1935 + $0x238] sm:$0xff]
                %2080 = vst [vmem:[%s1936 + $0x438] sm:$0xff] %v2079
                %v2081 = vld [vmem:[%s1935 + $0x240] sm:$0xff]
                %2082 = vst [vmem:[%s1936 + $0x440] sm:$0xff] %v2081
                %v2083 = vld [vmem:[%s1935 + $0x248] sm:$0xff]
                %2084 = vst [vmem:[%s1936 + $0x448] sm:$0xff] %v2083
                %v2085 = vld [vmem:[%s1935 + $0x250] sm:$0xff]
                %2086 = vst [vmem:[%s1936 + $0x450] sm:$0xff] %v2085
                %v2087 = vld [vmem:[%s1935 + $0x258] sm:$0xff]
                %2088 = vst [vmem:[%s1936 + $0x458] sm:$0xff] %v2087
                %v2089 = vld [vmem:[%s1935 + $0x260] sm:$0xff]
                %2090 = vst [vmem:[%s1936 + $0x460] sm:$0xff] %v2089
                %v2091 = vld [vmem:[%s1935 + $0x268] sm:$0xff]
                %2092 = vst [vmem:[%s1936 + $0x468] sm:$0xff] %v2091
                %v2093 = vld [vmem:[%s1935 + $0x270] sm:$0xff]
                %2094 = vst [vmem:[%s1936 + $0x470] sm:$0xff] %v2093
                %v2095 = vld [vmem:[%s1935 + $0x278] sm:$0xff]
                %2096 = vst [vmem:[%s1936 + $0x478] sm:$0xff] %v2095
              $region53: #{skipgram_forward.3} parent=47 // loop_footer
                %s1934 = sadd.s32 1, %s1930
              $region54: #{skipgram_forward.3} parent=47 // loop_footer_branch
                %1929 = sbr.rel target = $region50
              $region55: #{skipgram_forward.3} parent=47 // loop_exit
                _
            $region48: #{skipgram_forward.3} parent=43 // pred_fallthru
              _
            // Predicated region
            $region56: #{skipgram_forward.3} parent=43 // pred_check
              _
            $region57: #{skipgram_forward.3} parent=43 // pred_check_branch
              %2098 = sbr.rel target = $region59
            $region58: #{skipgram_forward.3} parent=43 // pred_region
              _
            $region59: #{skipgram_forward.3} parent=43 // pred_fallthru
              _
          $region44: #{skipgram_forward.3} parent=39 // pred_fallthru
            _
          %2099 = vnop
        $region40: #{skipgram_forward.3} parent=35 // pred_fallthru
          _
      $region36: #{skipgram_forward.3} parent=5 // pred_fallthru
        _
      %p2100 = scmp.le.s32.totalorder 2, %s10
      // Predicated region
      $region60: #{skipgram_forward.3} parent=5 // pred_check
        %p2101 = pneg %p2100
      $region61: #{skipgram_forward.3} parent=5 // pred_check_branch
        %2103 = sbr.rel (%p2101) target = $region63
      $region62: #{skipgram_forward.3} parent=5 // pred_region
        %s2104 = ssub.s32 %s10, 2
        // Predicated region
        $region64: #{skipgram_forward.3} parent=62 // pred_check
          %p2105 = pneg %p157
        $region65: #{skipgram_forward.3} parent=62 // pred_check_branch
          %2107 = sbr.rel (%p2105) target = $region67
        $region66: #{skipgram_forward.3} parent=62 // pred_region
          %s2108 = sand.u32 %s142, 1
          %s2109 = sand.u32 %s142, 1
          %s2110 = smul.addr %s2109, 640
          %s2111 = scalar_lea.vmem [#allocation2], %s2110
        $region67: #{skipgram_forward.3} parent=62 // pred_fallthru
          _
      $region63: #{skipgram_forward.3} parent=5 // pred_fallthru
        _
    $region6: #{skipgram_forward.3} parent=1 // loop_footer
      %s14 = sadd.s32 1, %s10
    $region7: #{skipgram_forward.3} parent=1 // loop_footer_branch
      %9 = sbr.rel target = $region3
    $region8: #{skipgram_forward.3} parent=1 // loop_exit
      _

// kernel: skipgram_forward.2
$region0: #{skipgram_forward.2}
  #allocation0 [shape = 'u32[]', space=smem, size = 0x4, offset = 0x4, fixed_abs, tag = 'smem constant byte address 0x4 - core index']
  #allocation1 [shape = 'u32[72,128]{1,0:T(1,128)}', space=vmem, size = 0x9000, scoped, tag = 'internal scratch']
  #allocation2 [shape = 'f32[40,1]{1,0:T(8,128)}', space=vmem, size = 0x5000, scoped, tag = 'scratch operand']
  #allocation3 [shape = 'f32[40,1]{1,0:T(8,128)}', space=vmem, size = 0x5000, scoped, tag = 'scratch operand']
  %s0 = inlined_call_operand.vmem [shape: bf16[40,128], index: 0, kind: input, shape index: {}]
  %s1 = inlined_call_operand.vmem [shape: bf16[4096,128], index: 1, kind: input, shape index: {}]
  %s2 = inlined_call_operand.vmem [shape: f32[1,4096], index: 2, kind: input, shape index: {}]
  %s3 = inlined_call_operand.vmem [shape: f32[40,1], index: 3, kind: output, shape index: {}]
  %s4 = sld [smem:[#allocation0]]
  $region53: #{skipgram_forward.2} parent=0
    _
  %s6 = ssub.s32 1, %s4
  %s7 = scalar_select 0, %s6, %s4
  loop: start=0, step=1, limit=4
  $region2: #{skipgram_forward.2} parent=0 // loop_pre_header
    _
  $region3: #{skipgram_forward.2} parent=0 // loop_header
    %s9 = sphi 0, %s13
    %p10 = scmp.ge.s32.totalorder %s9, 4
    %s16 = sphi 0, %s28
    %s17 = sphi 0, %s24
    %s18 = sphi 0, %s16
    %s19 = sphi 0, %s17
    %s20 = sphi 0, %s18
    %s21 = sphi 0, %s19
    %s31 = sphi 0, %s33
    %s34 = sphi 0, %s31
    %s35 = sphi 0, %s34
    %s51 = sphi 0, %s35
    %s57 = sphi 0, %s59
    %s60 = sphi 0, %s57
    %s61 = sphi 0, %s60
    %s77 = sphi 0, %s61
    %s83 = sphi 0, %s85
    %s86 = sphi 0, %s83
    %s87 = sphi 0, %s86
    %s103 = sphi 0, %s87
    %s109 = sphi 0, %s111
    %s112 = sphi 0, %s109
    %s113 = sphi 0, %s112
    %s129 = sphi 0, %s113
  $region4: #{skipgram_forward.2} parent=0 // loop_header_branch
    %12 = sbr.rel (%p10) target = $region8
  $region5: #{skipgram_forward.2} parent=0 // loop_body
    %s14 = ssub.s32 %s9, 1
    %s15 = ssub.s32 %s9, 2
    %s22 = sadd.s32 1, %s17
    %p23 = scmp.ge.s32.totalorder %s22, 2
    %s24 = scalar_select %p23, 0, %s22
    %s25 = sadd.s32 1, %s16
    %s26 = scalar_select %p23, %s25, %s16
    %p27 = scmp.ge.s32.totalorder %s26, 1
    %s28 = scalar_select %p27, 0, %s26
    %s29 = ssub.s32 %s16, %s28
    %p30 = scmp.eq.s32.totalorder %s29, 0
    %s32 = sadd.s32 %s31, 1
    %s33 = scalar_select %p30, %s31, %s32
    %p36 = pneg %p30
    %p37 = scmp.eq.s32.totalorder %s9, 1
    %p38 = por %p36, %p37
    %p39 = scmp.ne.s32.totalorder %s31, %s34
    %p40 = scmp.eq.s32.totalorder %s9, 0
    %p41 = por %p39, %p40
    %p42 = scmp.ne.s32.totalorder %s31, %s34
    %p43 = scmp.eq.s32.totalorder %s14, 1
    %p44 = por %p42, %p43
    %p45 = scmp.ne.s32.totalorder %s34, %s35
    %p46 = scmp.eq.s32.totalorder %s14, 0
    %p47 = por %p45, %p46
    %p48 = scmp.ne.s32.totalorder %s34, %s35
    %p49 = scmp.eq.s32.totalorder %s15, 1
    %p50 = por %p48, %p49
    %p52 = scmp.ne.s32.totalorder %s35, %s51
    %p53 = scmp.eq.s32.totalorder %s15, 0
    %p54 = por %p52, %p53
    %s55 = ssub.s32 %s17, %s24
    %p56 = scmp.eq.s32.totalorder %s55, 0
    %s58 = sadd.s32 %s57, 1
    %s59 = scalar_select %p56, %s57, %s58
    %p62 = pneg %p56
    %p63 = scmp.eq.s32.totalorder %s9, 1
    %p64 = por %p62, %p63
    %p65 = scmp.ne.s32.totalorder %s57, %s60
    %p66 = scmp.eq.s32.totalorder %s9, 0
    %p67 = por %p65, %p66
    %p68 = scmp.ne.s32.totalorder %s57, %s60
    %p69 = scmp.eq.s32.totalorder %s14, 1
    %p70 = por %p68, %p69
    %p71 = scmp.ne.s32.totalorder %s60, %s61
    %p72 = scmp.eq.s32.totalorder %s14, 0
    %p73 = por %p71, %p72
    %p74 = scmp.ne.s32.totalorder %s60, %s61
    %p75 = scmp.eq.s32.totalorder %s15, 1
    %p76 = por %p74, %p75
    %p78 = scmp.ne.s32.totalorder %s61, %s77
    %p79 = scmp.eq.s32.totalorder %s15, 0
    %p80 = por %p78, %p79
    %s81 = ssub.s32 %s17, %s24
    %p82 = scmp.eq.s32.totalorder %s81, 0
    %s84 = sadd.s32 %s83, 1
    %s85 = scalar_select %p82, %s83, %s84
    %p88 = pneg %p82
    %p89 = scmp.eq.s32.totalorder %s9, 1
    %p90 = por %p88, %p89
    %p91 = scmp.ne.s32.totalorder %s83, %s86
    %p92 = scmp.eq.s32.totalorder %s9, 0
    %p93 = por %p91, %p92
    %p94 = scmp.ne.s32.totalorder %s83, %s86
    %p95 = scmp.eq.s32.totalorder %s14, 1
    %p96 = por %p94, %p95
    %p97 = scmp.ne.s32.totalorder %s86, %s87
    %p98 = scmp.eq.s32.totalorder %s14, 0
    %p99 = por %p97, %p98
    %p100 = scmp.ne.s32.totalorder %s86, %s87
    %p101 = scmp.eq.s32.totalorder %s15, 1
    %p102 = por %p100, %p101
    %p104 = scmp.ne.s32.totalorder %s87, %s103
    %p105 = scmp.eq.s32.totalorder %s15, 0
    %p106 = por %p104, %p105
    %s107 = ssub.s32 %s16, %s28
    %p108 = scmp.eq.s32.totalorder %s107, 0
    %s110 = sadd.s32 %s109, 1
    %s111 = scalar_select %p108, %s109, %s110
    %p114 = pneg %p108
    %p115 = scmp.eq.s32.totalorder %s9, 1
    %p116 = por %p114, %p115
    %p117 = scmp.ne.s32.totalorder %s109, %s112
    %p118 = scmp.eq.s32.totalorder %s9, 0
    %p119 = por %p117, %p118
    %p120 = scmp.ne.s32.totalorder %s109, %s112
    %p121 = scmp.eq.s32.totalorder %s14, 1
    %p122 = por %p120, %p121
    %p123 = scmp.ne.s32.totalorder %s112, %s113
    %p124 = scmp.eq.s32.totalorder %s14, 0
    %p125 = por %p123, %p124
    %p126 = scmp.ne.s32.totalorder %s112, %s113
    %p127 = scmp.eq.s32.totalorder %s15, 1
    %p128 = por %p126, %p127
    %p130 = scmp.ne.s32.totalorder %s113, %s129
    %p131 = scmp.eq.s32.totalorder %s15, 0
    %p132 = por %p130, %p131
    %p133 = scmp.le.s32.totalorder 1, %s9
    %p134 = scmp.lt.s32.totalorder %s9, 3
    %p135 = pnand %p133, %p134
    %p136 = pneg %p135
    // Predicated region
    $region9: #{skipgram_forward.2} parent=5 // pred_check
      _
    $region10: #{skipgram_forward.2} parent=5 // pred_check_branch
      %138 = sbr.rel (%p135) target = $region12
    $region11: #{skipgram_forward.2} parent=5 // pred_region
      %s139 = ssub.s32 %s9, 1
      // Predicated region
      $region13: #{skipgram_forward.2} parent=11 // pred_check
        %p140 = pneg %p47
      $region14: #{skipgram_forward.2} parent=11 // pred_check_branch
        %142 = sbr.rel (%p140) target = $region16
      $region15: #{skipgram_forward.2} parent=11 // pred_region
        %s143 = smul.u32 5, %s18
        %p144 = scmp.lt.s32.totalorder %s143, 4
        %s145 = scalar_select %p144, %s143, 4
        %s146 = smul.addr %s145, 4
        %s147 = scalar_lea.vmem %s0, %s146
        %s148 = smul.u32 5, %s18
      $region16: #{skipgram_forward.2} parent=11 // pred_fallthru
        _
    $region12: #{skipgram_forward.2} parent=5 // pred_fallthru
      _
    %p149 = scmp.lt.s32.totalorder %s9, 2
    // Predicated region
    $region17: #{skipgram_forward.2} parent=5 // pred_check
      %p150 = pneg %p149
    $region18: #{skipgram_forward.2} parent=5 // pred_check_branch
      %152 = sbr.rel (%p150) target = $region20
    $region19: #{skipgram_forward.2} parent=5 // pred_region
      // Predicated region
      $region21: #{skipgram_forward.2} parent=19 // pred_check
        %p153 = pneg %p67
      $region22: #{skipgram_forward.2} parent=19 // pred_check_branch
        %155 = sbr.rel (%p153) target = $region24
      $region23: #{skipgram_forward.2} parent=19 // pred_region
        %s156 = smul.u32 256, %s17
        %p157 = scmp.lt.s32.totalorder %s156, 511
        %s158 = scalar_select %p157, %s156, 511
        %s159 = smul.addr %s158, 4
        %s160 = scalar_lea.vmem %s1, %s159
        %s161 = smul.u32 256, %s17
      $region24: #{skipgram_forward.2} parent=19 // pred_fallthru
        _
      // Predicated region
      $region25: #{skipgram_forward.2} parent=19 // pred_check
        %p162 = pneg %p93
      $region26: #{skipgram_forward.2} parent=19 // pred_check_branch
        %164 = sbr.rel (%p162) target = $region28
      $region27: #{skipgram_forward.2} parent=19 // pred_region
        %s165 = smul.u32 16, %s17
        %p166 = scmp.lt.s32.totalorder %s165, 31
        %s167 = scalar_select %p166, %s165, 31
        %s168 = scalar_lea.vmem %s2, %s167
        %s169 = smul.u32 16, %s17
      $region28: #{skipgram_forward.2} parent=19 // pred_fallthru
        _
    $region20: #{skipgram_forward.2} parent=5 // pred_fallthru
      _
    %p170 = scmp.le.s32.totalorder 1, %s9
    %p171 = scmp.lt.s32.totalorder %s9, 3
    %p172 = pnand %p170, %p171
    %p173 = pneg %p172
    // Predicated region
    $region29: #{skipgram_forward.2} parent=5 // pred_check
      _
    $region30: #{skipgram_forward.2} parent=5 // pred_check_branch
      %175 = sbr.rel (%p172) target = $region32
    $region31: #{skipgram_forward.2} parent=5 // pred_region
      %s176 = ssub.s32 %s9, 1
      %s177 = smul.u32 5, %s18
      %p178 = scmp.lt.s32.totalorder %s177, 4
      %s179 = scalar_select %p178, %s177, 4
      %s180 = smul.addr %s179, 4
      %s181 = scalar_lea.vmem %s0, %s180
      %p182 = pneg %p47
      %p183 = pneg %p44
      %s184 = smul.u32 256, %s19
      %p185 = scmp.lt.s32.totalorder %s184, 511
      %s186 = scalar_select %p185, %s184, 511
      %s187 = smul.addr %s186, 4
      %s188 = scalar_lea.vmem %s1, %s187
      %p189 = pneg %p73
      %p190 = pneg %p70
      %s191 = smul.u32 16, %s19
      %p192 = scmp.lt.s32.totalorder %s191, 31
      %s193 = scalar_select %p192, %s191, 31
      %s194 = scalar_lea.vmem %s2, %s193
      %p195 = pneg %p99
      %p196 = pneg %p96
      %p197 = pneg %p125
      %p198 = pneg %p122
      %s199 = smul.u32 5, %s18
      %p200 = scmp.lt.s32.totalorder %s199, 4
      %s201 = scalar_select %p200, %s199, 4
      %s202 = smul.addr %s201, 8
      %s203 = scalar_lea.vmem %s3, %s202
      %s204 = smul.u32 5, %s18
      %p205 = scmp.lt.s32.totalorder %s204, 4
      %s206 = scalar_select %p205, %s204, 4
      %s207 = smul.addr %s206, 4
      %s208 = scalar_lea.vmem %s0, %s207
      %s209 = smul.u32 5, %s18
      %s210 = smul.u32 256, %s19
      %p211 = scmp.lt.s32.totalorder %s210, 511
      %s212 = scalar_select %p211, %s210, 511
      %s213 = smul.addr %s212, 4
      %s214 = scalar_lea.vmem %s1, %s213
      %s215 = smul.u32 256, %s19
      %s216 = smul.u32 16, %s19
      %p217 = scmp.lt.s32.totalorder %s216, 31
      %s218 = scalar_select %p217, %s216, 31
      %s219 = scalar_lea.vmem %s2, %s218
      %s220 = smul.u32 16, %s19
      %s221 = smul.u32 5, %s18
      %p222 = scmp.lt.s32.totalorder %s221, 4
      %s223 = scalar_select %p222, %s221, 4
      %s224 = smul.addr %s223, 8
      %s225 = scalar_lea.vmem %s3, %s224
      %s226 = smul.u32 5, %s18
      %p227 = scmp.eq.s32.totalorder %s19, 0
      // Predicated region
      $region33: #{skipgram_forward.2} parent=31 // pred_check
        %p228 = pneg %p227
      $region34: #{skipgram_forward.2} parent=31 // pred_check_branch
        %230 = sbr.rel (%p228) target = $region36
      $region35: #{skipgram_forward.2} parent=31 // pred_region
        %vm231 = vcmask 7168
        %232 = vst.msk [vmem:[#allocation2] sm:$0xff] %vm231, -inf
        %233 = vst.msk [vmem:[#allocation2 + $0x8] sm:$0xff] %vm231, -inf
        %234 = vst.msk [vmem:[#allocation2 + $0x10] sm:$0xff] %vm231, -inf
        %235 = vst.msk [vmem:[#allocation2 + $0x18] sm:$0xff] %vm231, -inf
        %236 = vst.msk [vmem:[#allocation2 + $0x20] sm:$0xff] %vm231, -inf
        %237 = vst.msk [vmem:[#allocation3] sm:$0xff] %vm231, 0.0
        %238 = vst.msk [vmem:[#allocation3 + $0x8] sm:$0xff] %vm231, 0.0
        %239 = vst.msk [vmem:[#allocation3 + $0x10] sm:$0xff] %vm231, 0.0
        %240 = vst.msk [vmem:[#allocation3 + $0x18] sm:$0xff] %vm231, 0.0
        %241 = vst.msk [vmem:[#allocation3 + $0x20] sm:$0xff] %vm231, 0.0
      $region36: #{skipgram_forward.2} parent=31 // pred_fallthru
        _
      %v242 = vld [vmem:[%s208] sm:$0xf]
      %v243 = vld [vmem:[%s208 + $0x4] sm:$0xf]
      %v244 = vld [vmem:[%s208 + $0x8] sm:$0xf]
      %v245 = vld [vmem:[%s208 + $0xc] sm:$0xf]
      %v246 = vld [vmem:[%s208 + $0x10] sm:$0xf]
      %v247 = vld [vmem:[%s214] sm:$0xf]
      %v248 = vld [vmem:[%s214 + $0x4] sm:$0xf]
      %v249 = vld [vmem:[%s214 + $0x8] sm:$0xf]
      %v250 = vld [vmem:[%s214 + $0xc] sm:$0xf]
      %v251 = vld [vmem:[%s214 + $0x10] sm:$0xf]
      %v252 = vld [vmem:[%s214 + $0x14] sm:$0xf]
      %v253 = vld [vmem:[%s214 + $0x18] sm:$0xf]
      %v254 = vld [vmem:[%s214 + $0x1c] sm:$0xf]
      %v255 = vld [vmem:[%s214 + $0x20] sm:$0xf]
      %v256 = vld [vmem:[%s214 + $0x24] sm:$0xf]
      %v257 = vld [vmem:[%s214 + $0x28] sm:$0xf]
      %v258 = vld [vmem:[%s214 + $0x2c] sm:$0xf]
      %v259 = vld [vmem:[%s214 + $0x30] sm:$0xf]
      %v260 = vld [vmem:[%s214 + $0x34] sm:$0xf]
      %v261 = vld [vmem:[%s214 + $0x38] sm:$0xf]
      %v262 = vld [vmem:[%s214 + $0x3c] sm:$0xf]
      %v263 = vld [vmem:[%s214 + $0x40] sm:$0xf]
      %v264 = vld [vmem:[%s214 + $0x44] sm:$0xf]
      %v265 = vld [vmem:[%s214 + $0x48] sm:$0xf]
      %v266 = vld [vmem:[%s214 + $0x4c] sm:$0xf]
      %v267 = vld [vmem:[%s214 + $0x50] sm:$0xf]
      %v268 = vld [vmem:[%s214 + $0x54] sm:$0xf]
      %v269 = vld [vmem:[%s214 + $0x58] sm:$0xf]
      %v270 = vld [vmem:[%s214 + $0x5c] sm:$0xf]
      %v271 = vld [vmem:[%s214 + $0x60] sm:$0xf]
      %v272 = vld [vmem:[%s214 + $0x64] sm:$0xf]
      %v273 = vld [vmem:[%s214 + $0x68] sm:$0xf]
      %v274 = vld [vmem:[%s214 + $0x6c] sm:$0xf]
      %v275 = vld [vmem:[%s214 + $0x70] sm:$0xf]
      %v276 = vld [vmem:[%s214 + $0x74] sm:$0xf]
      %v277 = vld [vmem:[%s214 + $0x78] sm:$0xf]
      %v278 = vld [vmem:[%s214 + $0x7c] sm:$0xf]
      %v279 = vld [vmem:[%s214 + $0x80] sm:$0xf]
      %v280 = vld [vmem:[%s214 + $0x84] sm:$0xf]
      %v281 = vld [vmem:[%s214 + $0x88] sm:$0xf]
      %v282 = vld [vmem:[%s214 + $0x8c] sm:$0xf]
      %v283 = vld [vmem:[%s214 + $0x90] sm:$0xf]
      %v284 = vld [vmem:[%s214 + $0x94] sm:$0xf]
      %v285 = vld [vmem:[%s214 + $0x98] sm:$0xf]
      %v286 = vld [vmem:[%s214 + $0x9c] sm:$0xf]
      %v287 = vld [vmem:[%s214 + $0xa0] sm:$0xf]
      %v288 = vld [vmem:[%s214 + $0xa4] sm:$0xf]
      %v289 = vld [vmem:[%s214 + $0xa8] sm:$0xf]
      %v290 = vld [vmem:[%s214 + $0xac] sm:$0xf]
      %v291 = vld [vmem:[%s214 + $0xb0] sm:$0xf]
      %v292 = vld [vmem:[%s214 + $0xb4] sm:$0xf]
      %v293 = vld [vmem:[%s214 + $0xb8] sm:$0xf]
      %v294 = vld [vmem:[%s214 + $0xbc] sm:$0xf]
      %v295 = vld [vmem:[%s214 + $0xc0] sm:$0xf]
      %v296 = vld [vmem:[%s214 + $0xc4] sm:$0xf]
      %v297 = vld [vmem:[%s214 + $0xc8] sm:$0xf]
      %v298 = vld [vmem:[%s214 + $0xcc] sm:$0xf]
      %v299 = vld [vmem:[%s214 + $0xd0] sm:$0xf]
      %v300 = vld [vmem:[%s214 + $0xd4] sm:$0xf]
      %v301 = vld [vmem:[%s214 + $0xd8] sm:$0xf]
      %v302 = vld [vmem:[%s214 + $0xdc] sm:$0xf]
      %v303 = vld [vmem:[%s214 + $0xe0] sm:$0xf]
      %v304 = vld [vmem:[%s214 + $0xe4] sm:$0xf]
      %v305 = vld [vmem:[%s214 + $0xe8] sm:$0xf]
      %v306 = vld [vmem:[%s214 + $0xec] sm:$0xf]
      %v307 = vld [vmem:[%s214 + $0xf0] sm:$0xf]
      %v308 = vld [vmem:[%s214 + $0xf4] sm:$0xf]
      %v309 = vld [vmem:[%s214 + $0xf8] sm:$0xf]
      %v310 = vld [vmem:[%s214 + $0xfc] sm:$0xf]
      %v311 = vld [vmem:[%s214 + $0x100] sm:$0xf]
      %v312 = vld [vmem:[%s214 + $0x104] sm:$0xf]
      %v313 = vld [vmem:[%s214 + $0x108] sm:$0xf]
      %v314 = vld [vmem:[%s214 + $0x10c] sm:$0xf]
      %v315 = vld [vmem:[%s214 + $0x110] sm:$0xf]
      %v316 = vld [vmem:[%s214 + $0x114] sm:$0xf]
      %v317 = vld [vmem:[%s214 + $0x118] sm:$0xf]
      %v318 = vld [vmem:[%s214 + $0x11c] sm:$0xf]
      %v319 = vld [vmem:[%s214 + $0x120] sm:$0xf]
      %v320 = vld [vmem:[%s214 + $0x124] sm:$0xf]
      %v321 = vld [vmem:[%s214 + $0x128] sm:$0xf]
      %v322 = vld [vmem:[%s214 + $0x12c] sm:$0xf]
      %v323 = vld [vmem:[%s214 + $0x130] sm:$0xf]
      %v324 = vld [vmem:[%s214 + $0x134] sm:$0xf]
      %v325 = vld [vmem:[%s214 + $0x138] sm:$0xf]
      %v326 = vld [vmem:[%s214 + $0x13c] sm:$0xf]
      %v327 = vld [vmem:[%s214 + $0x140] sm:$0xf]
      %v328 = vld [vmem:[%s214 + $0x144] sm:$0xf]
      %v329 = vld [vmem:[%s214 + $0x148] sm:$0xf]
      %v330 = vld [vmem:[%s214 + $0x14c] sm:$0xf]
      %v331 = vld [vmem:[%s214 + $0x150] sm:$0xf]
      %v332 = vld [vmem:[%s214 + $0x154] sm:$0xf]
      %v333 = vld [vmem:[%s214 + $0x158] sm:$0xf]
      %v334 = vld [vmem:[%s214 + $0x15c] sm:$0xf]
      %v335 = vld [vmem:[%s214 + $0x160] sm:$0xf]
      %v336 = vld [vmem:[%s214 + $0x164] sm:$0xf]
      %v337 = vld [vmem:[%s214 + $0x168] sm:$0xf]
      %v338 = vld [vmem:[%s214 + $0x16c] sm:$0xf]
      %v339 = vld [vmem:[%s214 + $0x170] sm:$0xf]
      %v340 = vld [vmem:[%s214 + $0x174] sm:$0xf]
      %v341 = vld [vmem:[%s214 + $0x178] sm:$0xf]
      %v342 = vld [vmem:[%s214 + $0x17c] sm:$0xf]
      %v343 = vld [vmem:[%s214 + $0x180] sm:$0xf]
      %v344 = vld [vmem:[%s214 + $0x184] sm:$0xf]
      %v345 = vld [vmem:[%s214 + $0x188] sm:$0xf]
      %v346 = vld [vmem:[%s214 + $0x18c] sm:$0xf]
      %v347 = vld [vmem:[%s214 + $0x190] sm:$0xf]
      %v348 = vld [vmem:[%s214 + $0x194] sm:$0xf]
      %v349 = vld [vmem:[%s214 + $0x198] sm:$0xf]
      %v350 = vld [vmem:[%s214 + $0x19c] sm:$0xf]
      %v351 = vld [vmem:[%s214 + $0x1a0] sm:$0xf]
      %v352 = vld [vmem:[%s214 + $0x1a4] sm:$0xf]
      %v353 = vld [vmem:[%s214 + $0x1a8] sm:$0xf]
      %v354 = vld [vmem:[%s214 + $0x1ac] sm:$0xf]
      %v355 = vld [vmem:[%s214 + $0x1b0] sm:$0xf]
      %v356 = vld [vmem:[%s214 + $0x1b4] sm:$0xf]
      %v357 = vld [vmem:[%s214 + $0x1b8] sm:$0xf]
      %v358 = vld [vmem:[%s214 + $0x1bc] sm:$0xf]
      %v359 = vld [vmem:[%s214 + $0x1c0] sm:$0xf]
      %v360 = vld [vmem:[%s214 + $0x1c4] sm:$0xf]
      %v361 = vld [vmem:[%s214 + $0x1c8] sm:$0xf]
      %v362 = vld [vmem:[%s214 + $0x1cc] sm:$0xf]
      %v363 = vld [vmem:[%s214 + $0x1d0] sm:$0xf]
      %v364 = vld [vmem:[%s214 + $0x1d4] sm:$0xf]
      %v365 = vld [vmem:[%s214 + $0x1d8] sm:$0xf]
      %v366 = vld [vmem:[%s214 + $0x1dc] sm:$0xf]
      %v367 = vld [vmem:[%s214 + $0x1e0] sm:$0xf]
      %v368 = vld [vmem:[%s214 + $0x1e4] sm:$0xf]
      %v369 = vld [vmem:[%s214 + $0x1e8] sm:$0xf]
      %v370 = vld [vmem:[%s214 + $0x1ec] sm:$0xf]
      %v371 = vld [vmem:[%s214 + $0x1f0] sm:$0xf]
      %v372 = vld [vmem:[%s214 + $0x1f4] sm:$0xf]
      %v373 = vld [vmem:[%s214 + $0x1f8] sm:$0xf]
      %v374 = vld [vmem:[%s214 + $0x1fc] sm:$0xf]
      %v375 = vld [vmem:[%s214 + $0x200] sm:$0xf]
      %v376 = vld [vmem:[%s214 + $0x204] sm:$0xf]
      %v377 = vld [vmem:[%s214 + $0x208] sm:$0xf]
      %v378 = vld [vmem:[%s214 + $0x20c] sm:$0xf]
      %v379 = vld [vmem:[%s214 + $0x210] sm:$0xf]
      %v380 = vld [vmem:[%s214 + $0x214] sm:$0xf]
      %v381 = vld [vmem:[%s214 + $0x218] sm:$0xf]
      %v382 = vld [vmem:[%s214 + $0x21c] sm:$0xf]
      %v383 = vld [vmem:[%s214 + $0x220] sm:$0xf]
      %v384 = vld [vmem:[%s214 + $0x224] sm:$0xf]
      %v385 = vld [vmem:[%s214 + $0x228] sm:$0xf]
      %v386 = vld [vmem:[%s214 + $0x22c] sm:$0xf]
      %v387 = vld [vmem:[%s214 + $0x230] sm:$0xf]
      %v388 = vld [vmem:[%s214 + $0x234] sm:$0xf]
      %v389 = vld [vmem:[%s214 + $0x238] sm:$0xf]
      %v390 = vld [vmem:[%s214 + $0x23c] sm:$0xf]
      %v391 = vld [vmem:[%s214 + $0x240] sm:$0xf]
      %v392 = vld [vmem:[%s214 + $0x244] sm:$0xf]
      %v393 = vld [vmem:[%s214 + $0x248] sm:$0xf]
      %v394 = vld [vmem:[%s214 + $0x24c] sm:$0xf]
      %v395 = vld [vmem:[%s214 + $0x250] sm:$0xf]
      %v396 = vld [vmem:[%s214 + $0x254] sm:$0xf]
      %v397 = vld [vmem:[%s214 + $0x258] sm:$0xf]
      %v398 = vld [vmem:[%s214 + $0x25c] sm:$0xf]
      %v399 = vld [vmem:[%s214 + $0x260] sm:$0xf]
      %v400 = vld [vmem:[%s214 + $0x264] sm:$0xf]
      %v401 = vld [vmem:[%s214 + $0x268] sm:$0xf]
      %v402 = vld [vmem:[%s214 + $0x26c] sm:$0xf]
      %v403 = vld [vmem:[%s214 + $0x270] sm:$0xf]
      %v404 = vld [vmem:[%s214 + $0x274] sm:$0xf]
      %v405 = vld [vmem:[%s214 + $0x278] sm:$0xf]
      %v406 = vld [vmem:[%s214 + $0x27c] sm:$0xf]
      %v407 = vld [vmem:[%s214 + $0x280] sm:$0xf]
      %v408 = vld [vmem:[%s214 + $0x284] sm:$0xf]
      %v409 = vld [vmem:[%s214 + $0x288] sm:$0xf]
      %v410 = vld [vmem:[%s214 + $0x28c] sm:$0xf]
      %v411 = vld [vmem:[%s214 + $0x290] sm:$0xf]
      %v412 = vld [vmem:[%s214 + $0x294] sm:$0xf]
      %v413 = vld [vmem:[%s214 + $0x298] sm:$0xf]
      %v414 = vld [vmem:[%s214 + $0x29c] sm:$0xf]
      %v415 = vld [vmem:[%s214 + $0x2a0] sm:$0xf]
      %v416 = vld [vmem:[%s214 + $0x2a4] sm:$0xf]
      %v417 = vld [vmem:[%s214 + $0x2a8] sm:$0xf]
      %v418 = vld [vmem:[%s214 + $0x2ac] sm:$0xf]
      %v419 = vld [vmem:[%s214 + $0x2b0] sm:$0xf]
      %v420 = vld [vmem:[%s214 + $0x2b4] sm:$0xf]
      %v421 = vld [vmem:[%s214 + $0x2b8] sm:$0xf]
      %v422 = vld [vmem:[%s214 + $0x2bc] sm:$0xf]
      %v423 = vld [vmem:[%s214 + $0x2c0] sm:$0xf]
      %v424 = vld [vmem:[%s214 + $0x2c4] sm:$0xf]
      %v425 = vld [vmem:[%s214 + $0x2c8] sm:$0xf]
      %v426 = vld [vmem:[%s214 + $0x2cc] sm:$0xf]
      %v427 = vld [vmem:[%s214 + $0x2d0] sm:$0xf]
      %v428 = vld [vmem:[%s214 + $0x2d4] sm:$0xf]
      %v429 = vld [vmem:[%s214 + $0x2d8] sm:$0xf]
      %v430 = vld [vmem:[%s214 + $0x2dc] sm:$0xf]
      %v431 = vld [vmem:[%s214 + $0x2e0] sm:$0xf]
      %v432 = vld [vmem:[%s214 + $0x2e4] sm:$0xf]
      %v433 = vld [vmem:[%s214 + $0x2e8] sm:$0xf]
      %v434 = vld [vmem:[%s214 + $0x2ec] sm:$0xf]
      %v435 = vld [vmem:[%s214 + $0x2f0] sm:$0xf]
      %v436 = vld [vmem:[%s214 + $0x2f4] sm:$0xf]
      %v437 = vld [vmem:[%s214 + $0x2f8] sm:$0xf]
      %v438 = vld [vmem:[%s214 + $0x2fc] sm:$0xf]
      %v439 = vld [vmem:[%s214 + $0x300] sm:$0xf]
      %v440 = vld [vmem:[%s214 + $0x304] sm:$0xf]
      %v441 = vld [vmem:[%s214 + $0x308] sm:$0xf]
      %v442 = vld [vmem:[%s214 + $0x30c] sm:$0xf]
      %v443 = vld [vmem:[%s214 + $0x310] sm:$0xf]
      %v444 = vld [vmem:[%s214 + $0x314] sm:$0xf]
      %v445 = vld [vmem:[%s214 + $0x318] sm:$0xf]
      %v446 = vld [vmem:[%s214 + $0x31c] sm:$0xf]
      %v447 = vld [vmem:[%s214 + $0x320] sm:$0xf]
      %v448 = vld [vmem:[%s214 + $0x324] sm:$0xf]
      %v449 = vld [vmem:[%s214 + $0x328] sm:$0xf]
      %v450 = vld [vmem:[%s214 + $0x32c] sm:$0xf]
      %v451 = vld [vmem:[%s214 + $0x330] sm:$0xf]
      %v452 = vld [vmem:[%s214 + $0x334] sm:$0xf]
      %v453 = vld [vmem:[%s214 + $0x338] sm:$0xf]
      %v454 = vld [vmem:[%s214 + $0x33c] sm:$0xf]
      %v455 = vld [vmem:[%s214 + $0x340] sm:$0xf]
      %v456 = vld [vmem:[%s214 + $0x344] sm:$0xf]
      %v457 = vld [vmem:[%s214 + $0x348] sm:$0xf]
      %v458 = vld [vmem:[%s214 + $0x34c] sm:$0xf]
      %v459 = vld [vmem:[%s214 + $0x350] sm:$0xf]
      %v460 = vld [vmem:[%s214 + $0x354] sm:$0xf]
      %v461 = vld [vmem:[%s214 + $0x358] sm:$0xf]
      %v462 = vld [vmem:[%s214 + $0x35c] sm:$0xf]
      %v463 = vld [vmem:[%s214 + $0x360] sm:$0xf]
      %v464 = vld [vmem:[%s214 + $0x364] sm:$0xf]
      %v465 = vld [vmem:[%s214 + $0x368] sm:$0xf]
      %v466 = vld [vmem:[%s214 + $0x36c] sm:$0xf]
      %v467 = vld [vmem:[%s214 + $0x370] sm:$0xf]
      %v468 = vld [vmem:[%s214 + $0x374] sm:$0xf]
      %v469 = vld [vmem:[%s214 + $0x378] sm:$0xf]
      %v470 = vld [vmem:[%s214 + $0x37c] sm:$0xf]
      %v471 = vld [vmem:[%s214 + $0x380] sm:$0xf]
      %v472 = vld [vmem:[%s214 + $0x384] sm:$0xf]
      %v473 = vld [vmem:[%s214 + $0x388] sm:$0xf]
      %v474 = vld [vmem:[%s214 + $0x38c] sm:$0xf]
      %v475 = vld [vmem:[%s214 + $0x390] sm:$0xf]
      %v476 = vld [vmem:[%s214 + $0x394] sm:$0xf]
      %v477 = vld [vmem:[%s214 + $0x398] sm:$0xf]
      %v478 = vld [vmem:[%s214 + $0x39c] sm:$0xf]
      %v479 = vld [vmem:[%s214 + $0x3a0] sm:$0xf]
      %v480 = vld [vmem:[%s214 + $0x3a4] sm:$0xf]
      %v481 = vld [vmem:[%s214 + $0x3a8] sm:$0xf]
      %v482 = vld [vmem:[%s214 + $0x3ac] sm:$0xf]
      %v483 = vld [vmem:[%s214 + $0x3b0] sm:$0xf]
      %v484 = vld [vmem:[%s214 + $0x3b4] sm:$0xf]
      %v485 = vld [vmem:[%s214 + $0x3b8] sm:$0xf]
      %v486 = vld [vmem:[%s214 + $0x3bc] sm:$0xf]
      %v487 = vld [vmem:[%s214 + $0x3c0] sm:$0xf]
      %v488 = vld [vmem:[%s214 + $0x3c4] sm:$0xf]
      %v489 = vld [vmem:[%s214 + $0x3c8] sm:$0xf]
      %v490 = vld [vmem:[%s214 + $0x3cc] sm:$0xf]
      %v491 = vld [vmem:[%s214 + $0x3d0] sm:$0xf]
      %v492 = vld [vmem:[%s214 + $0x3d4] sm:$0xf]
      %v493 = vld [vmem:[%s214 + $0x3d8] sm:$0xf]
      %v494 = vld [vmem:[%s214 + $0x3dc] sm:$0xf]
      %v495 = vld [vmem:[%s214 + $0x3e0] sm:$0xf]
      %v496 = vld [vmem:[%s214 + $0x3e4] sm:$0xf]
      %v497 = vld [vmem:[%s214 + $0x3e8] sm:$0xf]
      %v498 = vld [vmem:[%s214 + $0x3ec] sm:$0xf]
      %v499 = vld [vmem:[%s214 + $0x3f0] sm:$0xf]
      %v500 = vld [vmem:[%s214 + $0x3f4] sm:$0xf]
      %v501 = vld [vmem:[%s214 + $0x3f8] sm:$0xf]
      %v502 = vld [vmem:[%s214 + $0x3fc] sm:$0xf]
      %v503 = vld [vmem:[%s219] sm:$0xff]
      %v504 = vld [vmem:[%s219 + $0x8] sm:$0xff]
      %v507 = vperm.slane %v503, 0
      %v508 = vperm.slane %v503, 1
      %v509 = vperm.slane %v503, 2
      %v510 = vperm.slane %v503, 3
      %v511 = vperm.slane %v503, 4
      %v512 = vperm.slane %v503, 5
      %v513 = vperm.slane %v503, 6
      %v514 = vperm.slane %v503, 7
      %v515 = vperm.slane %v504, 0
      %v516 = vperm.slane %v504, 1
      %v517 = vperm.slane %v504, 2
      %v518 = vperm.slane %v504, 3
      %v519 = vperm.slane %v504, 4
      %v520 = vperm.slane %v504, 5
      %v521 = vperm.slane %v504, 6
      %v522 = vperm.slane %v504, 7
      %v544 = vunpack.c.l.b16 %v242
      %v545 = vunpack.c.l.b16 %v243
      %v546 = vunpack.c.l.b16 %v244
      %v547 = vunpack.c.l.b16 %v245
      %v548 = vunpack.c.l.b16 %v246
      %v549 = vpack.c.b16 %v545, %v544
      %v550 = vpack.c.b16 %v547, %v546
      %v551 = vpack.c.b16 %v548, %v548
      %v811 = vunpack.c.l.b16 %v247
      %v812 = vunpack.c.l.b16 %v248
      %v813 = vunpack.c.l.b16 %v249
      %v814 = vunpack.c.l.b16 %v250
      %v815 = vunpack.c.l.b16 %v251
      %v816 = vunpack.c.l.b16 %v252
      %v817 = vunpack.c.l.b16 %v253
      %v818 = vunpack.c.l.b16 %v254
      %v819 = vunpack.c.l.b16 %v255
      %v820 = vunpack.c.l.b16 %v256
      %v821 = vunpack.c.l.b16 %v257
      %v822 = vunpack.c.l.b16 %v258
      %v823 = vunpack.c.l.b16 %v259
      %v824 = vunpack.c.l.b16 %v260
      %v825 = vunpack.c.l.b16 %v261
      %v826 = vunpack.c.l.b16 %v262
      %v827 = vunpack.c.l.b16 %v263
      %v828 = vunpack.c.l.b16 %v264
      %v829 = vunpack.c.l.b16 %v265
      %v830 = vunpack.c.l.b16 %v266
      %v831 = vunpack.c.l.b16 %v267
      %v832 = vunpack.c.l.b16 %v268
      %v833 = vunpack.c.l.b16 %v269
      %v834 = vunpack.c.l.b16 %v270
      %v835 = vunpack.c.l.b16 %v271
      %v836 = vunpack.c.l.b16 %v272
      %v837 = vunpack.c.l.b16 %v273
      %v838 = vunpack.c.l.b16 %v274
      %v839 = vunpack.c.l.b16 %v275
      %v840 = vunpack.c.l.b16 %v276
      %v841 = vunpack.c.l.b16 %v277
      %v842 = vunpack.c.l.b16 %v278
      %v843 = vunpack.c.l.b16 %v279
      %v844 = vunpack.c.l.b16 %v280
      %v845 = vunpack.c.l.b16 %v281
      %v846 = vunpack.c.l.b16 %v282
      %v847 = vunpack.c.l.b16 %v283
      %v848 = vunpack.c.l.b16 %v284
      %v849 = vunpack.c.l.b16 %v285
      %v850 = vunpack.c.l.b16 %v286
      %v851 = vunpack.c.l.b16 %v287
      %v852 = vunpack.c.l.b16 %v288
      %v853 = vunpack.c.l.b16 %v289
      %v854 = vunpack.c.l.b16 %v290
      %v855 = vunpack.c.l.b16 %v291
      %v856 = vunpack.c.l.b16 %v292
      %v857 = vunpack.c.l.b16 %v293
      %v858 = vunpack.c.l.b16 %v294
      %v859 = vunpack.c.l.b16 %v295
      %v860 = vunpack.c.l.b16 %v296
      %v861 = vunpack.c.l.b16 %v297
      %v862 = vunpack.c.l.b16 %v298
      %v863 = vunpack.c.l.b16 %v299
      %v864 = vunpack.c.l.b16 %v300
      %v865 = vunpack.c.l.b16 %v301
      %v866 = vunpack.c.l.b16 %v302
      %v867 = vunpack.c.l.b16 %v303
      %v868 = vunpack.c.l.b16 %v304
      %v869 = vunpack.c.l.b16 %v305
      %v870 = vunpack.c.l.b16 %v306
      %v871 = vunpack.c.l.b16 %v307
      %v872 = vunpack.c.l.b16 %v308
      %v873 = vunpack.c.l.b16 %v309
      %v874 = vunpack.c.l.b16 %v310
      %v875 = vunpack.c.l.b16 %v311
      %v876 = vunpack.c.l.b16 %v312
      %v877 = vunpack.c.l.b16 %v313
      %v878 = vunpack.c.l.b16 %v314
      %v879 = vunpack.c.l.b16 %v315
      %v880 = vunpack.c.l.b16 %v316
      %v881 = vunpack.c.l.b16 %v317
      %v882 = vunpack.c.l.b16 %v318
      %v883 = vunpack.c.l.b16 %v319
      %v884 = vunpack.c.l.b16 %v320
      %v885 = vunpack.c.l.b16 %v321
      %v886 = vunpack.c.l.b16 %v322
      %v887 = vunpack.c.l.b16 %v323
      %v888 = vunpack.c.l.b16 %v324
      %v889 = vunpack.c.l.b16 %v325
      %v890 = vunpack.c.l.b16 %v326
      %v891 = vunpack.c.l.b16 %v327
      %v892 = vunpack.c.l.b16 %v328
      %v893 = vunpack.c.l.b16 %v329
      %v894 = vunpack.c.l.b16 %v330
      %v895 = vunpack.c.l.b16 %v331
      %v896 = vunpack.c.l.b16 %v332
      %v897 = vunpack.c.l.b16 %v333
      %v898 = vunpack.c.l.b16 %v334
      %v899 = vunpack.c.l.b16 %v335
      %v900 = vunpack.c.l.b16 %v336
      %v901 = vunpack.c.l.b16 %v337
      %v902 = vunpack.c.l.b16 %v338
      %v903 = vunpack.c.l.b16 %v339
      %v904 = vunpack.c.l.b16 %v340
      %v905 = vunpack.c.l.b16 %v341
      %v906 = vunpack.c.l.b16 %v342
      %v907 = vunpack.c.l.b16 %v343
      %v908 = vunpack.c.l.b16 %v344
      %v909 = vunpack.c.l.b16 %v345
      %v910 = vunpack.c.l.b16 %v346
      %v911 = vunpack.c.l.b16 %v347
      %v912 = vunpack.c.l.b16 %v348
      %v913 = vunpack.c.l.b16 %v349
      %v914 = vunpack.c.l.b16 %v350
      %v915 = vunpack.c.l.b16 %v351
      %v916 = vunpack.c.l.b16 %v352
      %v917 = vunpack.c.l.b16 %v353
      %v918 = vunpack.c.l.b16 %v354
      %v919 = vunpack.c.l.b16 %v355
      %v920 = vunpack.c.l.b16 %v356
      %v921 = vunpack.c.l.b16 %v357
      %v922 = vunpack.c.l.b16 %v358
      %v923 = vunpack.c.l.b16 %v359
      %v924 = vunpack.c.l.b16 %v360
      %v925 = vunpack.c.l.b16 %v361
      %v926 = vunpack.c.l.b16 %v362
      %v927 = vunpack.c.l.b16 %v363
      %v928 = vunpack.c.l.b16 %v364
      %v929 = vunpack.c.l.b16 %v365
      %v930 = vunpack.c.l.b16 %v366
      %v931 = vunpack.c.l.b16 %v367
      %v932 = vunpack.c.l.b16 %v368
      %v933 = vunpack.c.l.b16 %v369
      %v934 = vunpack.c.l.b16 %v370
      %v935 = vunpack.c.l.b16 %v371
      %v936 = vunpack.c.l.b16 %v372
      %v937 = vunpack.c.l.b16 %v373
      %v938 = vunpack.c.l.b16 %v374
      %v939 = vunpack.c.l.b16 %v375
      %v940 = vunpack.c.l.b16 %v376
      %v941 = vunpack.c.l.b16 %v377
      %v942 = vunpack.c.l.b16 %v378
      %v943 = vunpack.c.l.b16 %v379
      %v944 = vunpack.c.l.b16 %v380
      %v945 = vunpack.c.l.b16 %v381
      %v946 = vunpack.c.l.b16 %v382
      %v947 = vunpack.c.l.b16 %v383
      %v948 = vunpack.c.l.b16 %v384
      %v949 = vunpack.c.l.b16 %v385
      %v950 = vunpack.c.l.b16 %v386
      %v951 = vunpack.c.l.b16 %v387
      %v952 = vunpack.c.l.b16 %v388
      %v953 = vunpack.c.l.b16 %v389
      %v954 = vunpack.c.l.b16 %v390
      %v955 = vunpack.c.l.b16 %v391
      %v956 = vunpack.c.l.b16 %v392
      %v957 = vunpack.c.l.b16 %v393
      %v958 = vunpack.c.l.b16 %v394
      %v959 = vunpack.c.l.b16 %v395
      %v960 = vunpack.c.l.b16 %v396
      %v961 = vunpack.c.l.b16 %v397
      %v962 = vunpack.c.l.b16 %v398
      %v963 = vunpack.c.l.b16 %v399
      %v964 = vunpack.c.l.b16 %v400
      %v965 = vunpack.c.l.b16 %v401
      %v966 = vunpack.c.l.b16 %v402
      %v967 = vunpack.c.l.b16 %v403
      %v968 = vunpack.c.l.b16 %v404
      %v969 = vunpack.c.l.b16 %v405
      %v970 = vunpack.c.l.b16 %v406
      %v971 = vunpack.c.l.b16 %v407
      %v972 = vunpack.c.l.b16 %v408
      %v973 = vunpack.c.l.b16 %v409
      %v974 = vunpack.c.l.b16 %v410
      %v975 = vunpack.c.l.b16 %v411
      %v976 = vunpack.c.l.b16 %v412
      %v977 = vunpack.c.l.b16 %v413
      %v978 = vunpack.c.l.b16 %v414
      %v979 = vunpack.c.l.b16 %v415
      %v980 = vunpack.c.l.b16 %v416
      %v981 = vunpack.c.l.b16 %v417
      %v982 = vunpack.c.l.b16 %v418
      %v983 = vunpack.c.l.b16 %v419
      %v984 = vunpack.c.l.b16 %v420
      %v985 = vunpack.c.l.b16 %v421
      %v986 = vunpack.c.l.b16 %v422
      %v987 = vunpack.c.l.b16 %v423
      %v988 = vunpack.c.l.b16 %v424
      %v989 = vunpack.c.l.b16 %v425
      %v990 = vunpack.c.l.b16 %v426
      %v991 = vunpack.c.l.b16 %v427
      %v992 = vunpack.c.l.b16 %v428
      %v993 = vunpack.c.l.b16 %v429
      %v994 = vunpack.c.l.b16 %v430
      %v995 = vunpack.c.l.b16 %v431
      %v996 = vunpack.c.l.b16 %v432
      %v997 = vunpack.c.l.b16 %v433
      %v998 = vunpack.c.l.b16 %v434
      %v999 = vunpack.c.l.b16 %v435
      %v1000 = vunpack.c.l.b16 %v436
      %v1001 = vunpack.c.l.b16 %v437
      %v1002 = vunpack.c.l.b16 %v438
      %v1003 = vunpack.c.l.b16 %v439
      %v1004 = vunpack.c.l.b16 %v440
      %v1005 = vunpack.c.l.b16 %v441
      %v1006 = vunpack.c.l.b16 %v442
      %v1007 = vunpack.c.l.b16 %v443
      %v1008 = vunpack.c.l.b16 %v444
      %v1009 = vunpack.c.l.b16 %v445
      %v1010 = vunpack.c.l.b16 %v446
      %v1011 = vunpack.c.l.b16 %v447
      %v1012 = vunpack.c.l.b16 %v448
      %v1013 = vunpack.c.l.b16 %v449
      %v1014 = vunpack.c.l.b16 %v450
      %v1015 = vunpack.c.l.b16 %v451
      %v1016 = vunpack.c.l.b16 %v452
      %v1017 = vunpack.c.l.b16 %v453
      %v1018 = vunpack.c.l.b16 %v454
      %v1019 = vunpack.c.l.b16 %v455
      %v1020 = vunpack.c.l.b16 %v456
      %v1021 = vunpack.c.l.b16 %v457
      %v1022 = vunpack.c.l.b16 %v458
      %v1023 = vunpack.c.l.b16 %v459
      %v1024 = vunpack.c.l.b16 %v460
      %v1025 = vunpack.c.l.b16 %v461
      %v1026 = vunpack.c.l.b16 %v462
      %v1027 = vunpack.c.l.b16 %v463
      %v1028 = vunpack.c.l.b16 %v464
      %v1029 = vunpack.c.l.b16 %v465
      %v1030 = vunpack.c.l.b16 %v466
      %v1031 = vunpack.c.l.b16 %v467
      %v1032 = vunpack.c.l.b16 %v468
      %v1033 = vunpack.c.l.b16 %v469
      %v1034 = vunpack.c.l.b16 %v470
      %v1035 = vunpack.c.l.b16 %v471
      %v1036 = vunpack.c.l.b16 %v472
      %v1037 = vunpack.c.l.b16 %v473
      %v1038 = vunpack.c.l.b16 %v474
      %v1039 = vunpack.c.l.b16 %v475
      %v1040 = vunpack.c.l.b16 %v476
      %v1041 = vunpack.c.l.b16 %v477
      %v1042 = vunpack.c.l.b16 %v478
      %v1043 = vunpack.c.l.b16 %v479
      %v1044 = vunpack.c.l.b16 %v480
      %v1045 = vunpack.c.l.b16 %v481
      %v1046 = vunpack.c.l.b16 %v482
      %v1047 = vunpack.c.l.b16 %v483
      %v1048 = vunpack.c.l.b16 %v484
      %v1049 = vunpack.c.l.b16 %v485
      %v1050 = vunpack.c.l.b16 %v486
      %v1051 = vunpack.c.l.b16 %v487
      %v1052 = vunpack.c.l.b16 %v488
      %v1053 = vunpack.c.l.b16 %v489
      %v1054 = vunpack.c.l.b16 %v490
      %v1055 = vunpack.c.l.b16 %v491
      %v1056 = vunpack.c.l.b16 %v492
      %v1057 = vunpack.c.l.b16 %v493
      %v1058 = vunpack.c.l.b16 %v494
      %v1059 = vunpack.c.l.b16 %v495
      %v1060 = vunpack.c.l.b16 %v496
      %v1061 = vunpack.c.l.b16 %v497
      %v1062 = vunpack.c.l.b16 %v498
      %v1063 = vunpack.c.l.b16 %v499
      %v1064 = vunpack.c.l.b16 %v500
      %v1065 = vunpack.c.l.b16 %v501
      %v1066 = vunpack.c.l.b16 %v502
      %v1067 = vpack.c.b16 %v812, %v811
      %v1068 = vpack.c.b16 %v814, %v813
      %v1069 = vpack.c.b16 %v816, %v815
      %v1070 = vpack.c.b16 %v818, %v817
      %v1071 = vpack.c.b16 %v820, %v819
      %v1072 = vpack.c.b16 %v822, %v821
      %v1073 = vpack.c.b16 %v824, %v823
      %v1074 = vpack.c.b16 %v826, %v825
      %v1075 = vpack.c.b16 %v828, %v827
      %v1076 = vpack.c.b16 %v830, %v829
      %v1077 = vpack.c.b16 %v832, %v831
      %v1078 = vpack.c.b16 %v834, %v833
      %v1079 = vpack.c.b16 %v836, %v835
      %v1080 = vpack.c.b16 %v838, %v837
      %v1081 = vpack.c.b16 %v840, %v839
      %v1082 = vpack.c.b16 %v842, %v841
      %v1083 = vpack.c.b16 %v844, %v843
      %v1084 = vpack.c.b16 %v846, %v845
      %v1085 = vpack.c.b16 %v848, %v847
      %v1086 = vpack.c.b16 %v850, %v849
      %v1087 = vpack.c.b16 %v852, %v851
      %v1088 = vpack.c.b16 %v854, %v853
      %v1089 = vpack.c.b16 %v856, %v855
      %v1090 = vpack.c.b16 %v858, %v857
      %v1091 = vpack.c.b16 %v860, %v859
      %v1092 = vpack.c.b16 %v862, %v861
      %v1093 = vpack.c.b16 %v864, %v863
      %v1094 = vpack.c.b16 %v866, %v865
      %v1095 = vpack.c.b16 %v868, %v867
      %v1096 = vpack.c.b16 %v870, %v869
      %v1097 = vpack.c.b16 %v872, %v871
      %v1098 = vpack.c.b16 %v874, %v873
      %v1099 = vpack.c.b16 %v876, %v875
      %v1100 = vpack.c.b16 %v878, %v877
      %v1101 = vpack.c.b16 %v880, %v879
      %v1102 = vpack.c.b16 %v882, %v881
      %v1103 = vpack.c.b16 %v884, %v883
      %v1104 = vpack.c.b16 %v886, %v885
      %v1105 = vpack.c.b16 %v888, %v887
      %v1106 = vpack.c.b16 %v890, %v889
      %v1107 = vpack.c.b16 %v892, %v891
      %v1108 = vpack.c.b16 %v894, %v893
      %v1109 = vpack.c.b16 %v896, %v895
      %v1110 = vpack.c.b16 %v898, %v897
      %v1111 = vpack.c.b16 %v900, %v899
      %v1112 = vpack.c.b16 %v902, %v901
      %v1113 = vpack.c.b16 %v904, %v903
      %v1114 = vpack.c.b16 %v906, %v905
      %v1115 = vpack.c.b16 %v908, %v907
      %v1116 = vpack.c.b16 %v910, %v909
      %v1117 = vpack.c.b16 %v912, %v911
      %v1118 = vpack.c.b16 %v914, %v913
      %v1119 = vpack.c.b16 %v916, %v915
      %v1120 = vpack.c.b16 %v918, %v917
      %v1121 = vpack.c.b16 %v920, %v919
      %v1122 = vpack.c.b16 %v922, %v921
      %v1123 = vpack.c.b16 %v924, %v923
      %v1124 = vpack.c.b16 %v926, %v925
      %v1125 = vpack.c.b16 %v928, %v927
      %v1126 = vpack.c.b16 %v930, %v929
      %v1127 = vpack.c.b16 %v932, %v931
      %v1128 = vpack.c.b16 %v934, %v933
      %v1129 = vpack.c.b16 %v936, %v935
      %v1130 = vpack.c.b16 %v938, %v937
      %v1131 = vpack.c.b16 %v940, %v939
      %v1132 = vpack.c.b16 %v942, %v941
      %v1133 = vpack.c.b16 %v944, %v943
      %v1134 = vpack.c.b16 %v946, %v945
      %v1135 = vpack.c.b16 %v948, %v947
      %v1136 = vpack.c.b16 %v950, %v949
      %v1137 = vpack.c.b16 %v952, %v951
      %v1138 = vpack.c.b16 %v954, %v953
      %v1139 = vpack.c.b16 %v956, %v955
      %v1140 = vpack.c.b16 %v958, %v957
      %v1141 = vpack.c.b16 %v960, %v959
      %v1142 = vpack.c.b16 %v962, %v961
      %v1143 = vpack.c.b16 %v964, %v963
      %v1144 = vpack.c.b16 %v966, %v965
      %v1145 = vpack.c.b16 %v968, %v967
      %v1146 = vpack.c.b16 %v970, %v969
      %v1147 = vpack.c.b16 %v972, %v971
      %v1148 = vpack.c.b16 %v974, %v973
      %v1149 = vpack.c.b16 %v976, %v975
      %v1150 = vpack.c.b16 %v978, %v977
      %v1151 = vpack.c.b16 %v980, %v979
      %v1152 = vpack.c.b16 %v982, %v981
      %v1153 = vpack.c.b16 %v984, %v983
      %v1154 = vpack.c.b16 %v986, %v985
      %v1155 = vpack.c.b16 %v988, %v987
      %v1156 = vpack.c.b16 %v990, %v989
      %v1157 = vpack.c.b16 %v992, %v991
      %v1158 = vpack.c.b16 %v994, %v993
      %v1159 = vpack.c.b16 %v996, %v995
      %v1160 = vpack.c.b16 %v998, %v997
      %v1161 = vpack.c.b16 %v1000, %v999
      %v1162 = vpack.c.b16 %v1002, %v1001
      %v1163 = vpack.c.b16 %v1004, %v1003
      %v1164 = vpack.c.b16 %v1006, %v1005
      %v1165 = vpack.c.b16 %v1008, %v1007
      %v1166 = vpack.c.b16 %v1010, %v1009
      %v1167 = vpack.c.b16 %v1012, %v1011
      %v1168 = vpack.c.b16 %v1014, %v1013
      %v1169 = vpack.c.b16 %v1016, %v1015
      %v1170 = vpack.c.b16 %v1018, %v1017
      %v1171 = vpack.c.b16 %v1020, %v1019
      %v1172 = vpack.c.b16 %v1022, %v1021
      %v1173 = vpack.c.b16 %v1024, %v1023
      %v1174 = vpack.c.b16 %v1026, %v1025
      %v1175 = vpack.c.b16 %v1028, %v1027
      %v1176 = vpack.c.b16 %v1030, %v1029
      %v1177 = vpack.c.b16 %v1032, %v1031
      %v1178 = vpack.c.b16 %v1034, %v1033
      %v1179 = vpack.c.b16 %v1036, %v1035
      %v1180 = vpack.c.b16 %v1038, %v1037
      %v1181 = vpack.c.b16 %v1040, %v1039
      %v1182 = vpack.c.b16 %v1042, %v1041
      %v1183 = vpack.c.b16 %v1044, %v1043
      %v1184 = vpack.c.b16 %v1046, %v1045
      %v1185 = vpack.c.b16 %v1048, %v1047
      %v1186 = vpack.c.b16 %v1050, %v1049
      %v1187 = vpack.c.b16 %v1052, %v1051
      %v1188 = vpack.c.b16 %v1054, %v1053
      %v1189 = vpack.c.b16 %v1056, %v1055
      %v1190 = vpack.c.b16 %v1058, %v1057
      %v1191 = vpack.c.b16 %v1060, %v1059
      %v1192 = vpack.c.b16 %v1062, %v1061
      %v1193 = vpack.c.b16 %v1064, %v1063
      %v1194 = vpack.c.b16 %v1066, %v1065
      %1323 = vmatpush.bf16.xpose.msra.mxu0 %v1074
      %1324 = vmatpush.bf16.xpose.msra.mxu0 %v1073
      %1325 = vmatpush.bf16.xpose.msra.mxu0 %v1072
      %1326 = vmatpush.bf16.xpose.msra.mxu0 %v1071
      %1327 = vmatpush.bf16.xpose.msra.mxu0 %v1070
      %1328 = vmatpush.bf16.xpose.msra.mxu0 %v1069
      %1329 = vmatpush.bf16.xpose.msra.mxu0 %v1068
      %1330 = vmatpush.bf16.xpose.msra.mxu0 %v1067
      %1331 = vmatmul.bf16.gmra.mxu0 %v549
      %v1332 = vpop.f32.mrf.mxu0
      %v1333 = vadd.f32 %v507, %v1332
      %v1334 = vpop.f32.mrf.mxu0
      %v1335 = vadd.f32 %v507, %v1334
      %1336 = vmatmul.bf16.gmra.mxu0 %v550
      %v1337 = vpop.f32.mrf.mxu0
      %v1338 = vadd.f32 %v507, %v1337
      %v1339 = vpop.f32.mrf.mxu0
      %v1340 = vadd.f32 %v507, %v1339
      %1341 = vmatmul.bf16.gmra.mxu0 %v551
      %v1342 = vpop.f32.mrf.mxu0
      %v1343 = vadd.f32 %v507, %v1342
      %v1344 = vpop.f32.mrf.mxu0
      %1345 = vdwg.mxu0
      %1346 = vmatpush.bf16.xpose.msra.mxu0 %v1082
      %1347 = vmatpush.bf16.xpose.msra.mxu0 %v1081
      %1348 = vmatpush.bf16.xpose.msra.mxu0 %v1080
      %1349 = vmatpush.bf16.xpose.msra.mxu0 %v1079
      %1350 = vmatpush.bf16.xpose.msra.mxu0 %v1078
      %1351 = vmatpush.bf16.xpose.msra.mxu0 %v1077
      %1352 = vmatpush.bf16.xpose.msra.mxu0 %v1076
      %1353 = vmatpush.bf16.xpose.msra.mxu0 %v1075
      %1354 = vmatmul.bf16.gmra.mxu0 %v549
      %v1355 = vpop.f32.mrf.mxu0
      %v1356 = vadd.f32 %v508, %v1355
      %v1357 = vpop.f32.mrf.mxu0
      %v1358 = vadd.f32 %v508, %v1357
      %1359 = vmatmul.bf16.gmra.mxu0 %v550
      %v1360 = vpop.f32.mrf.mxu0
      %v1361 = vadd.f32 %v508, %v1360
      %v1362 = vpop.f32.mrf.mxu0
      %v1363 = vadd.f32 %v508, %v1362
      %1364 = vmatmul.bf16.gmra.mxu0 %v551
      %v1365 = vpop.f32.mrf.mxu0
      %v1366 = vadd.f32 %v508, %v1365
      %v1367 = vpop.f32.mrf.mxu0
      %1368 = vdwg.mxu0
      %1369 = vmatpush.bf16.xpose.msra.mxu0 %v1090
      %1370 = vmatpush.bf16.xpose.msra.mxu0 %v1089
      %1371 = vmatpush.bf16.xpose.msra.mxu0 %v1088
      %1372 = vmatpush.bf16.xpose.msra.mxu0 %v1087
      %1373 = vmatpush.bf16.xpose.msra.mxu0 %v1086
      %1374 = vmatpush.bf16.xpose.msra.mxu0 %v1085
      %1375 = vmatpush.bf16.xpose.msra.mxu0 %v1084
      %1376 = vmatpush.bf16.xpose.msra.mxu0 %v1083
      %1377 = vmatmul.bf16.gmra.mxu0 %v549
      %v1378 = vpop.f32.mrf.mxu0
      %v1379 = vadd.f32 %v509, %v1378
      %v1380 = vpop.f32.mrf.mxu0
      %v1381 = vadd.f32 %v509, %v1380
      %1382 = vmatmul.bf16.gmra.mxu0 %v550
      %v1383 = vpop.f32.mrf.mxu0
      %v1384 = vadd.f32 %v509, %v1383
      %v1385 = vpop.f32.mrf.mxu0
      %v1386 = vadd.f32 %v509, %v1385
      %1387 = vmatmul.bf16.gmra.mxu0 %v551
      %v1388 = vpop.f32.mrf.mxu0
      %v1389 = vadd.f32 %v509, %v1388
      %v1390 = vpop.f32.mrf.mxu0
      %1391 = vdwg.mxu0
      %1392 = vmatpush.bf16.xpose.msra.mxu0 %v1098
      %1393 = vmatpush.bf16.xpose.msra.mxu0 %v1097
      %1394 = vmatpush.bf16.xpose.msra.mxu0 %v1096
      %1395 = vmatpush.bf16.xpose.msra.mxu0 %v1095
      %1396 = vmatpush.bf16.xpose.msra.mxu0 %v1094
      %1397 = vmatpush.bf16.xpose.msra.mxu0 %v1093
      %1398 = vmatpush.bf16.xpose.msra.mxu0 %v1092
      %1399 = vmatpush.bf16.xpose.msra.mxu0 %v1091
      %1400 = vmatmul.bf16.gmra.mxu0 %v549
      %v1401 = vpop.f32.mrf.mxu0
      %v1402 = vadd.f32 %v510, %v1401
      %v1403 = vpop.f32.mrf.mxu0
      %v1404 = vadd.f32 %v510, %v1403
      %1405 = vmatmul.bf16.gmra.mxu0 %v550
      %v1406 = vpop.f32.mrf.mxu0
      %v1407 = vadd.f32 %v510, %v1406
      %v1408 = vpop.f32.mrf.mxu0
      %v1409 = vadd.f32 %v510, %v1408
      %1410 = vmatmul.bf16.gmra.mxu0 %v551
      %v1411 = vpop.f32.mrf.mxu0
      %v1412 = vadd.f32 %v510, %v1411
      %v1413 = vpop.f32.mrf.mxu0
      %1414 = vdwg.mxu0
      %1415 = vmatpush.bf16.xpose.msra.mxu0 %v1106
      %1416 = vmatpush.bf16.xpose.msra.mxu0 %v1105
      %1417 = vmatpush.bf16.xpose.msra.mxu0 %v1104
      %1418 = vmatpush.bf16.xpose.msra.mxu0 %v1103
      %1419 = vmatpush.bf16.xpose.msra.mxu0 %v1102
      %1420 = vmatpush.bf16.xpose.msra.mxu0 %v1101
      %1421 = vmatpush.bf16.xpose.msra.mxu0 %v1100
      %1422 = vmatpush.bf16.xpose.msra.mxu0 %v1099
      %1423 = vmatmul.bf16.gmra.mxu0 %v549
      %v1424 = vpop.f32.mrf.mxu0
      %v1425 = vadd.f32 %v511, %v1424
      %v1426 = vpop.f32.mrf.mxu0
      %v1427 = vadd.f32 %v511, %v1426
      %1428 = vmatmul.bf16.gmra.mxu0 %v550
      %v1429 = vpop.f32.mrf.mxu0
      %v1430 = vadd.f32 %v511, %v1429
      %v1431 = vpop.f32.mrf.mxu0
      %v1432 = vadd.f32 %v511, %v1431
      %1433 = vmatmul.bf16.gmra.mxu0 %v551
      %v1434 = vpop.f32.mrf.mxu0
      %v1435 = vadd.f32 %v511, %v1434
      %v1436 = vpop.f32.mrf.mxu0
      %1437 = vdwg.mxu0
      %1438 = vmatpush.bf16.xpose.msra.mxu0 %v1114
      %1439 = vmatpush.bf16.xpose.msra.mxu0 %v1113
      %1440 = vmatpush.bf16.xpose.msra.mxu0 %v1112
      %1441 = vmatpush.bf16.xpose.msra.mxu0 %v1111
      %1442 = vmatpush.bf16.xpose.msra.mxu0 %v1110
      %1443 = vmatpush.bf16.xpose.msra.mxu0 %v1109
      %1444 = vmatpush.bf16.xpose.msra.mxu0 %v1108
      %1445 = vmatpush.bf16.xpose.msra.mxu0 %v1107
      %1446 = vmatmul.bf16.gmra.mxu0 %v549
      %v1447 = vpop.f32.mrf.mxu0
      %v1448 = vadd.f32 %v512, %v1447
      %v1449 = vpop.f32.mrf.mxu0
      %v1450 = vadd.f32 %v512, %v1449
      %1451 = vmatmul.bf16.gmra.mxu0 %v550
      %v1452 = vpop.f32.mrf.mxu0
      %v1453 = vadd.f32 %v512, %v1452
      %v1454 = vpop.f32.mrf.mxu0
      %v1455 = vadd.f32 %v512, %v1454
      %1456 = vmatmul.bf16.gmra.mxu0 %v551
      %v1457 = vpop.f32.mrf.mxu0
      %v1458 = vadd.f32 %v512, %v1457
      %v1459 = vpop.f32.mrf.mxu0
      %1460 = vdwg.mxu0
      %1461 = vmatpush.bf16.xpose.msra.mxu0 %v1122
      %1462 = vmatpush.bf16.xpose.msra.mxu0 %v1121
      %1463 = vmatpush.bf16.xpose.msra.mxu0 %v1120
      %1464 = vmatpush.bf16.xpose.msra.mxu0 %v1119
      %1465 = vmatpush.bf16.xpose.msra.mxu0 %v1118
      %1466 = vmatpush.bf16.xpose.msra.mxu0 %v1117
      %1467 = vmatpush.bf16.xpose.msra.mxu0 %v1116
      %1468 = vmatpush.bf16.xpose.msra.mxu0 %v1115
      %1469 = vmatmul.bf16.gmra.mxu0 %v549
      %v1470 = vpop.f32.mrf.mxu0
      %v1471 = vadd.f32 %v513, %v1470
      %v1472 = vpop.f32.mrf.mxu0
      %v1473 = vadd.f32 %v513, %v1472
      %1474 = vmatmul.bf16.gmra.mxu0 %v550
      %v1475 = vpop.f32.mrf.mxu0
      %v1476 = vadd.f32 %v513, %v1475
      %v1477 = vpop.f32.mrf.mxu0
      %v1478 = vadd.f32 %v513, %v1477
      %1479 = vmatmul.bf16.gmra.mxu0 %v551
      %v1480 = vpop.f32.mrf.mxu0
      %v1481 = vadd.f32 %v513, %v1480
      %v1482 = vpop.f32.mrf.mxu0
      %1483 = vdwg.mxu0
      %1484 = vmatpush.bf16.xpose.msra.mxu0 %v1130
      %1485 = vmatpush.bf16.xpose.msra.mxu0 %v1129
      %1486 = vmatpush.bf16.xpose.msra.mxu0 %v1128
      %1487 = vmatpush.bf16.xpose.msra.mxu0 %v1127
      %1488 = vmatpush.bf16.xpose.msra.mxu0 %v1126
      %1489 = vmatpush.bf16.xpose.msra.mxu0 %v1125
      %1490 = vmatpush.bf16.xpose.msra.mxu0 %v1124
      %1491 = vmatpush.bf16.xpose.msra.mxu0 %v1123
      %1492 = vmatmul.bf16.gmra.mxu0 %v549
      %v1493 = vpop.f32.mrf.mxu0
      %v1494 = vadd.f32 %v514, %v1493
      %v1495 = vpop.f32.mrf.mxu0
      %v1496 = vadd.f32 %v514, %v1495
      %1497 = vmatmul.bf16.gmra.mxu0 %v550
      %v1498 = vpop.f32.mrf.mxu0
      %v1499 = vadd.f32 %v514, %v1498
      %v1500 = vpop.f32.mrf.mxu0
      %v1501 = vadd.f32 %v514, %v1500
      %1502 = vmatmul.bf16.gmra.mxu0 %v551
      %v1503 = vpop.f32.mrf.mxu0
      %v1504 = vadd.f32 %v514, %v1503
      %v1505 = vpop.f32.mrf.mxu0
      %1506 = vdwg.mxu0
      %1507 = vmatpush.bf16.xpose.msra.mxu0 %v1138
      %1508 = vmatpush.bf16.xpose.msra.mxu0 %v1137
      %1509 = vmatpush.bf16.xpose.msra.mxu0 %v1136
      %1510 = vmatpush.bf16.xpose.msra.mxu0 %v1135
      %1511 = vmatpush.bf16.xpose.msra.mxu0 %v1134
      %1512 = vmatpush.bf16.xpose.msra.mxu0 %v1133
      %1513 = vmatpush.bf16.xpose.msra.mxu0 %v1132
      %1514 = vmatpush.bf16.xpose.msra.mxu0 %v1131
      %1515 = vmatmul.bf16.gmra.mxu0 %v549
      %v1516 = vpop.f32.mrf.mxu0
      %v1517 = vadd.f32 %v515, %v1516
      %v1518 = vpop.f32.mrf.mxu0
      %v1519 = vadd.f32 %v515, %v1518
      %1520 = vmatmul.bf16.gmra.mxu0 %v550
      %v1521 = vpop.f32.mrf.mxu0
      %v1522 = vadd.f32 %v515, %v1521
      %v1523 = vpop.f32.mrf.mxu0
      %v1524 = vadd.f32 %v515, %v1523
      %1525 = vmatmul.bf16.gmra.mxu0 %v551
      %v1526 = vpop.f32.mrf.mxu0
      %v1527 = vadd.f32 %v515, %v1526
      %v1528 = vpop.f32.mrf.mxu0
      %1529 = vdwg.mxu0
      %1530 = vmatpush.bf16.xpose.msra.mxu0 %v1146
      %1531 = vmatpush.bf16.xpose.msra.mxu0 %v1145
      %1532 = vmatpush.bf16.xpose.msra.mxu0 %v1144
      %1533 = vmatpush.bf16.xpose.msra.mxu0 %v1143
      %1534 = vmatpush.bf16.xpose.msra.mxu0 %v1142
      %1535 = vmatpush.bf16.xpose.msra.mxu0 %v1141
      %1536 = vmatpush.bf16.xpose.msra.mxu0 %v1140
      %1537 = vmatpush.bf16.xpose.msra.mxu0 %v1139
      %1538 = vmatmul.bf16.gmra.mxu0 %v549
      %v1539 = vpop.f32.mrf.mxu0
      %v1540 = vadd.f32 %v516, %v1539
      %v1541 = vpop.f32.mrf.mxu0
      %v1542 = vadd.f32 %v516, %v1541
      %1543 = vmatmul.bf16.gmra.mxu0 %v550
      %v1544 = vpop.f32.mrf.mxu0
      %v1545 = vadd.f32 %v516, %v1544
      %v1546 = vpop.f32.mrf.mxu0
      %v1547 = vadd.f32 %v516, %v1546
      %1548 = vmatmul.bf16.gmra.mxu0 %v551
      %v1549 = vpop.f32.mrf.mxu0
      %v1550 = vadd.f32 %v516, %v1549
      %v1551 = vpop.f32.mrf.mxu0
      %1552 = vdwg.mxu0
      %1553 = vmatpush.bf16.xpose.msra.mxu0 %v1154
      %1554 = vmatpush.bf16.xpose.msra.mxu0 %v1153
      %1555 = vmatpush.bf16.xpose.msra.mxu0 %v1152
      %1556 = vmatpush.bf16.xpose.msra.mxu0 %v1151
      %1557 = vmatpush.bf16.xpose.msra.mxu0 %v1150
      %1558 = vmatpush.bf16.xpose.msra.mxu0 %v1149
      %1559 = vmatpush.bf16.xpose.msra.mxu0 %v1148
      %1560 = vmatpush.bf16.xpose.msra.mxu0 %v1147
      %1561 = vmatmul.bf16.gmra.mxu0 %v549
      %v1562 = vpop.f32.mrf.mxu0
      %v1563 = vadd.f32 %v517, %v1562
      %v1564 = vpop.f32.mrf.mxu0
      %v1565 = vadd.f32 %v517, %v1564
      %1566 = vmatmul.bf16.gmra.mxu0 %v550
      %v1567 = vpop.f32.mrf.mxu0
      %v1568 = vadd.f32 %v517, %v1567
      %v1569 = vpop.f32.mrf.mxu0
      %v1570 = vadd.f32 %v517, %v1569
      %1571 = vmatmul.bf16.gmra.mxu0 %v551
      %v1572 = vpop.f32.mrf.mxu0
      %v1573 = vadd.f32 %v517, %v1572
      %v1574 = vpop.f32.mrf.mxu0
      %1575 = vdwg.mxu0
      %1576 = vmatpush.bf16.xpose.msra.mxu0 %v1162
      %1577 = vmatpush.bf16.xpose.msra.mxu0 %v1161
      %1578 = vmatpush.bf16.xpose.msra.mxu0 %v1160
      %1579 = vmatpush.bf16.xpose.msra.mxu0 %v1159
      %1580 = vmatpush.bf16.xpose.msra.mxu0 %v1158
      %1581 = vmatpush.bf16.xpose.msra.mxu0 %v1157
      %1582 = vmatpush.bf16.xpose.msra.mxu0 %v1156
      %1583 = vmatpush.bf16.xpose.msra.mxu0 %v1155
      %1584 = vmatmul.bf16.gmra.mxu0 %v549
      %v1585 = vpop.f32.mrf.mxu0
      %v1586 = vadd.f32 %v518, %v1585
      %v1587 = vpop.f32.mrf.mxu0
      %v1588 = vadd.f32 %v518, %v1587
      %1589 = vmatmul.bf16.gmra.mxu0 %v550
      %v1590 = vpop.f32.mrf.mxu0
      %v1591 = vadd.f32 %v518, %v1590
      %v1592 = vpop.f32.mrf.mxu0
      %v1593 = vadd.f32 %v518, %v1592
      %1594 = vmatmul.bf16.gmra.mxu0 %v551
      %v1595 = vpop.f32.mrf.mxu0
      %v1596 = vadd.f32 %v518, %v1595
      %v1597 = vpop.f32.mrf.mxu0
      %1598 = vdwg.mxu0
      %1599 = vmatpush.bf16.xpose.msra.mxu0 %v1170
      %1600 = vmatpush.bf16.xpose.msra.mxu0 %v1169
      %1601 = vmatpush.bf16.xpose.msra.mxu0 %v1168
      %1602 = vmatpush.bf16.xpose.msra.mxu0 %v1167
      %1603 = vmatpush.bf16.xpose.msra.mxu0 %v1166
      %1604 = vmatpush.bf16.xpose.msra.mxu0 %v1165
      %1605 = vmatpush.bf16.xpose.msra.mxu0 %v1164
      %1606 = vmatpush.bf16.xpose.msra.mxu0 %v1163
      %1607 = vmatmul.bf16.gmra.mxu0 %v549
      %v1608 = vpop.f32.mrf.mxu0
      %v1609 = vadd.f32 %v519, %v1608
      %v1610 = vpop.f32.mrf.mxu0
      %v1611 = vadd.f32 %v519, %v1610
      %1612 = vmatmul.bf16.gmra.mxu0 %v550
      %v1613 = vpop.f32.mrf.mxu0
      %v1614 = vadd.f32 %v519, %v1613
      %v1615 = vpop.f32.mrf.mxu0
      %v1616 = vadd.f32 %v519, %v1615
      %1617 = vmatmul.bf16.gmra.mxu0 %v551
      %v1618 = vpop.f32.mrf.mxu0
      %v1619 = vadd.f32 %v519, %v1618
      %v1620 = vpop.f32.mrf.mxu0
      %1621 = vdwg.mxu0
      %1622 = vmatpush.bf16.xpose.msra.mxu0 %v1178
      %1623 = vmatpush.bf16.xpose.msra.mxu0 %v1177
      %1624 = vmatpush.bf16.xpose.msra.mxu0 %v1176
      %1625 = vmatpush.bf16.xpose.msra.mxu0 %v1175
      %1626 = vmatpush.bf16.xpose.msra.mxu0 %v1174
      %1627 = vmatpush.bf16.xpose.msra.mxu0 %v1173
      %1628 = vmatpush.bf16.xpose.msra.mxu0 %v1172
      %1629 = vmatpush.bf16.xpose.msra.mxu0 %v1171
      %1630 = vmatmul.bf16.gmra.mxu0 %v549
      %v1631 = vpop.f32.mrf.mxu0
      %v1632 = vadd.f32 %v520, %v1631
      %v1633 = vpop.f32.mrf.mxu0
      %v1634 = vadd.f32 %v520, %v1633
      %1635 = vmatmul.bf16.gmra.mxu0 %v550
      %v1636 = vpop.f32.mrf.mxu0
      %v1637 = vadd.f32 %v520, %v1636
      %v1638 = vpop.f32.mrf.mxu0
      %v1639 = vadd.f32 %v520, %v1638
      %1640 = vmatmul.bf16.gmra.mxu0 %v551
      %v1641 = vpop.f32.mrf.mxu0
      %v1642 = vadd.f32 %v520, %v1641
      %v1643 = vpop.f32.mrf.mxu0
      %1644 = vdwg.mxu0
      %1645 = vmatpush.bf16.xpose.msra.mxu0 %v1186
      %1646 = vmatpush.bf16.xpose.msra.mxu0 %v1185
      %1647 = vmatpush.bf16.xpose.msra.mxu0 %v1184
      %1648 = vmatpush.bf16.xpose.msra.mxu0 %v1183
      %1649 = vmatpush.bf16.xpose.msra.mxu0 %v1182
      %1650 = vmatpush.bf16.xpose.msra.mxu0 %v1181
      %1651 = vmatpush.bf16.xpose.msra.mxu0 %v1180
      %1652 = vmatpush.bf16.xpose.msra.mxu0 %v1179
      %1653 = vmatmul.bf16.gmra.mxu0 %v549
      %v1654 = vpop.f32.mrf.mxu0
      %v1655 = vadd.f32 %v521, %v1654
      %v1656 = vpop.f32.mrf.mxu0
      %v1657 = vadd.f32 %v521, %v1656
      %1658 = vmatmul.bf16.gmra.mxu0 %v550
      %v1659 = vpop.f32.mrf.mxu0
      %v1660 = vadd.f32 %v521, %v1659
      %v1661 = vpop.f32.mrf.mxu0
      %v1662 = vadd.f32 %v521, %v1661
      %1663 = vmatmul.bf16.gmra.mxu0 %v551
      %v1664 = vpop.f32.mrf.mxu0
      %v1665 = vadd.f32 %v521, %v1664
      %v1666 = vpop.f32.mrf.mxu0
      %1667 = vdwg.mxu0
      %1668 = vmatpush.bf16.xpose.msra.mxu0 %v1194
      %1669 = vmatpush.bf16.xpose.msra.mxu0 %v1193
      %1670 = vmatpush.bf16.xpose.msra.mxu0 %v1192
      %1671 = vmatpush.bf16.xpose.msra.mxu0 %v1191
      %1672 = vmatpush.bf16.xpose.msra.mxu0 %v1190
      %1673 = vmatpush.bf16.xpose.msra.mxu0 %v1189
      %1674 = vmatpush.bf16.xpose.msra.mxu0 %v1188
      %1675 = vmatpush.bf16.xpose.msra.mxu0 %v1187
      %1676 = vmatmul.bf16.gmra.mxu0 %v549
      %v1677 = vpop.f32.mrf.mxu0
      %v1678 = vadd.f32 %v522, %v1677
      %v1679 = vpop.f32.mrf.mxu0
      %v1680 = vadd.f32 %v522, %v1679
      %1681 = vmatmul.bf16.gmra.mxu0 %v550
      %v1682 = vpop.f32.mrf.mxu0
      %v1683 = vadd.f32 %v522, %v1682
      %v1684 = vpop.f32.mrf.mxu0
      %v1685 = vadd.f32 %v522, %v1684
      %1686 = vmatmul.bf16.gmra.mxu0 %v551
      %v1687 = vpop.f32.mrf.mxu0
      %v1688 = vadd.f32 %v522, %v1687
      %v1689 = vpop.f32.mrf.mxu0
      %1690 = vdwg.mxu0
      %v1691 = vld [vmem:[#allocation2] sm:$0xff]
      %v1692 = vld [vmem:[#allocation2 + $0x8] sm:$0xff]
      %v1693 = vld [vmem:[#allocation2 + $0x10] sm:$0xff]
      %v1694 = vld [vmem:[#allocation2 + $0x18] sm:$0xff]
      %v1695 = vld [vmem:[#allocation2 + $0x20] sm:$0xff]
      %v1696 = vmax.f32 %v1333, %v1356
      %v1697 = vmax.f32 %v1696, %v1379
      %v1698 = vmax.f32 %v1697, %v1402
      %v1699 = vmax.f32 %v1698, %v1425
      %v1700 = vmax.f32 %v1699, %v1448
      %v1701 = vmax.f32 %v1700, %v1471
      %v1702 = vmax.f32 %v1701, %v1494
      %v1703 = vmax.f32 %v1702, %v1517
      %v1704 = vmax.f32 %v1703, %v1540
      %v1705 = vmax.f32 %v1704, %v1563
      %v1706 = vmax.f32 %v1705, %v1586
      %v1707 = vmax.f32 %v1706, %v1609
      %v1708 = vmax.f32 %v1707, %v1632
      %v1709 = vmax.f32 %v1708, %v1655
      %v1710 = vmax.f32 %v1709, %v1678
      %1711 = vmax.xlane.f32.xlu0 %v1710
      %v1712 = vpop.xlane.xlu0 %1711
      %v1713 = vmax.f32 %v1335, %v1358
      %v1714 = vmax.f32 %v1713, %v1381
      %v1715 = vmax.f32 %v1714, %v1404
      %v1716 = vmax.f32 %v1715, %v1427
      %v1717 = vmax.f32 %v1716, %v1450
      %v1718 = vmax.f32 %v1717, %v1473
      %v1719 = vmax.f32 %v1718, %v1496
      %v1720 = vmax.f32 %v1719, %v1519
      %v1721 = vmax.f32 %v1720, %v1542
      %v1722 = vmax.f32 %v1721, %v1565
      %v1723 = vmax.f32 %v1722, %v1588
      %v1724 = vmax.f32 %v1723, %v1611
      %v1725 = vmax.f32 %v1724, %v1634
      %v1726 = vmax.f32 %v1725, %v1657
      %v1727 = vmax.f32 %v1726, %v1680
      %1728 = vmax.xlane.f32.xlu0 %v1727
      %v1729 = vpop.xlane.xlu0 %1728
      %v1730 = vmax.f32 %v1338, %v1361
      %v1731 = vmax.f32 %v1730, %v1384
      %v1732 = vmax.f32 %v1731, %v1407
      %v1733 = vmax.f32 %v1732, %v1430
      %v1734 = vmax.f32 %v1733, %v1453
      %v1735 = vmax.f32 %v1734, %v1476
      %v1736 = vmax.f32 %v1735, %v1499
      %v1737 = vmax.f32 %v1736, %v1522
      %v1738 = vmax.f32 %v1737, %v1545
      %v1739 = vmax.f32 %v1738, %v1568
      %v1740 = vmax.f32 %v1739, %v1591
      %v1741 = vmax.f32 %v1740, %v1614
      %v1742 = vmax.f32 %v1741, %v1637
      %v1743 = vmax.f32 %v1742, %v1660
      %v1744 = vmax.f32 %v1743, %v1683
      %1745 = vmax.xlane.f32.xlu0 %v1744
      %v1746 = vpop.xlane.xlu0 %1745
      %v1747 = vmax.f32 %v1340, %v1363
      %v1748 = vmax.f32 %v1747, %v1386
      %v1749 = vmax.f32 %v1748, %v1409
      %v1750 = vmax.f32 %v1749, %v1432
      %v1751 = vmax.f32 %v1750, %v1455
      %v1752 = vmax.f32 %v1751, %v1478
      %v1753 = vmax.f32 %v1752, %v1501
      %v1754 = vmax.f32 %v1753, %v1524
      %v1755 = vmax.f32 %v1754, %v1547
      %v1756 = vmax.f32 %v1755, %v1570
      %v1757 = vmax.f32 %v1756, %v1593
      %v1758 = vmax.f32 %v1757, %v1616
      %v1759 = vmax.f32 %v1758, %v1639
      %v1760 = vmax.f32 %v1759, %v1662
      %v1761 = vmax.f32 %v1760, %v1685
      %1762 = vmax.xlane.f32.xlu0 %v1761
      %v1763 = vpop.xlane.xlu0 %1762
      %v1764 = vmax.f32 %v1343, %v1366
      %v1765 = vmax.f32 %v1764, %v1389
      %v1766 = vmax.f32 %v1765, %v1412
      %v1767 = vmax.f32 %v1766, %v1435
      %v1768 = vmax.f32 %v1767, %v1458
      %v1769 = vmax.f32 %v1768, %v1481
      %v1770 = vmax.f32 %v1769, %v1504
      %v1771 = vmax.f32 %v1770, %v1527
      %v1772 = vmax.f32 %v1771, %v1550
      %v1773 = vmax.f32 %v1772, %v1573
      %v1774 = vmax.f32 %v1773, %v1596
      %v1775 = vmax.f32 %v1774, %v1619
      %v1776 = vmax.f32 %v1775, %v1642
      %v1777 = vmax.f32 %v1776, %v1665
      %v1778 = vmax.f32 %v1777, %v1688
      %1779 = vmax.xlane.f32.xlu0 %v1778
      %v1780 = vpop.xlane.xlu0 %1779
      %v1781 = vmax.f32 %v1691, %v1712
      %v1782 = vmax.f32 %v1692, %v1729
      %v1783 = vmax.f32 %v1693, %v1746
      %v1784 = vmax.f32 %v1694, %v1763
      %v1785 = vmax.f32 %v1695, %v1780
      %v1786 = vsub.f32 %v1691, %v1781
      %v1787 = vsub.f32 %v1692, %v1782
      %v1788 = vsub.f32 %v1693, %v1783
      %v1789 = vsub.f32 %v1694, %v1784
      %v1790 = vsub.f32 %v1695, %v1785
      %v1791 = vmul.f32 %v1786, 1.442695
      %v1792 = vpow.pop %v1791
      %v1793 = vmul.f32 %v1787, 1.442695
      %v1794 = vpow.pop %v1793
      %v1795 = vmul.f32 %v1788, 1.442695
      %v1796 = vpow.pop %v1795
      %v1797 = vmul.f32 %v1789, 1.442695
      %v1798 = vpow.pop %v1797
      %v1799 = vmul.f32 %v1790, 1.442695
      %v1800 = vpow.pop %v1799
      %v1801 = vld [vmem:[#allocation3] sm:$0xff]
      %v1802 = vld [vmem:[#allocation3 + $0x8] sm:$0xff]
      %v1803 = vld [vmem:[#allocation3 + $0x10] sm:$0xff]
      %v1804 = vld [vmem:[#allocation3 + $0x18] sm:$0xff]
      %v1805 = vld [vmem:[#allocation3 + $0x20] sm:$0xff]
      %v1806 = vmul.f32 %v1792, %v1801
      %v1807 = vmul.f32 %v1794, %v1802
      %v1808 = vmul.f32 %v1796, %v1803
      %v1809 = vmul.f32 %v1798, %v1804
      %v1810 = vmul.f32 %v1800, %v1805
      %1812 = vset.pattern.permute.xlu0 0
      %1813 = vperm.xlu0 %1812, %v1781
      %v1814 = vpop.permute.xlu0 %1813
      %1817 = vset.pattern.permute.xlu0 0
      %1818 = vperm.xlu0 %1817, %v1782
      %v1819 = vpop.permute.xlu0 %1818
      %1822 = vset.pattern.permute.xlu0 0
      %1823 = vperm.xlu0 %1822, %v1783
      %v1824 = vpop.permute.xlu0 %1823
      %1827 = vset.pattern.permute.xlu0 0
      %1828 = vperm.xlu0 %1827, %v1784
      %v1829 = vpop.permute.xlu0 %1828
      %1832 = vset.pattern.permute.xlu0 0
      %1833 = vperm.xlu0 %1832, %v1785
      %v1834 = vpop.permute.xlu0 %1833
      %v1836 = vsub.f32 %v1333, %v1814
      %v1837 = vsub.f32 %v1356, %v1814
      %v1838 = vsub.f32 %v1379, %v1814
      %v1839 = vsub.f32 %v1402, %v1814
      %v1840 = vsub.f32 %v1425, %v1814
      %v1841 = vsub.f32 %v1448, %v1814
      %v1842 = vsub.f32 %v1471, %v1814
      %v1843 = vsub.f32 %v1494, %v1814
      %v1844 = vsub.f32 %v1517, %v1814
      %v1845 = vsub.f32 %v1540, %v1814
      %v1846 = vsub.f32 %v1563, %v1814
      %v1847 = vsub.f32 %v1586, %v1814
      %v1848 = vsub.f32 %v1609, %v1814
      %v1849 = vsub.f32 %v1632, %v1814
      %v1850 = vsub.f32 %v1655, %v1814
      %v1851 = vsub.f32 %v1678, %v1814
      %v1852 = vsub.f32 %v1335, %v1819
      %v1853 = vsub.f32 %v1358, %v1819
      %v1854 = vsub.f32 %v1381, %v1819
      %v1855 = vsub.f32 %v1404, %v1819
      %v1856 = vsub.f32 %v1427, %v1819
      %v1857 = vsub.f32 %v1450, %v1819
      %v1858 = vsub.f32 %v1473, %v1819
      %v1859 = vsub.f32 %v1496, %v1819
      %v1860 = vsub.f32 %v1519, %v1819
      %v1861 = vsub.f32 %v1542, %v1819
      %v1862 = vsub.f32 %v1565, %v1819
      %v1863 = vsub.f32 %v1588, %v1819
      %v1864 = vsub.f32 %v1611, %v1819
      %v1865 = vsub.f32 %v1634, %v1819
      %v1866 = vsub.f32 %v1657, %v1819
      %v1867 = vsub.f32 %v1680, %v1819
      %v1868 = vsub.f32 %v1338, %v1824
      %v1869 = vsub.f32 %v1361, %v1824
      %v1870 = vsub.f32 %v1384, %v1824
      %v1871 = vsub.f32 %v1407, %v1824
      %v1872 = vsub.f32 %v1430, %v1824
      %v1873 = vsub.f32 %v1453, %v1824
      %v1874 = vsub.f32 %v1476, %v1824
      %v1875 = vsub.f32 %v1499, %v1824
      %v1876 = vsub.f32 %v1522, %v1824
      %v1877 = vsub.f32 %v1545, %v1824
      %v1878 = vsub.f32 %v1568, %v1824
      %v1879 = vsub.f32 %v1591, %v1824
      %v1880 = vsub.f32 %v1614, %v1824
      %v1881 = vsub.f32 %v1637, %v1824
      %v1882 = vsub.f32 %v1660, %v1824
      %v1883 = vsub.f32 %v1683, %v1824
      %v1884 = vsub.f32 %v1340, %v1829
      %v1885 = vsub.f32 %v1363, %v1829
      %v1886 = vsub.f32 %v1386, %v1829
      %v1887 = vsub.f32 %v1409, %v1829
      %v1888 = vsub.f32 %v1432, %v1829
      %v1889 = vsub.f32 %v1455, %v1829
      %v1890 = vsub.f32 %v1478, %v1829
      %v1891 = vsub.f32 %v1501, %v1829
      %v1892 = vsub.f32 %v1524, %v1829
      %v1893 = vsub.f32 %v1547, %v1829
      %v1894 = vsub.f32 %v1570, %v1829
      %v1895 = vsub.f32 %v1593, %v1829
      %v1896 = vsub.f32 %v1616, %v1829
      %v1897 = vsub.f32 %v1639, %v1829
      %v1898 = vsub.f32 %v1662, %v1829
      %v1899 = vsub.f32 %v1685, %v1829
      %v1900 = vsub.f32 %v1343, %v1834
      %v1901 = vsub.f32 %v1366, %v1834
      %v1902 = vsub.f32 %v1389, %v1834
      %v1903 = vsub.f32 %v1412, %v1834
      %v1904 = vsub.f32 %v1435, %v1834
      %v1905 = vsub.f32 %v1458, %v1834
      %v1906 = vsub.f32 %v1481, %v1834
      %v1907 = vsub.f32 %v1504, %v1834
      %v1908 = vsub.f32 %v1527, %v1834
      %v1909 = vsub.f32 %v1550, %v1834
      %v1910 = vsub.f32 %v1573, %v1834
      %v1911 = vsub.f32 %v1596, %v1834
      %v1912 = vsub.f32 %v1619, %v1834
      %v1913 = vsub.f32 %v1642, %v1834
      %v1914 = vsub.f32 %v1665, %v1834
      %v1915 = vsub.f32 %v1688, %v1834
      %v1916 = vmul.f32 %v1836, 1.442695
      %v1917 = vpow.pop %v1916
      %v1918 = vmul.f32 %v1837, 1.442695
      %v1919 = vpow.pop %v1918
      %v1920 = vmul.f32 %v1838, 1.442695
      %v1921 = vpow.pop %v1920
      %v1922 = vmul.f32 %v1839, 1.442695
      %v1923 = vpow.pop %v1922
      %v1924 = vmul.f32 %v1840, 1.442695
      %v1925 = vpow.pop %v1924
      %v1926 = vmul.f32 %v1841, 1.442695
      %v1927 = vpow.pop %v1926
      %v1928 = vmul.f32 %v1842, 1.442695
      %v1929 = vpow.pop %v1928
      %v1930 = vmul.f32 %v1843, 1.442695
      %v1931 = vpow.pop %v1930
      %v1932 = vmul.f32 %v1844, 1.442695
      %v1933 = vpow.pop %v1932
      %v1934 = vmul.f32 %v1845, 1.442695
      %v1935 = vpow.pop %v1934
      %v1936 = vmul.f32 %v1846, 1.442695
      %v1937 = vpow.pop %v1936
      %v1938 = vmul.f32 %v1847, 1.442695
      %v1939 = vpow.pop %v1938
      %v1940 = vmul.f32 %v1848, 1.442695
      %v1941 = vpow.pop %v1940
      %v1942 = vmul.f32 %v1849, 1.442695
      %v1943 = vpow.pop %v1942
      %v1944 = vmul.f32 %v1850, 1.442695
      %v1945 = vpow.pop %v1944
      %v1946 = vmul.f32 %v1851, 1.442695
      %v1947 = vpow.pop %v1946
      %v1948 = vmul.f32 %v1852, 1.442695
      %v1949 = vpow.pop %v1948
      %v1950 = vmul.f32 %v1853, 1.442695
      %v1951 = vpow.pop %v1950
      %v1952 = vmul.f32 %v1854, 1.442695
      %v1953 = vpow.pop %v1952
      %v1954 = vmul.f32 %v1855, 1.442695
      %v1955 = vpow.pop %v1954
      %v1956 = vmul.f32 %v1856, 1.442695
      %v1957 = vpow.pop %v1956
      %v1958 = vmul.f32 %v1857, 1.442695
      %v1959 = vpow.pop %v1958
      %v1960 = vmul.f32 %v1858, 1.442695
      %v1961 = vpow.pop %v1960
      %v1962 = vmul.f32 %v1859, 1.442695
      %v1963 = vpow.pop %v1962
      %v1964 = vmul.f32 %v1860, 1.442695
      %v1965 = vpow.pop %v1964
      %v1966 = vmul.f32 %v1861, 1.442695
      %v1967 = vpow.pop %v1966
      %v1968 = vmul.f32 %v1862, 1.442695
      %v1969 = vpow.pop %v1968
      %v1970 = vmul.f32 %v1863, 1.442695
      %v1971 = vpow.pop %v1970
      %v1972 = vmul.f32 %v1864, 1.442695
      %v1973 = vpow.pop %v1972
      %v1974 = vmul.f32 %v1865, 1.442695
      %v1975 = vpow.pop %v1974
      %v1976 = vmul.f32 %v1866, 1.442695
      %v1977 = vpow.pop %v1976
      %v1978 = vmul.f32 %v1867, 1.442695
      %v1979 = vpow.pop %v1978
      %v1980 = vmul.f32 %v1868, 1.442695
      %v1981 = vpow.pop %v1980
      %v1982 = vmul.f32 %v1869, 1.442695
      %v1983 = vpow.pop %v1982
      %v1984 = vmul.f32 %v1870, 1.442695
      %v1985 = vpow.pop %v1984
      %v1986 = vmul.f32 %v1871, 1.442695
      %v1987 = vpow.pop %v1986
      %v1988 = vmul.f32 %v1872, 1.442695
      %v1989 = vpow.pop %v1988
      %v1990 = vmul.f32 %v1873, 1.442695
      %v1991 = vpow.pop %v1990
      %v1992 = vmul.f32 %v1874, 1.442695
      %v1993 = vpow.pop %v1992
      %v1994 = vmul.f32 %v1875, 1.442695
      %v1995 = vpow.pop %v1994
      %v1996 = vmul.f32 %v1876, 1.442695
      %v1997 = vpow.pop %v1996
      %v1998 = vmul.f32 %v1877, 1.442695
      %v1999 = vpow.pop %v1998
      %v2000 = vmul.f32 %v1878, 1.442695
      %v2001 = vpow.pop %v2000
      %v2002 = vmul.f32 %v1879, 1.442695
      %v2003 = vpow.pop %v2002
      %v2004 = vmul.f32 %v1880, 1.442695
      %v2005 = vpow.pop %v2004
      %v2006 = vmul.f32 %v1881, 1.442695
      %v2007 = vpow.pop %v2006
      %v2008 = vmul.f32 %v1882, 1.442695
      %v2009 = vpow.pop %v2008
      %v2010 = vmul.f32 %v1883, 1.442695
      %v2011 = vpow.pop %v2010
      %v2012 = vmul.f32 %v1884, 1.442695
      %v2013 = vpow.pop %v2012
      %v2014 = vmul.f32 %v1885, 1.442695
      %v2015 = vpow.pop %v2014
      %v2016 = vmul.f32 %v1886, 1.442695
      %v2017 = vpow.pop %v2016
      %v2018 = vmul.f32 %v1887, 1.442695
      %v2019 = vpow.pop %v2018
      %v2020 = vmul.f32 %v1888, 1.442695
      %v2021 = vpow.pop %v2020
      %v2022 = vmul.f32 %v1889, 1.442695
      %v2023 = vpow.pop %v2022
      %v2024 = vmul.f32 %v1890, 1.442695
      %v2025 = vpow.pop %v2024
      %v2026 = vmul.f32 %v1891, 1.442695
      %v2027 = vpow.pop %v2026
      %v2028 = vmul.f32 %v1892, 1.442695
      %v2029 = vpow.pop %v2028
      %v2030 = vmul.f32 %v1893, 1.442695
      %v2031 = vpow.pop %v2030
      %v2032 = vmul.f32 %v1894, 1.442695
      %v2033 = vpow.pop %v2032
      %v2034 = vmul.f32 %v1895, 1.442695
      %v2035 = vpow.pop %v2034
      %v2036 = vmul.f32 %v1896, 1.442695
      %v2037 = vpow.pop %v2036
      %v2038 = vmul.f32 %v1897, 1.442695
      %v2039 = vpow.pop %v2038
      %v2040 = vmul.f32 %v1898, 1.442695
      %v2041 = vpow.pop %v2040
      %v2042 = vmul.f32 %v1899, 1.442695
      %v2043 = vpow.pop %v2042
      %v2044 = vmul.f32 %v1900, 1.442695
      %v2045 = vpow.pop %v2044
      %v2046 = vmul.f32 %v1901, 1.442695
      %v2047 = vpow.pop %v2046
      %v2048 = vmul.f32 %v1902, 1.442695
      %v2049 = vpow.pop %v2048
      %v2050 = vmul.f32 %v1903, 1.442695
      %v2051 = vpow.pop %v2050
      %v2052 = vmul.f32 %v1904, 1.442695
      %v2053 = vpow.pop %v2052
      %v2054 = vmul.f32 %v1905, 1.442695
      %v2055 = vpow.pop %v2054
      %v2056 = vmul.f32 %v1906, 1.442695
      %v2057 = vpow.pop %v2056
      %v2058 = vmul.f32 %v1907, 1.442695
      %v2059 = vpow.pop %v2058
      %v2060 = vmul.f32 %v1908, 1.442695
      %v2061 = vpow.pop %v2060
      %v2062 = vmul.f32 %v1909, 1.442695
      %v2063 = vpow.pop %v2062
      %v2064 = vmul.f32 %v1910, 1.442695
      %v2065 = vpow.pop %v2064
      %v2066 = vmul.f32 %v1911, 1.442695
      %v2067 = vpow.pop %v2066
      %v2068 = vmul.f32 %v1912, 1.442695
      %v2069 = vpow.pop %v2068
      %v2070 = vmul.f32 %v1913, 1.442695
      %v2071 = vpow.pop %v2070
      %v2072 = vmul.f32 %v1914, 1.442695
      %v2073 = vpow.pop %v2072
      %v2074 = vmul.f32 %v1915, 1.442695
      %v2075 = vpow.pop %v2074
      %v2076 = vadd.f32 %v1917, %v1919
      %v2077 = vadd.f32 %v2076, %v1921
      %v2078 = vadd.f32 %v2077, %v1923
      %v2079 = vadd.f32 %v2078, %v1925
      %v2080 = vadd.f32 %v2079, %v1927
      %v2081 = vadd.f32 %v2080, %v1929
      %v2082 = vadd.f32 %v2081, %v1931
      %v2083 = vadd.f32 %v2082, %v1933
      %v2084 = vadd.f32 %v2083, %v1935
      %v2085 = vadd.f32 %v2084, %v1937
      %v2086 = vadd.f32 %v2085, %v1939
      %v2087 = vadd.f32 %v2086, %v1941
      %v2088 = vadd.f32 %v2087, %v1943
      %v2089 = vadd.f32 %v2088, %v1945
      %v2090 = vadd.f32 %v2089, %v1947
      %2091 = vadd.xlane.f32.xlu0 %v2090
      %v2092 = vpop.xlane.xlu0 %2091
      %v2093 = vadd.f32 %v1949, %v1951
      %v2094 = vadd.f32 %v2093, %v1953
      %v2095 = vadd.f32 %v2094, %v1955
      %v2096 = vadd.f32 %v2095, %v1957
      %v2097 = vadd.f32 %v2096, %v1959
      %v2098 = vadd.f32 %v2097, %v1961
      %v2099 = vadd.f32 %v2098, %v1963
      %v2100 = vadd.f32 %v2099, %v1965
      %v2101 = vadd.f32 %v2100, %v1967
      %v2102 = vadd.f32 %v2101, %v1969
      %v2103 = vadd.f32 %v2102, %v1971
      %v2104 = vadd.f32 %v2103, %v1973
      %v2105 = vadd.f32 %v2104, %v1975
      %v2106 = vadd.f32 %v2105, %v1977
      %v2107 = vadd.f32 %v2106, %v1979
      %2108 = vadd.xlane.f32.xlu0 %v2107
      %v2109 = vpop.xlane.xlu0 %2108
      %v2110 = vadd.f32 %v1981, %v1983
      %v2111 = vadd.f32 %v2110, %v1985
      %v2112 = vadd.f32 %v2111, %v1987
      %v2113 = vadd.f32 %v2112, %v1989
      %v2114 = vadd.f32 %v2113, %v1991
      %v2115 = vadd.f32 %v2114, %v1993
      %v2116 = vadd.f32 %v2115, %v1995
      %v2117 = vadd.f32 %v2116, %v1997
      %v2118 = vadd.f32 %v2117, %v1999
      %v2119 = vadd.f32 %v2118, %v2001
      %v2120 = vadd.f32 %v2119, %v2003
      %v2121 = vadd.f32 %v2120, %v2005
      %v2122 = vadd.f32 %v2121, %v2007
      %v2123 = vadd.f32 %v2122, %v2009
      %v2124 = vadd.f32 %v2123, %v2011
      %2125 = vadd.xlane.f32.xlu0 %v2124
      %v2126 = vpop.xlane.xlu0 %2125
      %v2127 = vadd.f32 %v2013, %v2015
      %v2128 = vadd.f32 %v2127, %v2017
      %v2129 = vadd.f32 %v2128, %v2019
      %v2130 = vadd.f32 %v2129, %v2021
      %v2131 = vadd.f32 %v2130, %v2023
      %v2132 = vadd.f32 %v2131, %v2025
      %v2133 = vadd.f32 %v2132, %v2027
      %v2134 = vadd.f32 %v2133, %v2029
      %v2135 = vadd.f32 %v2134, %v2031
      %v2136 = vadd.f32 %v2135, %v2033
      %v2137 = vadd.f32 %v2136, %v2035
      %v2138 = vadd.f32 %v2137, %v2037
      %v2139 = vadd.f32 %v2138, %v2039
      %v2140 = vadd.f32 %v2139, %v2041
      %v2141 = vadd.f32 %v2140, %v2043
      %2142 = vadd.xlane.f32.xlu0 %v2141
      %v2143 = vpop.xlane.xlu0 %2142
      %v2144 = vadd.f32 %v2045, %v2047
      %v2145 = vadd.f32 %v2144, %v2049
      %v2146 = vadd.f32 %v2145, %v2051
      %v2147 = vadd.f32 %v2146, %v2053
      %v2148 = vadd.f32 %v2147, %v2055
      %v2149 = vadd.f32 %v2148, %v2057
      %v2150 = vadd.f32 %v2149, %v2059
      %v2151 = vadd.f32 %v2150, %v2061
      %v2152 = vadd.f32 %v2151, %v2063
      %v2153 = vadd.f32 %v2152, %v2065
      %v2154 = vadd.f32 %v2153, %v2067
      %v2155 = vadd.f32 %v2154, %v2069
      %v2156 = vadd.f32 %v2155, %v2071
      %v2157 = vadd.f32 %v2156, %v2073
      %v2158 = vadd.f32 %v2157, %v2075
      %2159 = vadd.xlane.f32.xlu0 %v2158
      %v2160 = vpop.xlane.xlu0 %2159
      %v2161 = vadd.f32 %v1806, %v2092
      %v2162 = vadd.f32 %v1807, %v2109
      %v2163 = vadd.f32 %v1808, %v2126
      %v2164 = vadd.f32 %v1809, %v2143
      %v2165 = vadd.f32 %v1810, %v2160
      %vm2166 = vcmask 7168
      %2167 = vst.msk [vmem:[#allocation3] sm:$0xff] %vm2166, %v2161
      %2168 = vst.msk [vmem:[#allocation3 + $0x8] sm:$0xff] %vm2166, %v2162
      %2169 = vst.msk [vmem:[#allocation3 + $0x10] sm:$0xff] %vm2166, %v2163
      %2170 = vst.msk [vmem:[#allocation3 + $0x18] sm:$0xff] %vm2166, %v2164
      %2171 = vst.msk [vmem:[#allocation3 + $0x20] sm:$0xff] %vm2166, %v2165
      %2172 = vst.msk [vmem:[#allocation2] sm:$0xff] %vm2166, %v1781
      %2173 = vst.msk [vmem:[#allocation2 + $0x8] sm:$0xff] %vm2166, %v1782
      %2174 = vst.msk [vmem:[#allocation2 + $0x10] sm:$0xff] %vm2166, %v1783
      %2175 = vst.msk [vmem:[#allocation2 + $0x18] sm:$0xff] %vm2166, %v1784
      %2176 = vst.msk [vmem:[#allocation2 + $0x20] sm:$0xff] %vm2166, %v1785
      %p2177 = scmp.eq.s32.totalorder %s19, 1
      // Predicated region
      $region37: #{skipgram_forward.2} parent=31 // pred_check
        %p2178 = pneg %p2177
      $region38: #{skipgram_forward.2} parent=31 // pred_check_branch
        %2180 = sbr.rel (%p2178) target = $region40
      $region39: #{skipgram_forward.2} parent=31 // pred_region
        %v2181 = vld [vmem:[#allocation2] sm:$0xff]
        %v2182 = vld [vmem:[#allocation2 + $0x8] sm:$0xff]
        %v2183 = vld [vmem:[#allocation2 + $0x10] sm:$0xff]
        %v2184 = vld [vmem:[#allocation2 + $0x18] sm:$0xff]
        %v2185 = vld [vmem:[#allocation2 + $0x20] sm:$0xff]
        %v2186 = vld [vmem:[#allocation3] sm:$0xff]
        %v2187 = vld [vmem:[#allocation3 + $0x8] sm:$0xff]
        %v2188 = vld [vmem:[#allocation3 + $0x10] sm:$0xff]
        %v2189 = vld [vmem:[#allocation3 + $0x18] sm:$0xff]
        %v2190 = vld [vmem:[#allocation3 + $0x20] sm:$0xff]
        %v2191 = vlog2.pop %v2186
        %v2192 = vmul.f32 %v2191, 0.6931472
        %v2193 = vlog2.pop %v2187
        %v2194 = vmul.f32 %v2193, 0.6931472
        %v2195 = vlog2.pop %v2188
        %v2196 = vmul.f32 %v2195, 0.6931472
        %v2197 = vlog2.pop %v2189
        %v2198 = vmul.f32 %v2197, 0.6931472
        %v2199 = vlog2.pop %v2190
        %v2200 = vmul.f32 %v2199, 0.6931472
        %v2201 = vadd.f32 %v2181, %v2192
        %v2202 = vadd.f32 %v2182, %v2194
        %v2203 = vadd.f32 %v2183, %v2196
        %v2204 = vadd.f32 %v2184, %v2198
        %v2205 = vadd.f32 %v2185, %v2200
        %2206 = vst.msk [vmem:[%s225] sm:$0xff] %vm2166, %v2201
        %2207 = vst.msk [vmem:[%s225 + $0x8] sm:$0xff] %vm2166, %v2202
        %2208 = vst.msk [vmem:[%s225 + $0x10] sm:$0xff] %vm2166, %v2203
        %2209 = vst.msk [vmem:[%s225 + $0x18] sm:$0xff] %vm2166, %v2204
        %2210 = vst.msk [vmem:[%s225 + $0x20] sm:$0xff] %vm2166, %v2205
      $region40: #{skipgram_forward.2} parent=31 // pred_fallthru
        _
      %s2211 = smul.u32 5, %s18
      %p2212 = scmp.lt.s32.totalorder %s2211, 4
      %s2213 = scalar_select %p2212, %s2211, 4
      %s2214 = smul.addr %s2213, 8
      %s2215 = scalar_lea.vmem %s3, %s2214
      // Predicated region
      $region41: #{skipgram_forward.2} parent=31 // pred_check
        %p2216 = pneg %p122
      $region42: #{skipgram_forward.2} parent=31 // pred_check_branch
        %2218 = sbr.rel (%p2216) target = $region44
      $region43: #{skipgram_forward.2} parent=31 // pred_region
        %s2219 = smul.u32 5, %s18
      $region44: #{skipgram_forward.2} parent=31 // pred_fallthru
        _
      // Predicated region
      $region45: #{skipgram_forward.2} parent=31 // pred_check
        %p2220 = pneg %p122
      $region46: #{skipgram_forward.2} parent=31 // pred_check_branch
        %2222 = sbr.rel (%p2220) target = $region48
      $region47: #{skipgram_forward.2} parent=31 // pred_region
        %s2223 = smul.u32 5, %s18
        %p2224 = scmp.lt.s32.totalorder %s2223, 4
        %s2225 = scalar_select %p2224, %s2223, 4
        %s2226 = smul.addr %s2225, 8
        %s2227 = scalar_lea.vmem %s3, %s2226
      $region48: #{skipgram_forward.2} parent=31 // pred_fallthru
        _
    $region32: #{skipgram_forward.2} parent=5 // pred_fallthru
      _
    %p2228 = scmp.le.s32.totalorder 2, %s9
    // Predicated region
    $region49: #{skipgram_forward.2} parent=5 // pred_check
      %p2229 = pneg %p2228
    $region50: #{skipgram_forward.2} parent=5 // pred_check_branch
      %2231 = sbr.rel (%p2229) target = $region52
    $region51: #{skipgram_forward.2} parent=5 // pred_region
      %s2232 = ssub.s32 %s9, 2
    $region52: #{skipgram_forward.2} parent=5 // pred_fallthru
      _
  $region6: #{skipgram_forward.2} parent=0 // loop_footer
    %s13 = sadd.s32 1, %s9
  $region7: #{skipgram_forward.2} parent=0 // loop_footer_branch
    %8 = sbr.rel target = $region3
  $region8: #{skipgram_forward.2} parent=0 // loop_exit
    _

</llo_original>
